<compile_context>
chip_gen: v5e
topology: v5e:2x2
jax: 0.10.0
libtpu: 0.0.40
codegen_flags: <defaults>
</compile_context>

<pallas_src>
import jax
import jax.numpy as jnp
from jax.experimental import pallas as pl
from jax.experimental.pallas import tpu as pltpu


def _upconv_kernel(x_ref, mh_ref, mwT_ref, w_ref, gamma_ref, beta_ref,
                   o_ref, up_ref, acc_ref):
    # x_ref     : (N, C, H, W)          VMEM input, resident across the grid
    # mh_ref    : (H2+2, H)             VMEM, bilinear row matrix with zero pad rows
    # mwT_ref   : (W, W2+2)             VMEM, bilinear col matrix^T with zero pad cols
    # w_ref     : (OC*C*9,)             SMEM, conv weight (OIHW, flattened)
    # gamma_ref : (OC,)                 SMEM, BatchNorm weight
    # beta_ref  : (OC,)                 SMEM, BatchNorm bias
    # o_ref     : (N, 1, H2, W2)        VMEM output block for channel `oc`
    # up_ref    : (C, N, H2+2, W2+2)    VMEM scratch, zero-padded upsampled input
    # acc_ref   : (N, H2, W2)           VMEM scratch, f32 conv accumulator
    N, C, H, W = x_ref.shape
    Hp, Wp = up_ref.shape[2], up_ref.shape[3]
    H2, W2 = Hp - 2, Wp - 2
    oc = pl.program_id(0)

    # ---- 1) bilinear upsample (align_corners=True) fused with zero halo ----
    # Width pass: all (n, c, h) rows batched into a single matmul.
    xw = jnp.dot(x_ref[...].reshape(N * C * H, W), mwT_ref[...],
                 preferred_element_type=jnp.float32)              # (N*C*H, W2+2)
    mh = mh_ref[...]                                              # (H2+2, H)
    # Height pass per (n, c) slab; zero rows/cols of mh / mwT produce the halo.
    for c in range(C):
        for n in range(N):
            b = n * C + c
            up_ref[c, n, :, :] = jnp.dot(
                mh, xw[b * H:(b + 1) * H, :],
                preferred_element_type=jnp.float32)               # (H2+2, W2+2)

    # ---- 2) 3x3 conv for output channel `oc` on the VPU (C*9 broadcast FMAs) ----
    acc_ref[...] = jnp.zeros_like(acc_ref)
    for c in range(C):
        part = jnp.zeros((N, H2, W2), dtype=jnp.float32)
        for ky in range(3):
            for kx in range(3):
                wv = w_ref[(oc * C + c) * 9 + ky * 3 + kx]        # scalar from SMEM
                part = part + wv * up_ref[c, :, pl.ds(ky, H2), pl.ds(kx, W2)]
        acc_ref[...] += part
    # NOTE: the conv bias is intentionally omitted — it cancels under BN below.

    # ---- 3) BatchNorm2d (training-mode batch stats) folded to scale/shift + ELU ----
    y = acc_ref[...]
    cnt = float(N * H2 * W2)
    mean = jnp.sum(y) / cnt
    d = y - mean
    var = jnp.sum(d * d) / cnt                 # biased variance (PyTorch training BN)
    scale = gamma_ref[oc] * jax.lax.rsqrt(var + 1e-5)
    shift = beta_ref[oc] - mean * scale
    yn = y * scale + shift
    # ELU (alpha=1), written with exp + clamp to keep the unselected branch safe.
    out = jnp.where(yn > 0, yn, jnp.exp(jnp.minimum(yn, 0.0)) - 1.0)
    o_ref[...] = out.reshape(N, 1, H2, W2)


def _bilinear_matrix(in_size, out_size):
    """(out_size, in_size) matrix of F.interpolate(mode='bilinear', align_corners=True)."""
    pos = jnp.arange(out_size, dtype=jnp.float32) * (in_size - 1) / (out_size - 1)
    lo = jnp.clip(jnp.floor(pos).astype(jnp.int32), 0, in_size - 2)
    frac = pos - lo.astype(jnp.float32)
    return (jax.nn.one_hot(lo, in_size, dtype=jnp.float32) * (1.0 - frac)[:, None]
            + jax.nn.one_hot(lo + 1, in_size, dtype=jnp.float32) * frac[:, None])


def upconv(x, conv_w, conv_b, gamma, beta, *, scale=2):
    """Forward pass of UpConv.

    x      : (N, C, H, W) float32 (NCHW, unchanged — no wrapper transposes)
    conv_w : (OC, C, 3, 3) PyTorch OIHW
    conv_b : (OC,)  (mathematically cancelled by training-mode BatchNorm)
    gamma, beta : (OC,) BatchNorm2d affine parameters
    returns (N, OC, scale*H, scale*W) float32
    """
    del conv_b  # exactly cancelled by the BN mean subtraction
    N, C, H, W = x.shape
    OC = conv_w.shape[0]
    H2, W2 = scale * H, scale * W

    # Tiny host-side constants (interpolation matrices with built-in zero halo).
    mh_pad = jnp.pad(_bilinear_matrix(H, H2), ((1, 1), (0, 0)))       # (H2+2, H)
    mwT_pad = jnp.pad(_bilinear_matrix(W, W2), ((1, 1), (0, 0))).T    # (W, W2+2)
    w_flat = conv_w.astype(jnp.float32).reshape(OC * C * 9)
    gamma = gamma.astype(jnp.float32)
    beta = beta.astype(jnp.float32)

    grid_spec = pltpu.PrefetchScalarGridSpec(
        num_scalar_prefetch=0,
        grid=(OC,),
        in_specs=[
            # Full input block, constant index_map -> stays resident in VMEM.
            pl.BlockSpec((N, C, H, W), lambda oc: (0, 0, 0, 0)),
            pl.BlockSpec((H2 + 2, H), lambda oc: (0, 0)),
            pl.BlockSpec((W, W2 + 2), lambda oc: (0, 0)),
            # Tiny parameters live in SMEM (scalar reads, no vreg padding).
            pl.BlockSpec(memory_space=pltpu.MemorySpace.SMEM),
            pl.BlockSpec(memory_space=pltpu.MemorySpace.SMEM),
            pl.BlockSpec(memory_space=pltpu.MemorySpace.SMEM),
        ],
        # One output channel slab per grid step; output is already NCHW with W
        # on the lane axis (fully dense for realistic W >= 128).
        out_specs=pl.BlockSpec((N, 1, H2, W2), lambda oc: (0, oc, 0, 0)),
        scratch_shapes=[
            pltpu.VMEM((C, N, H2 + 2, W2 + 2), jnp.float32),  # padded upsample
            pltpu.VMEM((N, H2, W2), jnp.float32),             # f32 conv accumulator
        ],
    )

    return pl.pallas_call(
        _upconv_kernel,
        out_shape=jax.ShapeDtypeStruct((N, OC, H2, W2), jnp.float32),
        grid_spec=grid_spec,
        compiler_params=pltpu.CompilerParams(
            # Channels are independent -> v7x megacore splits them across cores.
            dimension_semantics=("parallel",),
            vmem_limit_bytes=32 * 1024 * 1024,
        ),
    )(x.astype(jnp.float32), mh_pad, mwT_pad, w_flat, gamma, beta)


def _reference(x, conv_w, conv_b, gamma, beta, scale=2):
    """Pure-JAX reference matching the PyTorch UpConv forward semantics."""
    N, C, H, W = x.shape
    H2, W2 = scale * H, scale * W
    mh = _bilinear_matrix(H, H2)
    mw = _bilinear_matrix(W, W2)
    x_up = jnp.einsum("ih,nchw,jw->ncij", mh, x, mw)
    xp = jnp.pad(x_up, ((0, 0), (0, 0), (1, 1), (1, 1)))
    y = jax.lax.conv_general_dilated(
        xp, conv_w, window_strides=(1, 1), padding="VALID",
        dimension_numbers=("NCHW", "OIHW", "NCHW"),
    ) + conv_b[None, :, None, None]
    mean = y.mean(axis=(0, 2, 3), keepdims=True)
    var = ((y - mean) ** 2).mean(axis=(0, 2, 3), keepdims=True)
    yn = (y - mean) * jax.lax.rsqrt(var + 1e-5)
    yn = yn * gamma[None, :, None, None] + beta[None, :, None, None]
    return jax.nn.elu(yn)


if __name__ == "__main__":
    # UpConv(in_channels=4, out_channels=4), 16x16 input -> 32x32 output.
    N, C_in, C_out, H, W = 2, 4, 4, 16, 16

    key = jax.random.PRNGKey(0)
    kx, kw, kb = jax.random.split(key, 3)
    x = jax.random.normal(kx, (N, C_in, H, W), dtype=jnp.float32)
    conv_w = 0.1 * jax.random.normal(kw, (C_out, C_in, 3, 3), dtype=jnp.float32)
    conv_b = 0.05 * jax.random.normal(kb, (C_out,), dtype=jnp.float32)
    gamma = jnp.ones((C_out,), dtype=jnp.float32)   # BatchNorm2d default init
    beta = jnp.zeros((C_out,), dtype=jnp.float32)

    out = upconv(x, conv_w, conv_b, gamma, beta)
    out = jax.block_until_ready(out)

    ref = _reference(x, conv_w, conv_b, gamma, beta)
    assert out.shape == (N, C_out, 2 * H, 2 * W)
    max_err = float(jnp.max(jnp.abs(out - ref)))
    assert jnp.allclose(out, ref, atol=1e-4, rtol=1e-4), f"mismatch vs reference: {max_err}"

    print("KERNEL_OK")
</pallas_src>

<mosaic_0001>
module attributes {stable_mosaic.version = 11 : i64} {
  func.func @_upconv_kernel(%arg0: i32, %arg1: memref<2x4x16x16xf32, #tpu.memory_space<vmem>>, %arg2: memref<34x16xf32, #tpu.memory_space<vmem>>, %arg3: memref<16x34xf32, #tpu.memory_space<vmem>>, %arg4: memref<144xf32, #tpu.memory_space<smem>>, %arg5: memref<4xf32, #tpu.memory_space<smem>>, %arg6: memref<4xf32, #tpu.memory_space<smem>>, %arg7: memref<2x1x32x32xf32, #tpu.memory_space<vmem>>, %arg8: memref<4x2x34x34xf32, #tpu.memory_space<vmem>>, %arg9: memref<2x32x32xf32, #tpu.memory_space<vmem>>) attributes {dimension_semantics = [#tpu.dimension_semantics<parallel>], iteration_bounds = array<i64: 4>, scalar_prefetch = 0 : i64, scratch_operands = 2 : i64, tpu.core_type = #tpu.core_type<tc>, window_params = [{pipeline_mode = #tpu.pipeline_mode<synchronous>, transform_indices = @transform_0, window_bounds = array<i64: 2, 4, 16, 16>}, {pipeline_mode = #tpu.pipeline_mode<synchronous>, transform_indices = @transform_1, window_bounds = array<i64: 34, 16>}, {pipeline_mode = #tpu.pipeline_mode<synchronous>, transform_indices = @transform_2, window_bounds = array<i64: 16, 34>}, {transform_indices = @transform_3, window_bounds = array<i64: 144>}, {transform_indices = @transform_4, window_bounds = array<i64: 4>}, {transform_indices = @transform_5, window_bounds = array<i64: 4>}, {transform_indices = @transform_6, window_bounds = array<i64: 2, 1, 32, 32>}]} {
    %c0 = arith.constant 0 : index
    %c0_0 = arith.constant 0 : index
    %c0_1 = arith.constant 0 : index
    %c0_2 = arith.constant 0 : index
    %0 = vector.load %arg1[%c0, %c0_0, %c0_1, %c0_2] : memref<2x4x16x16xf32, #tpu.memory_space<vmem>>, vector<2x4x16x16xf32>
    %1 = vector.shape_cast %0 : vector<2x4x16x16xf32> to vector<128x16xf32>
    %c0_3 = arith.constant 0 : index
    %c0_4 = arith.constant 0 : index
    %2 = vector.load %arg3[%c0_3, %c0_4] : memref<16x34xf32, #tpu.memory_space<vmem>>, vector<16x34xf32>
    %cst = arith.constant dense<0.000000e+00> : vector<128x34xf32>
    %3 = tpu.matmul %1, %2, %cst {dimension_numbers = #tpu.dot_dimension_numbers<[1], [0], [0], [1], [0, 0, 1, 1], [], []>} : vector<128x16xf32>, vector<16x34xf32>, vector<128x34xf32> -> vector<128x34xf32>
    %c0_5 = arith.constant 0 : index
    %c0_6 = arith.constant 0 : index
    %4 = vector.load %arg2[%c0_5, %c0_6] : memref<34x16xf32, #tpu.memory_space<vmem>>, vector<34x16xf32>
    %5 = vector.extract_strided_slice %3 {offsets = [0, 0], sizes = [16, 34], strides = [1, 1]} : vector<128x34xf32> to vector<16x34xf32>
    %cst_7 = arith.constant dense<0.000000e+00> : vector<34x34xf32>
    %6 = tpu.matmul %4, %5, %cst_7 {dimension_numbers = #tpu.dot_dimension_numbers<[1], [0], [0], [1], [0, 0, 1, 1], [], []>} : vector<34x16xf32>, vector<16x34xf32>, vector<34x34xf32> -> vector<34x34xf32>
    %c0_8 = arith.constant 0 : index
    %c0_9 = arith.constant 0 : index
    %c0_10 = arith.constant 0 : index
    %c0_11 = arith.constant 0 : index
    %7 = vector.load %arg8[%c0_8, %c0_9, %c0_10, %c0_11] : memref<4x2x34x34xf32, #tpu.memory_space<vmem>>, vector<1x1x34x34xf32>
    %8 = vector.shape_cast %7 : vector<1x1x34x34xf32> to vector<34x34xf32>
    %9 = vector.shape_cast %6 : vector<34x34xf32> to vector<1x1x34x34xf32>
    tpu.vector_store %arg8[%c0_8, %c0_9, %c0_10, %c0_11], %9 {strides = array<i32>} : memref<4x2x34x34xf32, #tpu.memory_space<vmem>>, vector<1x1x34x34xf32>,
    %10 = vector.extract_strided_slice %3 {offsets = [64, 0], sizes = [16, 34], strides = [1, 1]} : vector<128x34xf32> to vector<16x34xf32>
    %cst_12 = arith.constant dense<0.000000e+00> : vector<34x34xf32>
    %11 = tpu.matmul %4, %10, %cst_12 {dimension_numbers = #tpu.dot_dimension_numbers<[1], [0], [0], [1], [0, 0, 1, 1], [], []>} : vector<34x16xf32>, vector<16x34xf32>, vector<34x34xf32> -> vector<34x34xf32>
    %c0_13 = arith.constant 0 : index
    %c1 = arith.constant 1 : index
    %c0_14 = arith.constant 0 : index
    %c0_15 = arith.constant 0 : index
    %12 = vector.load %arg8[%c0_13, %c1, %c0_14, %c0_15] : memref<4x2x34x34xf32, #tpu.memory_space<vmem>>, vector<1x1x34x34xf32>
    %13 = vector.shape_cast %12 : vector<1x1x34x34xf32> to vector<34x34xf32>
    %14 = vector.shape_cast %11 : vector<34x34xf32> to vector<1x1x34x34xf32>
    tpu.vector_store %arg8[%c0_13, %c1, %c0_14, %c0_15], %14 {strides = array<i32>} : memref<4x2x34x34xf32, #tpu.memory_space<vmem>>, vector<1x1x34x34xf32>,
    %15 = vector.extract_strided_slice %3 {offsets = [16, 0], sizes = [16, 34], strides = [1, 1]} : vector<128x34xf32> to vector<16x34xf32>
    %cst_16 = arith.constant dense<0.000000e+00> : vector<34x34xf32>
    %16 = tpu.matmul %4, %15, %cst_16 {dimension_numbers = #tpu.dot_dimension_numbers<[1], [0], [0], [1], [0, 0, 1, 1], [], []>} : vector<34x16xf32>, vector<16x34xf32>, vector<34x34xf32> -> vector<34x34xf32>
    %c1_17 = arith.constant 1 : index
    %c0_18 = arith.constant 0 : index
    %c0_19 = arith.constant 0 : index
    %c0_20 = arith.constant 0 : index
    %17 = vector.load %arg8[%c1_17, %c0_18, %c0_19, %c0_20] : memref<4x2x34x34xf32, #tpu.memory_space<vmem>>, vector<1x1x34x34xf32>
    %18 = vector.shape_cast %17 : vector<1x1x34x34xf32> to vector<34x34xf32>
    %19 = vector.shape_cast %16 : vector<34x34xf32> to vector<1x1x34x34xf32>
    tpu.vector_store %arg8[%c1_17, %c0_18, %c0_19, %c0_20], %19 {strides = array<i32>} : memref<4x2x34x34xf32, #tpu.memory_space<vmem>>, vector<1x1x34x34xf32>,
    %20 = vector.extract_strided_slice %3 {offsets = [80, 0], sizes = [16, 34], strides = [1, 1]} : vector<128x34xf32> to vector<16x34xf32>
    %cst_21 = arith.constant dense<0.000000e+00> : vector<34x34xf32>
    %21 = tpu.matmul %4, %20, %cst_21 {dimension_numbers = #tpu.dot_dimension_numbers<[1], [0], [0], [1], [0, 0, 1, 1], [], []>} : vector<34x16xf32>, vector<16x34xf32>, vector<34x34xf32> -> vector<34x34xf32>
    %c1_22 = arith.constant 1 : index
    %c1_23 = arith.constant 1 : index
    %c0_24 = arith.constant 0 : index
    %c0_25 = arith.constant 0 : index
    %22 = vector.load %arg8[%c1_22, %c1_23, %c0_24, %c0_25] : memref<4x2x34x34xf32, #tpu.memory_space<vmem>>, vector<1x1x34x34xf32>
    %23 = vector.shape_cast %22 : vector<1x1x34x34xf32> to vector<34x34xf32>
    %24 = vector.shape_cast %21 : vector<34x34xf32> to vector<1x1x34x34xf32>
    tpu.vector_store %arg8[%c1_22, %c1_23, %c0_24, %c0_25], %24 {strides = array<i32>} : memref<4x2x34x34xf32, #tpu.memory_space<vmem>>, vector<1x1x34x34xf32>,
    %25 = vector.extract_strided_slice %3 {offsets = [32, 0], sizes = [16, 34], strides = [1, 1]} : vector<128x34xf32> to vector<16x34xf32>
    %cst_26 = arith.constant dense<0.000000e+00> : vector<34x34xf32>
    %26 = tpu.matmul %4, %25, %cst_26 {dimension_numbers = #tpu.dot_dimension_numbers<[1], [0], [0], [1], [0, 0, 1, 1], [], []>} : vector<34x16xf32>, vector<16x34xf32>, vector<34x34xf32> -> vector<34x34xf32>
    %c2 = arith.constant 2 : index
    %c0_27 = arith.constant 0 : index
    %c0_28 = arith.constant 0 : index
    %c0_29 = arith.constant 0 : index
    %27 = vector.load %arg8[%c2, %c0_27, %c0_28, %c0_29] : memref<4x2x34x34xf32, #tpu.memory_space<vmem>>, vector<1x1x34x34xf32>
    %28 = vector.shape_cast %27 : vector<1x1x34x34xf32> to vector<34x34xf32>
    %29 = vector.shape_cast %26 : vector<34x34xf32> to vector<1x1x34x34xf32>
    tpu.vector_store %arg8[%c2, %c0_27, %c0_28, %c0_29], %29 {strides = array<i32>} : memref<4x2x34x34xf32, #tpu.memory_space<vmem>>, vector<1x1x34x34xf32>,
    %30 = vector.extract_strided_slice %3 {offsets = [96, 0], sizes = [16, 34], strides = [1, 1]} : vector<128x34xf32> to vector<16x34xf32>
    %cst_30 = arith.constant dense<0.000000e+00> : vector<34x34xf32>
    %31 = tpu.matmul %4, %30, %cst_30 {dimension_numbers = #tpu.dot_dimension_numbers<[1], [0], [0], [1], [0, 0, 1, 1], [], []>} : vector<34x16xf32>, vector<16x34xf32>, vector<34x34xf32> -> vector<34x34xf32>
    %c2_31 = arith.constant 2 : index
    %c1_32 = arith.constant 1 : index
    %c0_33 = arith.constant 0 : index
    %c0_34 = arith.constant 0 : index
    %32 = vector.load %arg8[%c2_31, %c1_32, %c0_33, %c0_34] : memref<4x2x34x34xf32, #tpu.memory_space<vmem>>, vector<1x1x34x34xf32>
    %33 = vector.shape_cast %32 : vector<1x1x34x34xf32> to vector<34x34xf32>
    %34 = vector.shape_cast %31 : vector<34x34xf32> to vector<1x1x34x34xf32>
    tpu.vector_store %arg8[%c2_31, %c1_32, %c0_33, %c0_34], %34 {strides = array<i32>} : memref<4x2x34x34xf32, #tpu.memory_space<vmem>>, vector<1x1x34x34xf32>,
    %35 = vector.extract_strided_slice %3 {offsets = [48, 0], sizes = [16, 34], strides = [1, 1]} : vector<128x34xf32> to vector<16x34xf32>
    %cst_35 = arith.constant dense<0.000000e+00> : vector<34x34xf32>
    %36 = tpu.matmul %4, %35, %cst_35 {dimension_numbers = #tpu.dot_dimension_numbers<[1], [0], [0], [1], [0, 0, 1, 1], [], []>} : vector<34x16xf32>, vector<16x34xf32>, vector<34x34xf32> -> vector<34x34xf32>
    %c3 = arith.constant 3 : index
    %c0_36 = arith.constant 0 : index
    %c0_37 = arith.constant 0 : index
    %c0_38 = arith.constant 0 : index
    %37 = vector.load %arg8[%c3, %c0_36, %c0_37, %c0_38] : memref<4x2x34x34xf32, #tpu.memory_space<vmem>>, vector<1x1x34x34xf32>
    %38 = vector.shape_cast %37 : vector<1x1x34x34xf32> to vector<34x34xf32>
    %39 = vector.shape_cast %36 : vector<34x34xf32> to vector<1x1x34x34xf32>
    tpu.vector_store %arg8[%c3, %c0_36, %c0_37, %c0_38], %39 {strides = array<i32>} : memref<4x2x34x34xf32, #tpu.memory_space<vmem>>, vector<1x1x34x34xf32>,
    %40 = vector.extract_strided_slice %3 {offsets = [112, 0], sizes = [16, 34], strides = [1, 1]} : vector<128x34xf32> to vector<16x34xf32>
    %cst_39 = arith.constant dense<0.000000e+00> : vector<34x34xf32>
    %41 = tpu.matmul %4, %40, %cst_39 {dimension_numbers = #tpu.dot_dimension_numbers<[1], [0], [0], [1], [0, 0, 1, 1], [], []>} : vector<34x16xf32>, vector<16x34xf32>, vector<34x34xf32> -> vector<34x34xf32>
    %c3_40 = arith.constant 3 : index
    %c1_41 = arith.constant 1 : index
    %c0_42 = arith.constant 0 : index
    %c0_43 = arith.constant 0 : index
    %42 = vector.load %arg8[%c3_40, %c1_41, %c0_42, %c0_43] : memref<4x2x34x34xf32, #tpu.memory_space<vmem>>, vector<1x1x34x34xf32>
    %43 = vector.shape_cast %42 : vector<1x1x34x34xf32> to vector<34x34xf32>
    %44 = vector.shape_cast %41 : vector<34x34xf32> to vector<1x1x34x34xf32>
    tpu.vector_store %arg8[%c3_40, %c1_41, %c0_42, %c0_43], %44 {strides = array<i32>} : memref<4x2x34x34xf32, #tpu.memory_space<vmem>>, vector<1x1x34x34xf32>,
    %cst_44 = arith.constant 0.000000e+00 : f32
    %45 = vector.broadcast %cst_44 : f32 to vector<2x32x32xf32>
    %c0_45 = arith.constant 0 : index
    %c0_46 = arith.constant 0 : index
    %c0_47 = arith.constant 0 : index
    %46 = vector.load %arg9[%c0_45, %c0_46, %c0_47] : memref<2x32x32xf32, #tpu.memory_space<vmem>>, vector<2x32x32xf32>
    tpu.vector_store %arg9[%c0_45, %c0_46, %c0_47], %45 {strides = array<i32>} : memref<2x32x32xf32, #tpu.memory_space<vmem>>, vector<2x32x32xf32>,
    %cst_48 = arith.constant 0.000000e+00 : f32
    %47 = vector.broadcast %cst_48 : f32 to vector<2x32x32xf32>
    %c4_i32 = arith.constant 4 : i32
    %48 = arith.muli %arg0, %c4_i32 : i32
    %c0_i32 = arith.constant 0 : i32
    %49 = arith.addi %48, %c0_i32 : i32
    %c9_i32 = arith.constant 9 : i32
    %50 = arith.muli %49, %c9_i32 : i32
    %c0_i32_49 = arith.constant 0 : i32
    %51 = arith.addi %50, %c0_i32_49 : i32
    %c0_i32_50 = arith.constant 0 : i32
    %52 = arith.addi %51, %c0_i32_50 : i32
    %53 = arith.index_cast %52 : i32 to index
    %54 = memref.load %arg4[%53] : memref<144xf32, #tpu.memory_space<smem>>
    %c0_51 = arith.constant 0 : index
    %c0_52 = arith.constant 0 : index
    %c0_53 = arith.constant 0 : index
    %c0_54 = arith.constant 0 : index
    %55 = vector.load %arg8[%c0_51, %c0_52, %c0_53, %c0_54] : memref<4x2x34x34xf32, #tpu.memory_space<vmem>>, vector<1x2x32x32xf32>
    %56 = vector.shape_cast %55 : vector<1x2x32x32xf32> to vector<2x32x32xf32>
    %57 = vector.broadcast %54 : f32 to vector<2x32x32xf32>
    %58 = arith.mulf %57, %56 : vector<2x32x32xf32>
    %59 = arith.addf %47, %58 : vector<2x32x32xf32>
    %c4_i32_55 = arith.constant 4 : i32
    %60 = arith.muli %arg0, %c4_i32_55 : i32
    %c0_i32_56 = arith.constant 0 : i32
    %61 = arith.addi %60, %c0_i32_56 : i32
    %c9_i32_57 = arith.constant 9 : i32
    %62 = arith.muli %61, %c9_i32_57 : i32
    %c0_i32_58 = arith.constant 0 : i32
    %63 = arith.addi %62, %c0_i32_58 : i32
    %c1_i32 = arith.constant 1 : i32
    %64 = arith.addi %63, %c1_i32 : i32
    %65 = arith.index_cast %64 : i32 to index
    %66 = memref.load %arg4[%65] : memref<144xf32, #tpu.memory_space<smem>>
    %c0_59 = arith.constant 0 : index
    %c0_60 = arith.constant 0 : index
    %c0_61 = arith.constant 0 : index
    %c1_62 = arith.constant 1 : index
    %67 = vector.load %arg8[%c0_59, %c0_60, %c0_61, %c1_62] : memref<4x2x34x34xf32, #tpu.memory_space<vmem>>, vector<1x2x32x32xf32>
    %68 = vector.shape_cast %67 : vector<1x2x32x32xf32> to vector<2x32x32xf32>
    %69 = vector.broadcast %66 : f32 to vector<2x32x32xf32>
    %70 = arith.mulf %69, %68 : vector<2x32x32xf32>
    %71 = arith.addf %59, %70 : vector<2x32x32xf32>
    %c4_i32_63 = arith.constant 4 : i32
    %72 = arith.muli %arg0, %c4_i32_63 : i32
    %c0_i32_64 = arith.constant 0 : i32
    %73 = arith.addi %72, %c0_i32_64 : i32
    %c9_i32_65 = arith.constant 9 : i32
    %74 = arith.muli %73, %c9_i32_65 : i32
    %c0_i32_66 = arith.constant 0 : i32
    %75 = arith.addi %74, %c0_i32_66 : i32
    %c2_i32 = arith.constant 2 : i32
    %76 = arith.addi %75, %c2_i32 : i32
    %77 = arith.index_cast %76 : i32 to index
    %78 = memref.load %arg4[%77] : memref<144xf32, #tpu.memory_space<smem>>
    %c0_67 = arith.constant 0 : index
    %c0_68 = arith.constant 0 : index
    %c0_69 = arith.constant 0 : index
    %c2_70 = arith.constant 2 : index
    %79 = vector.load %arg8[%c0_67, %c0_68, %c0_69, %c2_70] : memref<4x2x34x34xf32, #tpu.memory_space<vmem>>, vector<1x2x32x32xf32>
    %80 = vector.shape_cast %79 : vector<1x2x32x32xf32> to vector<2x32x32xf32>
    %81 = vector.broadcast %78 : f32 to vector<2x32x32xf32>
    %82 = arith.mulf %81, %80 : vector<2x32x32xf32>
    %83 = arith.addf %71, %82 : vector<2x32x32xf32>
    %c4_i32_71 = arith.constant 4 : i32
    %84 = arith.muli %arg0, %c4_i32_71 : i32
    %c0_i32_72 = arith.constant 0 : i32
    %85 = arith.addi %84, %c0_i32_72 : i32
    %c9_i32_73 = arith.constant 9 : i32
    %86 = arith.muli %85, %c9_i32_73 : i32
    %c3_i32 = arith.constant 3 : i32
    %87 = arith.addi %86, %c3_i32 : i32
    %c0_i32_74 = arith.constant 0 : i32
    %88 = arith.addi %87, %c0_i32_74 : i32
    %89 = arith.index_cast %88 : i32 to index
    %90 = memref.load %arg4[%89] : memref<144xf32, #tpu.memory_space<smem>>
    %c0_75 = arith.constant 0 : index
    %c0_76 = arith.constant 0 : index
    %c1_77 = arith.constant 1 : index
    %c0_78 = arith.constant 0 : index
    %91 = vector.load %arg8[%c0_75, %c0_76, %c1_77, %c0_78] : memref<4x2x34x34xf32, #tpu.memory_space<vmem>>, vector<1x2x32x32xf32>
    %92 = vector.shape_cast %91 : vector<1x2x32x32xf32> to vector<2x32x32xf32>
    %93 = vector.broadcast %90 : f32 to vector<2x32x32xf32>
    %94 = arith.mulf %93, %92 : vector<2x32x32xf32>
    %95 = arith.addf %83, %94 : vector<2x32x32xf32>
    %c4_i32_79 = arith.constant 4 : i32
    %96 = arith.muli %arg0, %c4_i32_79 : i32
    %c0_i32_80 = arith.constant 0 : i32
    %97 = arith.addi %96, %c0_i32_80 : i32
    %c9_i32_81 = arith.constant 9 : i32
    %98 = arith.muli %97, %c9_i32_81 : i32
    %c3_i32_82 = arith.constant 3 : i32
    %99 = arith.addi %98, %c3_i32_82 : i32
    %c1_i32_83 = arith.constant 1 : i32
    %100 = arith.addi %99, %c1_i32_83 : i32
    %101 = arith.index_cast %100 : i32 to index
    %102 = memref.load %arg4[%101] : memref<144xf32, #tpu.memory_space<smem>>
    %c0_84 = arith.constant 0 : index
    %c0_85 = arith.constant 0 : index
    %c1_86 = arith.constant 1 : index
    %c1_87 = arith.constant 1 : index
    %103 = vector.load %arg8[%c0_84, %c0_85, %c1_86, %c1_87] : memref<4x2x34x34xf32, #tpu.memory_space<vmem>>, vector<1x2x32x32xf32>
    %104 = vector.shape_cast %103 : vector<1x2x32x32xf32> to vector<2x32x32xf32>
    %105 = vector.broadcast %102 : f32 to vector<2x32x32xf32>
    %106 = arith.mulf %105, %104 : vector<2x32x32xf32>
    %107 = arith.addf %95, %106 : vector<2x32x32xf32>
    %c4_i32_88 = arith.constant 4 : i32
    %108 = arith.muli %arg0, %c4_i32_88 : i32
    %c0_i32_89 = arith.constant 0 : i32
    %109 = arith.addi %108, %c0_i32_89 : i32
    %c9_i32_90 = arith.constant 9 : i32
    %110 = arith.muli %109, %c9_i32_90 : i32
    %c3_i32_91 = arith.constant 3 : i32
    %111 = arith.addi %110, %c3_i32_91 : i32
    %c2_i32_92 = arith.constant 2 : i32
    %112 = arith.addi %111, %c2_i32_92 : i32
    %113 = arith.index_cast %112 : i32 to index
    %114 = memref.load %arg4[%113] : memref<144xf32, #tpu.memory_space<smem>>
    %c0_93 = arith.constant 0 : index
    %c0_94 = arith.constant 0 : index
    %c1_95 = arith.constant 1 : index
    %c2_96 = arith.constant 2 : index
    %115 = vector.load %arg8[%c0_93, %c0_94, %c1_95, %c2_96] : memref<4x2x34x34xf32, #tpu.memory_space<vmem>>, vector<1x2x32x32xf32>
    %116 = vector.shape_cast %115 : vector<1x2x32x32xf32> to vector<2x32x32xf32>
    %117 = vector.broadcast %114 : f32 to vector<2x32x32xf32>
    %118 = arith.mulf %117, %116 : vector<2x32x32xf32>
    %119 = arith.addf %107, %118 : vector<2x32x32xf32>
    %c4_i32_97 = arith.constant 4 : i32
    %120 = arith.muli %arg0, %c4_i32_97 : i32
    %c0_i32_98 = arith.constant 0 : i32
    %121 = arith.addi %120, %c0_i32_98 : i32
    %c9_i32_99 = arith.constant 9 : i32
    %122 = arith.muli %121, %c9_i32_99 : i32
    %c6_i32 = arith.constant 6 : i32
    %123 = arith.addi %122, %c6_i32 : i32
    %c0_i32_100 = arith.constant 0 : i32
    %124 = arith.addi %123, %c0_i32_100 : i32
    %125 = arith.index_cast %124 : i32 to index
    %126 = memref.load %arg4[%125] : memref<144xf32, #tpu.memory_space<smem>>
    %c0_101 = arith.constant 0 : index
    %c0_102 = arith.constant 0 : index
    %c2_103 = arith.constant 2 : index
    %c0_104 = arith.constant 0 : index
    %127 = vector.load %arg8[%c0_101, %c0_102, %c2_103, %c0_104] : memref<4x2x34x34xf32, #tpu.memory_space<vmem>>, vector<1x2x32x32xf32>
    %128 = vector.shape_cast %127 : vector<1x2x32x32xf32> to vector<2x32x32xf32>
    %129 = vector.broadcast %126 : f32 to vector<2x32x32xf32>
    %130 = arith.mulf %129, %128 : vector<2x32x32xf32>
    %131 = arith.addf %119, %130 : vector<2x32x32xf32>
    %c4_i32_105 = arith.constant 4 : i32
    %132 = arith.muli %arg0, %c4_i32_105 : i32
    %c0_i32_106 = arith.constant 0 : i32
    %133 = arith.addi %132, %c0_i32_106 : i32
    %c9_i32_107 = arith.constant 9 : i32
    %134 = arith.muli %133, %c9_i32_107 : i32
    %c6_i32_108 = arith.constant 6 : i32
    %135 = arith.addi %134, %c6_i32_108 : i32
    %c1_i32_109 = arith.constant 1 : i32
    %136 = arith.addi %135, %c1_i32_109 : i32
    %137 = arith.index_cast %136 : i32 to index
    %138 = memref.load %arg4[%137] : memref<144xf32, #tpu.memory_space<smem>>
    %c0_110 = arith.constant 0 : index
    %c0_111 = arith.constant 0 : index
    %c2_112 = arith.constant 2 : index
    %c1_113 = arith.constant 1 : index
    %139 = vector.load %arg8[%c0_110, %c0_111, %c2_112, %c1_113] : memref<4x2x34x34xf32, #tpu.memory_space<vmem>>, vector<1x2x32x32xf32>
    %140 = vector.shape_cast %139 : vector<1x2x32x32xf32> to vector<2x32x32xf32>
    %141 = vector.broadcast %138 : f32 to vector<2x32x32xf32>
    %142 = arith.mulf %141, %140 : vector<2x32x32xf32>
    %143 = arith.addf %131, %142 : vector<2x32x32xf32>
    %c4_i32_114 = arith.constant 4 : i32
    %144 = arith.muli %arg0, %c4_i32_114 : i32
    %c0_i32_115 = arith.constant 0 : i32
    %145 = arith.addi %144, %c0_i32_115 : i32
    %c9_i32_116 = arith.constant 9 : i32
    %146 = arith.muli %145, %c9_i32_116 : i32
    %c6_i32_117 = arith.constant 6 : i32
    %147 = arith.addi %146, %c6_i32_117 : i32
    %c2_i32_118 = arith.constant 2 : i32
    %148 = arith.addi %147, %c2_i32_118 : i32
    %149 = arith.index_cast %148 : i32 to index
    %150 = memref.load %arg4[%149] : memref<144xf32, #tpu.memory_space<smem>>
    %c0_119 = arith.constant 0 : index
    %c0_120 = arith.constant 0 : index
    %c2_121 = arith.constant 2 : index
    %c2_122 = arith.constant 2 : index
    %151 = vector.load %arg8[%c0_119, %c0_120, %c2_121, %c2_122] : memref<4x2x34x34xf32, #tpu.memory_space<vmem>>, vector<1x2x32x32xf32>
    %152 = vector.shape_cast %151 : vector<1x2x32x32xf32> to vector<2x32x32xf32>
    %153 = vector.broadcast %150 : f32 to vector<2x32x32xf32>
    %154 = arith.mulf %153, %152 : vector<2x32x32xf32>
    %155 = arith.addf %143, %154 : vector<2x32x32xf32>
    %c0_123 = arith.constant 0 : index
    %c0_124 = arith.constant 0 : index
    %c0_125 = arith.constant 0 : index
    %156 = vector.load %arg9[%c0_123, %c0_124, %c0_125] : memref<2x32x32xf32, #tpu.memory_space<vmem>>, vector<2x32x32xf32>
    %157 = arith.addf %156, %155 : vector<2x32x32xf32>
    %c0_126 = arith.constant 0 : index
    %c0_127 = arith.constant 0 : index
    %c0_128 = arith.constant 0 : index
    %158 = vector.load %arg9[%c0_126, %c0_127, %c0_128] : memref<2x32x32xf32, #tpu.memory_space<vmem>>, vector<2x32x32xf32>
    tpu.vector_store %arg9[%c0_126, %c0_127, %c0_128], %157 {strides = array<i32>} : memref<2x32x32xf32, #tpu.memory_space<vmem>>, vector<2x32x32xf32>,
    %cst_129 = arith.constant 0.000000e+00 : f32
    %159 = vector.broadcast %cst_129 : f32 to vector<2x32x32xf32>
    %c4_i32_130 = arith.constant 4 : i32
    %160 = arith.muli %arg0, %c4_i32_130 : i32
    %c1_i32_131 = arith.constant 1 : i32
    %161 = arith.addi %160, %c1_i32_131 : i32
    %c9_i32_132 = arith.constant 9 : i32
    %162 = arith.muli %161, %c9_i32_132 : i32
    %c0_i32_133 = arith.constant 0 : i32
    %163 = arith.addi %162, %c0_i32_133 : i32
    %c0_i32_134 = arith.constant 0 : i32
    %164 = arith.addi %163, %c0_i32_134 : i32
    %165 = arith.index_cast %164 : i32 to index
    %166 = memref.load %arg4[%165] : memref<144xf32, #tpu.memory_space<smem>>
    %c1_135 = arith.constant 1 : index
    %c0_136 = arith.constant 0 : index
    %c0_137 = arith.constant 0 : index
    %c0_138 = arith.constant 0 : index
    %167 = vector.load %arg8[%c1_135, %c0_136, %c0_137, %c0_138] : memref<4x2x34x34xf32, #tpu.memory_space<vmem>>, vector<1x2x32x32xf32>
    %168 = vector.shape_cast %167 : vector<1x2x32x32xf32> to vector<2x32x32xf32>
    %169 = vector.broadcast %166 : f32 to vector<2x32x32xf32>
    %170 = arith.mulf %169, %168 : vector<2x32x32xf32>
    %171 = arith.addf %159, %170 : vector<2x32x32xf32>
    %c4_i32_139 = arith.constant 4 : i32
    %172 = arith.muli %arg0, %c4_i32_139 : i32
    %c1_i32_140 = arith.constant 1 : i32
    %173 = arith.addi %172, %c1_i32_140 : i32
    %c9_i32_141 = arith.constant 9 : i32
    %174 = arith.muli %173, %c9_i32_141 : i32
    %c0_i32_142 = arith.constant 0 : i32
    %175 = arith.addi %174, %c0_i32_142 : i32
    %c1_i32_143 = arith.constant 1 : i32
    %176 = arith.addi %175, %c1_i32_143 : i32
    %177 = arith.index_cast %176 : i32 to index
    %178 = memref.load %arg4[%177] : memref<144xf32, #tpu.memory_space<smem>>
    %c1_144 = arith.constant 1 : index
    %c0_145 = arith.constant 0 : index
    %c0_146 = arith.constant 0 : index
    %c1_147 = arith.constant 1 : index
    %179 = vector.load %arg8[%c1_144, %c0_145, %c0_146, %c1_147] : memref<4x2x34x34xf32, #tpu.memory_space<vmem>>, vector<1x2x32x32xf32>
    %180 = vector.shape_cast %179 : vector<1x2x32x32xf32> to vector<2x32x32xf32>
    %181 = vector.broadcast %178 : f32 to vector<2x32x32xf32>
    %182 = arith.mulf %181, %180 : vector<2x32x32xf32>
    %183 = arith.addf %171, %182 : vector<2x32x32xf32>
    %c4_i32_148 = arith.constant 4 : i32
    %184 = arith.muli %arg0, %c4_i32_148 : i32
    %c1_i32_149 = arith.constant 1 : i32
    %185 = arith.addi %184, %c1_i32_149 : i32
    %c9_i32_150 = arith.constant 9 : i32
    %186 = arith.muli %185, %c9_i32_150 : i32
    %c0_i32_151 = arith.constant 0 : i32
    %187 = arith.addi %186, %c0_i32_151 : i32
    %c2_i32_152 = arith.constant 2 : i32
    %188 = arith.addi %187, %c2_i32_152 : i32
    %189 = arith.index_cast %188 : i32 to index
    %190 = memref.load %arg4[%189] : memref<144xf32, #tpu.memory_space<smem>>
    %c1_153 = arith.constant 1 : index
    %c0_154 = arith.constant 0 : index
    %c0_155 = arith.constant 0 : index
    %c2_156 = arith.constant 2 : index
    %191 = vector.load %arg8[%c1_153, %c0_154, %c0_155, %c2_156] : memref<4x2x34x34xf32, #tpu.memory_space<vmem>>, vector<1x2x32x32xf32>
    %192 = vector.shape_cast %191 : vector<1x2x32x32xf32> to vector<2x32x32xf32>
    %193 = vector.broadcast %190 : f32 to vector<2x32x32xf32>
    %194 = arith.mulf %193, %192 : vector<2x32x32xf32>
    %195 = arith.addf %183, %194 : vector<2x32x32xf32>
    %c4_i32_157 = arith.constant 4 : i32
    %196 = arith.muli %arg0, %c4_i32_157 : i32
    %c1_i32_158 = arith.constant 1 : i32
    %197 = arith.addi %196, %c1_i32_158 : i32
    %c9_i32_159 = arith.constant 9 : i32
    %198 = arith.muli %197, %c9_i32_159 : i32
    %c3_i32_160 = arith.constant 3 : i32
    %199 = arith.addi %198, %c3_i32_160 : i32
    %c0_i32_161 = arith.constant 0 : i32
    %200 = arith.addi %199, %c0_i32_161 : i32
    %201 = arith.index_cast %200 : i32 to index
    %202 = memref.load %arg4[%201] : memref<144xf32, #tpu.memory_space<smem>>
    %c1_162 = arith.constant 1 : index
    %c0_163 = arith.constant 0 : index
    %c1_164 = arith.constant 1 : index
    %c0_165 = arith.constant 0 : index
    %203 = vector.load %arg8[%c1_162, %c0_163, %c1_164, %c0_165] : memref<4x2x34x34xf32, #tpu.memory_space<vmem>>, vector<1x2x32x32xf32>
    %204 = vector.shape_cast %203 : vector<1x2x32x32xf32> to vector<2x32x32xf32>
    %205 = vector.broadcast %202 : f32 to vector<2x32x32xf32>
    %206 = arith.mulf %205, %204 : vector<2x32x32xf32>
    %207 = arith.addf %195, %206 : vector<2x32x32xf32>
    %c4_i32_166 = arith.constant 4 : i32
    %208 = arith.muli %arg0, %c4_i32_166 : i32
    %c1_i32_167 = arith.constant 1 : i32
    %209 = arith.addi %208, %c1_i32_167 : i32
    %c9_i32_168 = arith.constant 9 : i32
    %210 = arith.muli %209, %c9_i32_168 : i32
    %c3_i32_169 = arith.constant 3 : i32
    %211 = arith.addi %210, %c3_i32_169 : i32
    %c1_i32_170 = arith.constant 1 : i32
    %212 = arith.addi %211, %c1_i32_170 : i32
    %213 = arith.index_cast %212 : i32 to index
    %214 = memref.load %arg4[%213] : memref<144xf32, #tpu.memory_space<smem>>
    %c1_171 = arith.constant 1 : index
    %c0_172 = arith.constant 0 : index
    %c1_173 = arith.constant 1 : index
    %c1_174 = arith.constant 1 : index
    %215 = vector.load %arg8[%c1_171, %c0_172, %c1_173, %c1_174] : memref<4x2x34x34xf32, #tpu.memory_space<vmem>>, vector<1x2x32x32xf32>
    %216 = vector.shape_cast %215 : vector<1x2x32x32xf32> to vector<2x32x32xf32>
    %217 = vector.broadcast %214 : f32 to vector<2x32x32xf32>
    %218 = arith.mulf %217, %216 : vector<2x32x32xf32>
    %219 = arith.addf %207, %218 : vector<2x32x32xf32>
    %c4_i32_175 = arith.constant 4 : i32
    %220 = arith.muli %arg0, %c4_i32_175 : i32
    %c1_i32_176 = arith.constant 1 : i32
    %221 = arith.addi %220, %c1_i32_176 : i32
    %c9_i32_177 = arith.constant 9 : i32
    %222 = arith.muli %221, %c9_i32_177 : i32
    %c3_i32_178 = arith.constant 3 : i32
    %223 = arith.addi %222, %c3_i32_178 : i32
    %c2_i32_179 = arith.constant 2 : i32
    %224 = arith.addi %223, %c2_i32_179 : i32
    %225 = arith.index_cast %224 : i32 to index
    %226 = memref.load %arg4[%225] : memref<144xf32, #tpu.memory_space<smem>>
    %c1_180 = arith.constant 1 : index
    %c0_181 = arith.constant 0 : index
    %c1_182 = arith.constant 1 : index
    %c2_183 = arith.constant 2 : index
    %227 = vector.load %arg8[%c1_180, %c0_181, %c1_182, %c2_183] : memref<4x2x34x34xf32, #tpu.memory_space<vmem>>, vector<1x2x32x32xf32>
    %228 = vector.shape_cast %227 : vector<1x2x32x32xf32> to vector<2x32x32xf32>
    %229 = vector.broadcast %226 : f32 to vector<2x32x32xf32>
    %230 = arith.mulf %229, %228 : vector<2x32x32xf32>
    %231 = arith.addf %219, %230 : vector<2x32x32xf32>
    %c4_i32_184 = arith.constant 4 : i32
    %232 = arith.muli %arg0, %c4_i32_184 : i32
    %c1_i32_185 = arith.constant 1 : i32
    %233 = arith.addi %232, %c1_i32_185 : i32
    %c9_i32_186 = arith.constant 9 : i32
    %234 = arith.muli %233, %c9_i32_186 : i32
    %c6_i32_187 = arith.constant 6 : i32
    %235 = arith.addi %234, %c6_i32_187 : i32
    %c0_i32_188 = arith.constant 0 : i32
    %236 = arith.addi %235, %c0_i32_188 : i32
    %237 = arith.index_cast %236 : i32 to index
    %238 = memref.load %arg4[%237] : memref<144xf32, #tpu.memory_space<smem>>
    %c1_189 = arith.constant 1 : index
    %c0_190 = arith.constant 0 : index
    %c2_191 = arith.constant 2 : index
    %c0_192 = arith.constant 0 : index
    %239 = vector.load %arg8[%c1_189, %c0_190, %c2_191, %c0_192] : memref<4x2x34x34xf32, #tpu.memory_space<vmem>>, vector<1x2x32x32xf32>
    %240 = vector.shape_cast %239 : vector<1x2x32x32xf32> to vector<2x32x32xf32>
    %241 = vector.broadcast %238 : f32 to vector<2x32x32xf32>
    %242 = arith.mulf %241, %240 : vector<2x32x32xf32>
    %243 = arith.addf %231, %242 : vector<2x32x32xf32>
    %c4_i32_193 = arith.constant 4 : i32
    %244 = arith.muli %arg0, %c4_i32_193 : i32
    %c1_i32_194 = arith.constant 1 : i32
    %245 = arith.addi %244, %c1_i32_194 : i32
    %c9_i32_195 = arith.constant 9 : i32
    %246 = arith.muli %245, %c9_i32_195 : i32
    %c6_i32_196 = arith.constant 6 : i32
    %247 = arith.addi %246, %c6_i32_196 : i32
    %c1_i32_197 = arith.constant 1 : i32
    %248 = arith.addi %247, %c1_i32_197 : i32
    %249 = arith.index_cast %248 : i32 to index
    %250 = memref.load %arg4[%249] : memref<144xf32, #tpu.memory_space<smem>>
    %c1_198 = arith.constant 1 : index
    %c0_199 = arith.constant 0 : index
    %c2_200 = arith.constant 2 : index
    %c1_201 = arith.constant 1 : index
    %251 = vector.load %arg8[%c1_198, %c0_199, %c2_200, %c1_201] : memref<4x2x34x34xf32, #tpu.memory_space<vmem>>, vector<1x2x32x32xf32>
    %252 = vector.shape_cast %251 : vector<1x2x32x32xf32> to vector<2x32x32xf32>
    %253 = vector.broadcast %250 : f32 to vector<2x32x32xf32>
    %254 = arith.mulf %253, %252 : vector<2x32x32xf32>
    %255 = arith.addf %243, %254 : vector<2x32x32xf32>
    %c4_i32_202 = arith.constant 4 : i32
    %256 = arith.muli %arg0, %c4_i32_202 : i32
    %c1_i32_203 = arith.constant 1 : i32
    %257 = arith.addi %256, %c1_i32_203 : i32
    %c9_i32_204 = arith.constant 9 : i32
    %258 = arith.muli %257, %c9_i32_204 : i32
    %c6_i32_205 = arith.constant 6 : i32
    %259 = arith.addi %258, %c6_i32_205 : i32
    %c2_i32_206 = arith.constant 2 : i32
    %260 = arith.addi %259, %c2_i32_206 : i32
    %261 = arith.index_cast %260 : i32 to index
    %262 = memref.load %arg4[%261] : memref<144xf32, #tpu.memory_space<smem>>
    %c1_207 = arith.constant 1 : index
    %c0_208 = arith.constant 0 : index
    %c2_209 = arith.constant 2 : index
    %c2_210 = arith.constant 2 : index
    %263 = vector.load %arg8[%c1_207, %c0_208, %c2_209, %c2_210] : memref<4x2x34x34xf32, #tpu.memory_space<vmem>>, vector<1x2x32x32xf32>
    %264 = vector.shape_cast %263 : vector<1x2x32x32xf32> to vector<2x32x32xf32>
    %265 = vector.broadcast %262 : f32 to vector<2x32x32xf32>
    %266 = arith.mulf %265, %264 : vector<2x32x32xf32>
    %267 = arith.addf %255, %266 : vector<2x32x32xf32>
    %c0_211 = arith.constant 0 : index
    %c0_212 = arith.constant 0 : index
    %c0_213 = arith.constant 0 : index
    %268 = vector.load %arg9[%c0_211, %c0_212, %c0_213] : memref<2x32x32xf32, #tpu.memory_space<vmem>>, vector<2x32x32xf32>
    %269 = arith.addf %268, %267 : vector<2x32x32xf32>
    %c0_214 = arith.constant 0 : index
    %c0_215 = arith.constant 0 : index
    %c0_216 = arith.constant 0 : index
    %270 = vector.load %arg9[%c0_214, %c0_215, %c0_216] : memref<2x32x32xf32, #tpu.memory_space<vmem>>, vector<2x32x32xf32>
    tpu.vector_store %arg9[%c0_214, %c0_215, %c0_216], %269 {strides = array<i32>} : memref<2x32x32xf32, #tpu.memory_space<vmem>>, vector<2x32x32xf32>,
    %cst_217 = arith.constant 0.000000e+00 : f32
    %271 = vector.broadcast %cst_217 : f32 to vector<2x32x32xf32>
    %c4_i32_218 = arith.constant 4 : i32
    %272 = arith.muli %arg0, %c4_i32_218 : i32
    %c2_i32_219 = arith.constant 2 : i32
    %273 = arith.addi %272, %c2_i32_219 : i32
    %c9_i32_220 = arith.constant 9 : i32
    %274 = arith.muli %273, %c9_i32_220 : i32
    %c0_i32_221 = arith.constant 0 : i32
    %275 = arith.addi %274, %c0_i32_221 : i32
    %c0_i32_222 = arith.constant 0 : i32
    %276 = arith.addi %275, %c0_i32_222 : i32
    %277 = arith.index_cast %276 : i32 to index
    %278 = memref.load %arg4[%277] : memref<144xf32, #tpu.memory_space<smem>>
    %c2_223 = arith.constant 2 : index
    %c0_224 = arith.constant 0 : index
    %c0_225 = arith.constant 0 : index
    %c0_226 = arith.constant 0 : index
    %279 = vector.load %arg8[%c2_223, %c0_224, %c0_225, %c0_226] : memref<4x2x34x34xf32, #tpu.memory_space<vmem>>, vector<1x2x32x32xf32>
    %280 = vector.shape_cast %279 : vector<1x2x32x32xf32> to vector<2x32x32xf32>
    %281 = vector.broadcast %278 : f32 to vector<2x32x32xf32>
    %282 = arith.mulf %281, %280 : vector<2x32x32xf32>
    %283 = arith.addf %271, %282 : vector<2x32x32xf32>
    %c4_i32_227 = arith.constant 4 : i32
    %284 = arith.muli %arg0, %c4_i32_227 : i32
    %c2_i32_228 = arith.constant 2 : i32
    %285 = arith.addi %284, %c2_i32_228 : i32
    %c9_i32_229 = arith.constant 9 : i32
    %286 = arith.muli %285, %c9_i32_229 : i32
    %c0_i32_230 = arith.constant 0 : i32
    %287 = arith.addi %286, %c0_i32_230 : i32
    %c1_i32_231 = arith.constant 1 : i32
    %288 = arith.addi %287, %c1_i32_231 : i32
    %289 = arith.index_cast %288 : i32 to index
    %290 = memref.load %arg4[%289] : memref<144xf32, #tpu.memory_space<smem>>
    %c2_232 = arith.constant 2 : index
    %c0_233 = arith.constant 0 : index
    %c0_234 = arith.constant 0 : index
    %c1_235 = arith.constant 1 : index
    %291 = vector.load %arg8[%c2_232, %c0_233, %c0_234, %c1_235] : memref<4x2x34x34xf32, #tpu.memory_space<vmem>>, vector<1x2x32x32xf32>
    %292 = vector.shape_cast %291 : vector<1x2x32x32xf32> to vector<2x32x32xf32>
    %293 = vector.broadcast %290 : f32 to vector<2x32x32xf32>
    %294 = arith.mulf %293, %292 : vector<2x32x32xf32>
    %295 = arith.addf %283, %294 : vector<2x32x32xf32>
    %c4_i32_236 = arith.constant 4 : i32
    %296 = arith.muli %arg0, %c4_i32_236 : i32
    %c2_i32_237 = arith.constant 2 : i32
    %297 = arith.addi %296, %c2_i32_237 : i32
    %c9_i32_238 = arith.constant 9 : i32
    %298 = arith.muli %297, %c9_i32_238 : i32
    %c0_i32_239 = arith.constant 0 : i32
    %299 = arith.addi %298, %c0_i32_239 : i32
    %c2_i32_240 = arith.constant 2 : i32
    %300 = arith.addi %299, %c2_i32_240 : i32
    %301 = arith.index_cast %300 : i32 to index
    %302 = memref.load %arg4[%301] : memref<144xf32, #tpu.memory_space<smem>>
    %c2_241 = arith.constant 2 : index
    %c0_242 = arith.constant 0 : index
    %c0_243 = arith.constant 0 : index
    %c2_244 = arith.constant 2 : index
    %303 = vector.load %arg8[%c2_241, %c0_242, %c0_243, %c2_244] : memref<4x2x34x34xf32, #tpu.memory_space<vmem>>, vector<1x2x32x32xf32>
    %304 = vector.shape_cast %303 : vector<1x2x32x32xf32> to vector<2x32x32xf32>
    %305 = vector.broadcast %302 : f32 to vector<2x32x32xf32>
    %306 = arith.mulf %305, %304 : vector<2x32x32xf32>
    %307 = arith.addf %295, %306 : vector<2x32x32xf32>
    %c4_i32_245 = arith.constant 4 : i32
    %308 = arith.muli %arg0, %c4_i32_245 : i32
    %c2_i32_246 = arith.constant 2 : i32
    %309 = arith.addi %308, %c2_i32_246 : i32
    %c9_i32_247 = arith.constant 9 : i32
    %310 = arith.muli %309, %c9_i32_247 : i32
    %c3_i32_248 = arith.constant 3 : i32
    %311 = arith.addi %310, %c3_i32_248 : i32
    %c0_i32_249 = arith.constant 0 : i32
    %312 = arith.addi %311, %c0_i32_249 : i32
    %313 = arith.index_cast %312 : i32 to index
    %314 = memref.load %arg4[%313] : memref<144xf32, #tpu.memory_space<smem>>
    %c2_250 = arith.constant 2 : index
    %c0_251 = arith.constant 0 : index
    %c1_252 = arith.constant 1 : index
    %c0_253 = arith.constant 0 : index
    %315 = vector.load %arg8[%c2_250, %c0_251, %c1_252, %c0_253] : memref<4x2x34x34xf32, #tpu.memory_space<vmem>>, vector<1x2x32x32xf32>
    %316 = vector.shape_cast %315 : vector<1x2x32x32xf32> to vector<2x32x32xf32>
    %317 = vector.broadcast %314 : f32 to vector<2x32x32xf32>
    %318 = arith.mulf %317, %316 : vector<2x32x32xf32>
    %319 = arith.addf %307, %318 : vector<2x32x32xf32>
    %c4_i32_254 = arith.constant 4 : i32
    %320 = arith.muli %arg0, %c4_i32_254 : i32
    %c2_i32_255 = arith.constant 2 : i32
    %321 = arith.addi %320, %c2_i32_255 : i32
    %c9_i32_256 = arith.constant 9 : i32
    %322 = arith.muli %321, %c9_i32_256 : i32
    %c3_i32_257 = arith.constant 3 : i32
    %323 = arith.addi %322, %c3_i32_257 : i32
    %c1_i32_258 = arith.constant 1 : i32
    %324 = arith.addi %323, %c1_i32_258 : i32
    %325 = arith.index_cast %324 : i32 to index
    %326 = memref.load %arg4[%325] : memref<144xf32, #tpu.memory_space<smem>>
    %c2_259 = arith.constant 2 : index
    %c0_260 = arith.constant 0 : index
    %c1_261 = arith.constant 1 : index
    %c1_262 = arith.constant 1 : index
    %327 = vector.load %arg8[%c2_259, %c0_260, %c1_261, %c1_262] : memref<4x2x34x34xf32, #tpu.memory_space<vmem>>, vector<1x2x32x32xf32>
    %328 = vector.shape_cast %327 : vector<1x2x32x32xf32> to vector<2x32x32xf32>
    %329 = vector.broadcast %326 : f32 to vector<2x32x32xf32>
    %330 = arith.mulf %329, %328 : vector<2x32x32xf32>
    %331 = arith.addf %319, %330 : vector<2x32x32xf32>
    %c4_i32_263 = arith.constant 4 : i32
    %332 = arith.muli %arg0, %c4_i32_263 : i32
    %c2_i32_264 = arith.constant 2 : i32
    %333 = arith.addi %332, %c2_i32_264 : i32
    %c9_i32_265 = arith.constant 9 : i32
    %334 = arith.muli %333, %c9_i32_265 : i32
    %c3_i32_266 = arith.constant 3 : i32
    %335 = arith.addi %334, %c3_i32_266 : i32
    %c2_i32_267 = arith.constant 2 : i32
    %336 = arith.addi %335, %c2_i32_267 : i32
    %337 = arith.index_cast %336 : i32 to index
    %338 = memref.load %arg4[%337] : memref<144xf32, #tpu.memory_space<smem>>
    %c2_268 = arith.constant 2 : index
    %c0_269 = arith.constant 0 : index
    %c1_270 = arith.constant 1 : index
    %c2_271 = arith.constant 2 : index
    %339 = vector.load %arg8[%c2_268, %c0_269, %c1_270, %c2_271] : memref<4x2x34x34xf32, #tpu.memory_space<vmem>>, vector<1x2x32x32xf32>
    %340 = vector.shape_cast %339 : vector<1x2x32x32xf32> to vector<2x32x32xf32>
    %341 = vector.broadcast %338 : f32 to vector<2x32x32xf32>
    %342 = arith.mulf %341, %340 : vector<2x32x32xf32>
    %343 = arith.addf %331, %342 : vector<2x32x32xf32>
    %c4_i32_272 = arith.constant 4 : i32
    %344 = arith.muli %arg0, %c4_i32_272 : i32
    %c2_i32_273 = arith.constant 2 : i32
    %345 = arith.addi %344, %c2_i32_273 : i32
    %c9_i32_274 = arith.constant 9 : i32
    %346 = arith.muli %345, %c9_i32_274 : i32
    %c6_i32_275 = arith.constant 6 : i32
    %347 = arith.addi %346, %c6_i32_275 : i32
    %c0_i32_276 = arith.constant 0 : i32
    %348 = arith.addi %347, %c0_i32_276 : i32
    %349 = arith.index_cast %348 : i32 to index
    %350 = memref.load %arg4[%349] : memref<144xf32, #tpu.memory_space<smem>>
    %c2_277 = arith.constant 2 : index
    %c0_278 = arith.constant 0 : index
    %c2_279 = arith.constant 2 : index
    %c0_280 = arith.constant 0 : index
    %351 = vector.load %arg8[%c2_277, %c0_278, %c2_279, %c0_280] : memref<4x2x34x34xf32, #tpu.memory_space<vmem>>, vector<1x2x32x32xf32>
    %352 = vector.shape_cast %351 : vector<1x2x32x32xf32> to vector<2x32x32xf32>
    %353 = vector.broadcast %350 : f32 to vector<2x32x32xf32>
    %354 = arith.mulf %353, %352 : vector<2x32x32xf32>
    %355 = arith.addf %343, %354 : vector<2x32x32xf32>
    %c4_i32_281 = arith.constant 4 : i32
    %356 = arith.muli %arg0, %c4_i32_281 : i32
    %c2_i32_282 = arith.constant 2 : i32
    %357 = arith.addi %356, %c2_i32_282 : i32
    %c9_i32_283 = arith.constant 9 : i32
    %358 = arith.muli %357, %c9_i32_283 : i32
    %c6_i32_284 = arith.constant 6 : i32
    %359 = arith.addi %358, %c6_i32_284 : i32
    %c1_i32_285 = arith.constant 1 : i32
    %360 = arith.addi %359, %c1_i32_285 : i32
    %361 = arith.index_cast %360 : i32 to index
    %362 = memref.load %arg4[%361] : memref<144xf32, #tpu.memory_space<smem>>
    %c2_286 = arith.constant 2 : index
    %c0_287 = arith.constant 0 : index
    %c2_288 = arith.constant 2 : index
    %c1_289 = arith.constant 1 : index
    %363 = vector.load %arg8[%c2_286, %c0_287, %c2_288, %c1_289] : memref<4x2x34x34xf32, #tpu.memory_space<vmem>>, vector<1x2x32x32xf32>
    %364 = vector.shape_cast %363 : vector<1x2x32x32xf32> to vector<2x32x32xf32>
    %365 = vector.broadcast %362 : f32 to vector<2x32x32xf32>
    %366 = arith.mulf %365, %364 : vector<2x32x32xf32>
    %367 = arith.addf %355, %366 : vector<2x32x32xf32>
    %c4_i32_290 = arith.constant 4 : i32
    %368 = arith.muli %arg0, %c4_i32_290 : i32
    %c2_i32_291 = arith.constant 2 : i32
    %369 = arith.addi %368, %c2_i32_291 : i32
    %c9_i32_292 = arith.constant 9 : i32
    %370 = arith.muli %369, %c9_i32_292 : i32
    %c6_i32_293 = arith.constant 6 : i32
    %371 = arith.addi %370, %c6_i32_293 : i32
    %c2_i32_294 = arith.constant 2 : i32
    %372 = arith.addi %371, %c2_i32_294 : i32
    %373 = arith.index_cast %372 : i32 to index
    %374 = memref.load %arg4[%373] : memref<144xf32, #tpu.memory_space<smem>>
    %c2_295 = arith.constant 2 : index
    %c0_296 = arith.constant 0 : index
    %c2_297 = arith.constant 2 : index
    %c2_298 = arith.constant 2 : index
    %375 = vector.load %arg8[%c2_295, %c0_296, %c2_297, %c2_298] : memref<4x2x34x34xf32, #tpu.memory_space<vmem>>, vector<1x2x32x32xf32>
    %376 = vector.shape_cast %375 : vector<1x2x32x32xf32> to vector<2x32x32xf32>
    %377 = vector.broadcast %374 : f32 to vector<2x32x32xf32>
    %378 = arith.mulf %377, %376 : vector<2x32x32xf32>
    %379 = arith.addf %367, %378 : vector<2x32x32xf32>
    %c0_299 = arith.constant 0 : index
    %c0_300 = arith.constant 0 : index
    %c0_301 = arith.constant 0 : index
    %380 = vector.load %arg9[%c0_299, %c0_300, %c0_301] : memref<2x32x32xf32, #tpu.memory_space<vmem>>, vector<2x32x32xf32>
    %381 = arith.addf %380, %379 : vector<2x32x32xf32>
    %c0_302 = arith.constant 0 : index
    %c0_303 = arith.constant 0 : index
    %c0_304 = arith.constant 0 : index
    %382 = vector.load %arg9[%c0_302, %c0_303, %c0_304] : memref<2x32x32xf32, #tpu.memory_space<vmem>>, vector<2x32x32xf32>
    tpu.vector_store %arg9[%c0_302, %c0_303, %c0_304], %381 {strides = array<i32>} : memref<2x32x32xf32, #tpu.memory_space<vmem>>, vector<2x32x32xf32>,
    %cst_305 = arith.constant 0.000000e+00 : f32
    %383 = vector.broadcast %cst_305 : f32 to vector<2x32x32xf32>
    %c4_i32_306 = arith.constant 4 : i32
    %384 = arith.muli %arg0, %c4_i32_306 : i32
    %c3_i32_307 = arith.constant 3 : i32
    %385 = arith.addi %384, %c3_i32_307 : i32
    %c9_i32_308 = arith.constant 9 : i32
    %386 = arith.muli %385, %c9_i32_308 : i32
    %c0_i32_309 = arith.constant 0 : i32
    %387 = arith.addi %386, %c0_i32_309 : i32
    %c0_i32_310 = arith.constant 0 : i32
    %388 = arith.addi %387, %c0_i32_310 : i32
    %389 = arith.index_cast %388 : i32 to index
    %390 = memref.load %arg4[%389] : memref<144xf32, #tpu.memory_space<smem>>
    %c3_311 = arith.constant 3 : index
    %c0_312 = arith.constant 0 : index
    %c0_313 = arith.constant 0 : index
    %c0_314 = arith.constant 0 : index
    %391 = vector.load %arg8[%c3_311, %c0_312, %c0_313, %c0_314] : memref<4x2x34x34xf32, #tpu.memory_space<vmem>>, vector<1x2x32x32xf32>
    %392 = vector.shape_cast %391 : vector<1x2x32x32xf32> to vector<2x32x32xf32>
    %393 = vector.broadcast %390 : f32 to vector<2x32x32xf32>
    %394 = arith.mulf %393, %392 : vector<2x32x32xf32>
    %395 = arith.addf %383, %394 : vector<2x32x32xf32>
    %c4_i32_315 = arith.constant 4 : i32
    %396 = arith.muli %arg0, %c4_i32_315 : i32
    %c3_i32_316 = arith.constant 3 : i32
    %397 = arith.addi %396, %c3_i32_316 : i32
    %c9_i32_317 = arith.constant 9 : i32
    %398 = arith.muli %397, %c9_i32_317 : i32
    %c0_i32_318 = arith.constant 0 : i32
    %399 = arith.addi %398, %c0_i32_318 : i32
    %c1_i32_319 = arith.constant 1 : i32
    %400 = arith.addi %399, %c1_i32_319 : i32
    %401 = arith.index_cast %400 : i32 to index
    %402 = memref.load %arg4[%401] : memref<144xf32, #tpu.memory_space<smem>>
    %c3_320 = arith.constant 3 : index
    %c0_321 = arith.constant 0 : index
    %c0_322 = arith.constant 0 : index
    %c1_323 = arith.constant 1 : index
    %403 = vector.load %arg8[%c3_320, %c0_321, %c0_322, %c1_323] : memref<4x2x34x34xf32, #tpu.memory_space<vmem>>, vector<1x2x32x32xf32>
    %404 = vector.shape_cast %403 : vector<1x2x32x32xf32> to vector<2x32x32xf32>
    %405 = vector.broadcast %402 : f32 to vector<2x32x32xf32>
    %406 = arith.mulf %405, %404 : vector<2x32x32xf32>
    %407 = arith.addf %395, %406 : vector<2x32x32xf32>
    %c4_i32_324 = arith.constant 4 : i32
    %408 = arith.muli %arg0, %c4_i32_324 : i32
    %c3_i32_325 = arith.constant 3 : i32
    %409 = arith.addi %408, %c3_i32_325 : i32
    %c9_i32_326 = arith.constant 9 : i32
    %410 = arith.muli %409, %c9_i32_326 : i32
    %c0_i32_327 = arith.constant 0 : i32
    %411 = arith.addi %410, %c0_i32_327 : i32
    %c2_i32_328 = arith.constant 2 : i32
    %412 = arith.addi %411, %c2_i32_328 : i32
    %413 = arith.index_cast %412 : i32 to index
    %414 = memref.load %arg4[%413] : memref<144xf32, #tpu.memory_space<smem>>
    %c3_329 = arith.constant 3 : index
    %c0_330 = arith.constant 0 : index
    %c0_331 = arith.constant 0 : index
    %c2_332 = arith.constant 2 : index
    %415 = vector.load %arg8[%c3_329, %c0_330, %c0_331, %c2_332] : memref<4x2x34x34xf32, #tpu.memory_space<vmem>>, vector<1x2x32x32xf32>
    %416 = vector.shape_cast %415 : vector<1x2x32x32xf32> to vector<2x32x32xf32>
    %417 = vector.broadcast %414 : f32 to vector<2x32x32xf32>
    %418 = arith.mulf %417, %416 : vector<2x32x32xf32>
    %419 = arith.addf %407, %418 : vector<2x32x32xf32>
    %c4_i32_333 = arith.constant 4 : i32
    %420 = arith.muli %arg0, %c4_i32_333 : i32
    %c3_i32_334 = arith.constant 3 : i32
    %421 = arith.addi %420, %c3_i32_334 : i32
    %c9_i32_335 = arith.constant 9 : i32
    %422 = arith.muli %421, %c9_i32_335 : i32
    %c3_i32_336 = arith.constant 3 : i32
    %423 = arith.addi %422, %c3_i32_336 : i32
    %c0_i32_337 = arith.constant 0 : i32
    %424 = arith.addi %423, %c0_i32_337 : i32
    %425 = arith.index_cast %424 : i32 to index
    %426 = memref.load %arg4[%425] : memref<144xf32, #tpu.memory_space<smem>>
    %c3_338 = arith.constant 3 : index
    %c0_339 = arith.constant 0 : index
    %c1_340 = arith.constant 1 : index
    %c0_341 = arith.constant 0 : index
    %427 = vector.load %arg8[%c3_338, %c0_339, %c1_340, %c0_341] : memref<4x2x34x34xf32, #tpu.memory_space<vmem>>, vector<1x2x32x32xf32>
    %428 = vector.shape_cast %427 : vector<1x2x32x32xf32> to vector<2x32x32xf32>
    %429 = vector.broadcast %426 : f32 to vector<2x32x32xf32>
    %430 = arith.mulf %429, %428 : vector<2x32x32xf32>
    %431 = arith.addf %419, %430 : vector<2x32x32xf32>
    %c4_i32_342 = arith.constant 4 : i32
    %432 = arith.muli %arg0, %c4_i32_342 : i32
    %c3_i32_343 = arith.constant 3 : i32
    %433 = arith.addi %432, %c3_i32_343 : i32
    %c9_i32_344 = arith.constant 9 : i32
    %434 = arith.muli %433, %c9_i32_344 : i32
    %c3_i32_345 = arith.constant 3 : i32
    %435 = arith.addi %434, %c3_i32_345 : i32
    %c1_i32_346 = arith.constant 1 : i32
    %436 = arith.addi %435, %c1_i32_346 : i32
    %437 = arith.index_cast %436 : i32 to index
    %438 = memref.load %arg4[%437] : memref<144xf32, #tpu.memory_space<smem>>
    %c3_347 = arith.constant 3 : index
    %c0_348 = arith.constant 0 : index
    %c1_349 = arith.constant 1 : index
    %c1_350 = arith.constant 1 : index
    %439 = vector.load %arg8[%c3_347, %c0_348, %c1_349, %c1_350] : memref<4x2x34x34xf32, #tpu.memory_space<vmem>>, vector<1x2x32x32xf32>
    %440 = vector.shape_cast %439 : vector<1x2x32x32xf32> to vector<2x32x32xf32>
    %441 = vector.broadcast %438 : f32 to vector<2x32x32xf32>
    %442 = arith.mulf %441, %440 : vector<2x32x32xf32>
    %443 = arith.addf %431, %442 : vector<2x32x32xf32>
    %c4_i32_351 = arith.constant 4 : i32
    %444 = arith.muli %arg0, %c4_i32_351 : i32
    %c3_i32_352 = arith.constant 3 : i32
    %445 = arith.addi %444, %c3_i32_352 : i32
    %c9_i32_353 = arith.constant 9 : i32
    %446 = arith.muli %445, %c9_i32_353 : i32
    %c3_i32_354 = arith.constant 3 : i32
    %447 = arith.addi %446, %c3_i32_354 : i32
    %c2_i32_355 = arith.constant 2 : i32
    %448 = arith.addi %447, %c2_i32_355 : i32
    %449 = arith.index_cast %448 : i32 to index
    %450 = memref.load %arg4[%449] : memref<144xf32, #tpu.memory_space<smem>>
    %c3_356 = arith.constant 3 : index
    %c0_357 = arith.constant 0 : index
    %c1_358 = arith.constant 1 : index
    %c2_359 = arith.constant 2 : index
    %451 = vector.load %arg8[%c3_356, %c0_357, %c1_358, %c2_359] : memref<4x2x34x34xf32, #tpu.memory_space<vmem>>, vector<1x2x32x32xf32>
    %452 = vector.shape_cast %451 : vector<1x2x32x32xf32> to vector<2x32x32xf32>
    %453 = vector.broadcast %450 : f32 to vector<2x32x32xf32>
    %454 = arith.mulf %453, %452 : vector<2x32x32xf32>
    %455 = arith.addf %443, %454 : vector<2x32x32xf32>
    %c4_i32_360 = arith.constant 4 : i32
    %456 = arith.muli %arg0, %c4_i32_360 : i32
    %c3_i32_361 = arith.constant 3 : i32
    %457 = arith.addi %456, %c3_i32_361 : i32
    %c9_i32_362 = arith.constant 9 : i32
    %458 = arith.muli %457, %c9_i32_362 : i32
    %c6_i32_363 = arith.constant 6 : i32
    %459 = arith.addi %458, %c6_i32_363 : i32
    %c0_i32_364 = arith.constant 0 : i32
    %460 = arith.addi %459, %c0_i32_364 : i32
    %461 = arith.index_cast %460 : i32 to index
    %462 = memref.load %arg4[%461] : memref<144xf32, #tpu.memory_space<smem>>
    %c3_365 = arith.constant 3 : index
    %c0_366 = arith.constant 0 : index
    %c2_367 = arith.constant 2 : index
    %c0_368 = arith.constant 0 : index
    %463 = vector.load %arg8[%c3_365, %c0_366, %c2_367, %c0_368] : memref<4x2x34x34xf32, #tpu.memory_space<vmem>>, vector<1x2x32x32xf32>
    %464 = vector.shape_cast %463 : vector<1x2x32x32xf32> to vector<2x32x32xf32>
    %465 = vector.broadcast %462 : f32 to vector<2x32x32xf32>
    %466 = arith.mulf %465, %464 : vector<2x32x32xf32>
    %467 = arith.addf %455, %466 : vector<2x32x32xf32>
    %c4_i32_369 = arith.constant 4 : i32
    %468 = arith.muli %arg0, %c4_i32_369 : i32
    %c3_i32_370 = arith.constant 3 : i32
    %469 = arith.addi %468, %c3_i32_370 : i32
    %c9_i32_371 = arith.constant 9 : i32
    %470 = arith.muli %469, %c9_i32_371 : i32
    %c6_i32_372 = arith.constant 6 : i32
    %471 = arith.addi %470, %c6_i32_372 : i32
    %c1_i32_373 = arith.constant 1 : i32
    %472 = arith.addi %471, %c1_i32_373 : i32
    %473 = arith.index_cast %472 : i32 to index
    %474 = memref.load %arg4[%473] : memref<144xf32, #tpu.memory_space<smem>>
    %c3_374 = arith.constant 3 : index
    %c0_375 = arith.constant 0 : index
    %c2_376 = arith.constant 2 : index
    %c1_377 = arith.constant 1 : index
    %475 = vector.load %arg8[%c3_374, %c0_375, %c2_376, %c1_377] : memref<4x2x34x34xf32, #tpu.memory_space<vmem>>, vector<1x2x32x32xf32>
    %476 = vector.shape_cast %475 : vector<1x2x32x32xf32> to vector<2x32x32xf32>
    %477 = vector.broadcast %474 : f32 to vector<2x32x32xf32>
    %478 = arith.mulf %477, %476 : vector<2x32x32xf32>
    %479 = arith.addf %467, %478 : vector<2x32x32xf32>
    %c4_i32_378 = arith.constant 4 : i32
    %480 = arith.muli %arg0, %c4_i32_378 : i32
    %c3_i32_379 = arith.constant 3 : i32
    %481 = arith.addi %480, %c3_i32_379 : i32
    %c9_i32_380 = arith.constant 9 : i32
    %482 = arith.muli %481, %c9_i32_380 : i32
    %c6_i32_381 = arith.constant 6 : i32
    %483 = arith.addi %482, %c6_i32_381 : i32
    %c2_i32_382 = arith.constant 2 : i32
    %484 = arith.addi %483, %c2_i32_382 : i32
    %485 = arith.index_cast %484 : i32 to index
    %486 = memref.load %arg4[%485] : memref<144xf32, #tpu.memory_space<smem>>
    %c3_383 = arith.constant 3 : index
    %c0_384 = arith.constant 0 : index
    %c2_385 = arith.constant 2 : index
    %c2_386 = arith.constant 2 : index
    %487 = vector.load %arg8[%c3_383, %c0_384, %c2_385, %c2_386] : memref<4x2x34x34xf32, #tpu.memory_space<vmem>>, vector<1x2x32x32xf32>
    %488 = vector.shape_cast %487 : vector<1x2x32x32xf32> to vector<2x32x32xf32>
    %489 = vector.broadcast %486 : f32 to vector<2x32x32xf32>
    %490 = arith.mulf %489, %488 : vector<2x32x32xf32>
    %491 = arith.addf %479, %490 : vector<2x32x32xf32>
    %c0_387 = arith.constant 0 : index
    %c0_388 = arith.constant 0 : index
    %c0_389 = arith.constant 0 : index
    %492 = vector.load %arg9[%c0_387, %c0_388, %c0_389] : memref<2x32x32xf32, #tpu.memory_space<vmem>>, vector<2x32x32xf32>
    %493 = arith.addf %492, %491 : vector<2x32x32xf32>
    %c0_390 = arith.constant 0 : index
    %c0_391 = arith.constant 0 : index
    %c0_392 = arith.constant 0 : index
    %494 = vector.load %arg9[%c0_390, %c0_391, %c0_392] : memref<2x32x32xf32, #tpu.memory_space<vmem>>, vector<2x32x32xf32>
    tpu.vector_store %arg9[%c0_390, %c0_391, %c0_392], %493 {strides = array<i32>} : memref<2x32x32xf32, #tpu.memory_space<vmem>>, vector<2x32x32xf32>,
    %c0_393 = arith.constant 0 : index
    %c0_394 = arith.constant 0 : index
    %c0_395 = arith.constant 0 : index
    %495 = vector.load %arg9[%c0_393, %c0_394, %c0_395] : memref<2x32x32xf32, #tpu.memory_space<vmem>>, vector<2x32x32xf32>
    %496 = vector.shape_cast %495 : vector<2x32x32xf32> to vector<1x2x32x32xf32>
    %cst_396 = arith.constant dense<0.000000e+00> : vector<1xf32>
    %497 = vector.multi_reduction <add>, %496, %cst_396 [1, 2, 3] : vector<1x2x32x32xf32> to vector<1xf32>
    %498 = vector.shape_cast %497 : vector<1xf32> to vector<1x1x1x1xf32>
    %499 = vector.extract %498[0, 0, 0, 0] : f32 from vector<1x1x1x1xf32>
    %cst_397 = arith.constant 2.048000e+03 : f32
    %500 = arith.divf %499, %cst_397 : f32
    %501 = vector.broadcast %500 : f32 to vector<2x32x32xf32>
    %502 = arith.subf %495, %501 : vector<2x32x32xf32>
    %503 = arith.mulf %502, %502 : vector<2x32x32xf32>
    %504 = vector.shape_cast %503 : vector<2x32x32xf32> to vector<1x2x32x32xf32>
    %cst_398 = arith.constant dense<0.000000e+00> : vector<1xf32>
    %505 = vector.multi_reduction <add>, %504, %cst_398 [1, 2, 3] : vector<1x2x32x32xf32> to vector<1xf32>
    %506 = vector.shape_cast %505 : vector<1xf32> to vector<1x1x1x1xf32>
    %507 = vector.extract %506[0, 0, 0, 0] : f32 from vector<1x1x1x1xf32>
    %cst_399 = arith.constant 2.048000e+03 : f32
    %508 = arith.divf %507, %cst_399 : f32
    %509 = arith.index_cast %arg0 : i32 to index
    %510 = memref.load %arg5[%509] : memref<4xf32, #tpu.memory_space<smem>>
    %cst_400 = arith.constant 9.99999974E-6 : f32
    %511 = arith.addf %508, %cst_400 : f32
    %512 = math.rsqrt %511 : f32
    %513 = arith.mulf %510, %512 : f32
    %514 = arith.index_cast %arg0 : i32 to index
    %515 = memref.load %arg6[%514] : memref<4xf32, #tpu.memory_space<smem>>
    %516 = arith.mulf %500, %513 : f32
    %517 = arith.subf %515, %516 : f32
    %518 = vector.broadcast %513 : f32 to vector<2x32x32xf32>
    %519 = arith.mulf %495, %518 : vector<2x32x32xf32>
    %520 = vector.broadcast %517 : f32 to vector<2x32x32xf32>
    %521 = arith.addf %519, %520 : vector<2x32x32xf32>
    %cst_401 = arith.constant 0.000000e+00 : f32
    %522 = vector.broadcast %cst_401 : f32 to vector<2x32x32xf32>
    %523 = arith.cmpf ogt, %521, %522 : vector<2x32x32xf32>
    %cst_402 = arith.constant 0.000000e+00 : f32
    %524 = vector.broadcast %cst_402 : f32 to vector<2x32x32xf32>
    %525 = arith.minimumf %521, %524 : vector<2x32x32xf32>
    %526 = math.exp %525 : vector<2x32x32xf32>
    %cst_403 = arith.constant 1.000000e+00 : f32
    %527 = vector.broadcast %cst_403 : f32 to vector<2x32x32xf32>
    %528 = arith.subf %526, %527 : vector<2x32x32xf32>
    %529 = arith.select %523, %521, %528 : vector<2x32x32xi1>, vector<2x32x32xf32>
    %530 = vector.shape_cast %529 : vector<2x32x32xf32> to vector<2x1x32x32xf32>
    %c0_404 = arith.constant 0 : index
    %c0_405 = arith.constant 0 : index
    %c0_406 = arith.constant 0 : index
    %c0_407 = arith.constant 0 : index
    %531 = vector.load %arg7[%c0_404, %c0_405, %c0_406, %c0_407] : memref<2x1x32x32xf32, #tpu.memory_space<vmem>>, vector<2x1x32x32xf32>
    tpu.vector_store %arg7[%c0_404, %c0_405, %c0_406, %c0_407], %530 {strides = array<i32>} : memref<2x1x32x32xf32, #tpu.memory_space<vmem>>, vector<2x1x32x32xf32>,
    return
  }
  func.func @transform_0(%arg0: i32) -> (i32, i32, i32, i32) {
    %c0_i32 = arith.constant 0 : i32
    %c0_i32_0 = arith.constant 0 : i32
    %c0_i32_1 = arith.constant 0 : i32
    %c0_i32_2 = arith.constant 0 : i32
    %c0_i32_3 = arith.constant 0 : i32
    return %c0_i32, %c0_i32_0, %c0_i32_1, %c0_i32_2 : i32, i32, i32, i32
  }
  func.func @transform_1(%arg0: i32) -> (i32, i32) {
    %c0_i32 = arith.constant 0 : i32
    %c0_i32_0 = arith.constant 0 : i32
    %c0_i32_1 = arith.constant 0 : i32
    return %c0_i32, %c0_i32_0 : i32, i32
  }
  func.func @transform_2(%arg0: i32) -> (i32, i32) {
    %c0_i32 = arith.constant 0 : i32
    %c0_i32_0 = arith.constant 0 : i32
    %c0_i32_1 = arith.constant 0 : i32
    return %c0_i32, %c0_i32_0 : i32, i32
  }
  func.func @transform_3(%arg0: i32) -> i32 {
    %c0_i32 = arith.constant 0 : i32
    %c0_i32_0 = arith.constant 0 : i32
    return %c0_i32 : i32
  }
  func.func @transform_4(%arg0: i32) -> i32 {
    %c0_i32 = arith.constant 0 : i32
    %c0_i32_0 = arith.constant 0 : i32
    return %c0_i32 : i32
  }
  func.func @transform_5(%arg0: i32) -> i32 {
    %c0_i32 = arith.constant 0 : i32
    %c0_i32_0 = arith.constant 0 : i32
    return %c0_i32 : i32
  }
  func.func @transform_6(%arg0: i32) -> (i32, i32, i32, i32) {
    %c0_i32 = arith.constant 0 : i32
    %c0_i32_0 = arith.constant 0 : i32
    %c0_i32_1 = arith.constant 0 : i32
    %c0_i32_2 = arith.constant 0 : i32
    return %c0_i32, %arg0, %c0_i32_0, %c0_i32_1 : i32, i32, i32, i32
  }
}

</mosaic_0001>

<llo_original>
// kernel: tpu_custom_call.1
$region0: #{tpu_custom_call.1}
  #allocation0 [shape = 'u32[]', space=smem, size = 0x4, offset = 0x4, fixed_abs, tag = 'smem constant byte address 0x4 - core index']
  #allocation1 [shape = 'u32[72,128]{1,0:T(1,128)}', space=vmem, size = 0x9000, scoped, tag = 'internal scratch']
  #allocation2 [shape = 'f32[4,2,34,34]{3,2,1,0:T(8,128)}', space=vmem, size = 0x28000, scoped, tag = 'scratch operand']
  #allocation3 [shape = 'f32[2,32,32]{2,1,0:T(8,128)}', space=vmem, size = 0x8000, scoped, tag = 'scratch operand']
  #allocation13 [shape = 's32[]', space=sflag, size = 0x4, offset = 0, fixed_abs, tag = 'sflag constant byte address 0x0 - dummy sync flag']
  %s0 = inlined_call_operand.hbm [shape: f32[2,4,16,16], index: 0, kind: input, shape index: {}]
  %s1 = inlined_call_operand.vmem [shape: f32[34,16], index: 1, kind: input, shape index: {}]
  %s2 = inlined_call_operand.vmem [shape: f32[16,34], index: 2, kind: input, shape index: {}]
  %s3 = inlined_call_operand.vmem [shape: f32[144], index: 3, kind: input, shape index: {}]
  %s4 = inlined_call_operand.vmem [shape: f32[4], index: 4, kind: input, shape index: {}]
  %s5 = inlined_call_operand.vmem [shape: f32[4], index: 5, kind: input, shape index: {}]
  %s6 = inlined_call_operand.hbm [shape: f32[2,4,32,32], index: 6, kind: output, shape index: {}]
  %s7 = sld [smem:[#allocation0]]
  $region73: #{tpu_custom_call.1} parent=0
    _
  %s9 = ssub.s32 1, %s7
  %s10 = scalar_select 0, %s9, %s7
  $region1: #{tpu_custom_call.1} parent=0
    #allocation4 [shape = 'u8[65536]{0}', space=vmem, size = 0x10000, scoped, tag = 'input window, operand 0, single buffered']
    #allocation5 [shape = 's32[2]{0}', space=sflag, size = 0x8, scoped, tag = 'scoped memory for tpu_custom_call.1']
    #allocation6 [shape = 's32[2]{0}', space=sflag, size = 0x8, scoped, tag = 'scoped memory for tpu_custom_call.1']
    #allocation7 [shape = 's32[2]{0}', space=sflag, size = 0x8, scoped, tag = 'scoped memory for tpu_custom_call.1']
    #allocation8 [shape = 'u8[1024]{0}', space=smem, size = 0x400, scoped, tag = 'input window, operand 3, single buffered']
    #allocation9 [shape = 'u8[512]{0}', space=smem, size = 0x200, scoped, tag = 'input window, operand 4, single buffered']
    #allocation10 [shape = 's32[1]{0}', space=sflag, size = 0x4, scoped, tag = 'scoped memory for tpu_custom_call.1']
    #allocation11 [shape = 'u8[512]{0}', space=smem, size = 0x200, scoped, tag = 'input window, operand 5, single buffered']
    #allocation12 [shape = 'u8[65536]{0}', space=vmem, size = 0x10000, scoped, tag = 'output window, operand 0']
    %11 = vsyncpa [#allocation5], 0
    %12 = vsyncpa [#allocation7], 0
    %13 = vsyncpa [#allocation10], 0
    %14 = vsyncpa [#allocation6], 0
    %s15 = scalar_lea.sflag [#allocation6], 1
    %16 = vsyncpa %s15, 0
    loop: start=0, step=1, limit=6
    $region2: #{tpu_custom_call.1} parent=1 // loop_pre_header
      _
    $region3: #{tpu_custom_call.1} parent=1 // loop_header
      %s18 = sphi 0, %s22
      %p19 = scmp.ge.s32.totalorder %s18, 6
      %s26 = sphi 0, %s26
      %s28 = sphi 0, %s26
      %s29 = sphi 0, %s28
      %s43 = sphi 0, %s29
      %s47 = sphi 0, %s47
      %s49 = sphi 0, %s47
      %s50 = sphi 0, %s49
      %s64 = sphi 0, %s50
      %s68 = sphi 0, %s68
      %s70 = sphi 0, %s68
      %s71 = sphi 0, %s70
      %s85 = sphi 0, %s71
      %s89 = sphi 0, %s89
      %s91 = sphi 0, %s89
      %s92 = sphi 0, %s91
      %s106 = sphi 0, %s92
      %s110 = sphi 0, %s110
      %s112 = sphi 0, %s110
      %s113 = sphi 0, %s112
      %s127 = sphi 0, %s113
      %s131 = sphi 0, %s131
      %s133 = sphi 0, %s131
      %s134 = sphi 0, %s133
      %s148 = sphi 0, %s134
      %s154 = sphi 0, %s156
      %s157 = sphi 0, %s154
      %s158 = sphi 0, %s157
      %s174 = sphi 0, %s158
    $region4: #{tpu_custom_call.1} parent=1 // loop_header_branch
      %21 = sbr.rel (%p19) target = $region8
    $region5: #{tpu_custom_call.1} parent=1 // loop_body
      %s23 = ssub.s32 %s18, 1
      %s24 = ssub.s32 %s18, 2
      %s25 = sadd.s32 %s18, 1
      %s27 = sadd.s32 %s26, 1
      %p30 = scmp.eq.s32.totalorder %s18, 3
      %p31 = scmp.ne.s32.totalorder %s26, %s28
      %p32 = scmp.eq.s32.totalorder %s18, 0
      %p33 = por %p31, %p32
      %p34 = scmp.ne.s32.totalorder %s26, %s28
      %p35 = scmp.eq.s32.totalorder %s23, 3
      %p36 = por %p34, %p35
      %p37 = scmp.ne.s32.totalorder %s28, %s29
      %p38 = scmp.eq.s32.totalorder %s23, 0
      %p39 = por %p37, %p38
      %p40 = scmp.ne.s32.totalorder %s28, %s29
      %p41 = scmp.eq.s32.totalorder %s24, 3
      %p42 = por %p40, %p41
      %p44 = scmp.ne.s32.totalorder %s29, %s43
      %p45 = scmp.eq.s32.totalorder %s24, 0
      %p46 = por %p44, %p45
      %s48 = sadd.s32 %s47, 1
      %p51 = scmp.eq.s32.totalorder %s18, 3
      %p52 = scmp.ne.s32.totalorder %s47, %s49
      %p53 = scmp.eq.s32.totalorder %s18, 0
      %p54 = por %p52, %p53
      %p55 = scmp.ne.s32.totalorder %s47, %s49
      %p56 = scmp.eq.s32.totalorder %s23, 3
      %p57 = por %p55, %p56
      %p58 = scmp.ne.s32.totalorder %s49, %s50
      %p59 = scmp.eq.s32.totalorder %s23, 0
      %p60 = por %p58, %p59
      %p61 = scmp.ne.s32.totalorder %s49, %s50
      %p62 = scmp.eq.s32.totalorder %s24, 3
      %p63 = por %p61, %p62
      %p65 = scmp.ne.s32.totalorder %s50, %s64
      %p66 = scmp.eq.s32.totalorder %s24, 0
      %p67 = por %p65, %p66
      %s69 = sadd.s32 %s68, 1
      %p72 = scmp.eq.s32.totalorder %s18, 3
      %p73 = scmp.ne.s32.totalorder %s68, %s70
      %p74 = scmp.eq.s32.totalorder %s18, 0
      %p75 = por %p73, %p74
      %p76 = scmp.ne.s32.totalorder %s68, %s70
      %p77 = scmp.eq.s32.totalorder %s23, 3
      %p78 = por %p76, %p77
      %p79 = scmp.ne.s32.totalorder %s70, %s71
      %p80 = scmp.eq.s32.totalorder %s23, 0
      %p81 = por %p79, %p80
      %p82 = scmp.ne.s32.totalorder %s70, %s71
      %p83 = scmp.eq.s32.totalorder %s24, 3
      %p84 = por %p82, %p83
      %p86 = scmp.ne.s32.totalorder %s71, %s85
      %p87 = scmp.eq.s32.totalorder %s24, 0
      %p88 = por %p86, %p87
      %s90 = sadd.s32 %s89, 1
      %p93 = scmp.eq.s32.totalorder %s18, 3
      %p94 = scmp.ne.s32.totalorder %s89, %s91
      %p95 = scmp.eq.s32.totalorder %s18, 0
      %p96 = por %p94, %p95
      %p97 = scmp.ne.s32.totalorder %s89, %s91
      %p98 = scmp.eq.s32.totalorder %s23, 3
      %p99 = por %p97, %p98
      %p100 = scmp.ne.s32.totalorder %s91, %s92
      %p101 = scmp.eq.s32.totalorder %s23, 0
      %p102 = por %p100, %p101
      %p103 = scmp.ne.s32.totalorder %s91, %s92
      %p104 = scmp.eq.s32.totalorder %s24, 3
      %p105 = por %p103, %p104
      %p107 = scmp.ne.s32.totalorder %s92, %s106
      %p108 = scmp.eq.s32.totalorder %s24, 0
      %p109 = por %p107, %p108
      %s111 = sadd.s32 %s110, 1
      %p114 = scmp.eq.s32.totalorder %s18, 3
      %p115 = scmp.ne.s32.totalorder %s110, %s112
      %p116 = scmp.eq.s32.totalorder %s18, 0
      %p117 = por %p115, %p116
      %p118 = scmp.ne.s32.totalorder %s110, %s112
      %p119 = scmp.eq.s32.totalorder %s23, 3
      %p120 = por %p118, %p119
      %p121 = scmp.ne.s32.totalorder %s112, %s113
      %p122 = scmp.eq.s32.totalorder %s23, 0
      %p123 = por %p121, %p122
      %p124 = scmp.ne.s32.totalorder %s112, %s113
      %p125 = scmp.eq.s32.totalorder %s24, 3
      %p126 = por %p124, %p125
      %p128 = scmp.ne.s32.totalorder %s113, %s127
      %p129 = scmp.eq.s32.totalorder %s24, 0
      %p130 = por %p128, %p129
      %s132 = sadd.s32 %s131, 1
      %p135 = scmp.eq.s32.totalorder %s18, 3
      %p136 = scmp.ne.s32.totalorder %s131, %s133
      %p137 = scmp.eq.s32.totalorder %s18, 0
      %p138 = por %p136, %p137
      %p139 = scmp.ne.s32.totalorder %s131, %s133
      %p140 = scmp.eq.s32.totalorder %s23, 3
      %p141 = por %p139, %p140
      %p142 = scmp.ne.s32.totalorder %s133, %s134
      %p143 = scmp.eq.s32.totalorder %s23, 0
      %p144 = por %p142, %p143
      %p145 = scmp.ne.s32.totalorder %s133, %s134
      %p146 = scmp.eq.s32.totalorder %s24, 3
      %p147 = por %p145, %p146
      %p149 = scmp.ne.s32.totalorder %s134, %s148
      %p150 = scmp.eq.s32.totalorder %s24, 0
      %p151 = por %p149, %p150
      %s152 = ssub.s32 %s18, %s25
      %p153 = scmp.eq.s32.totalorder %s152, 0
      %s155 = sadd.s32 %s154, 1
      %s156 = scalar_select %p153, %s154, %s155
      %p159 = pneg %p153
      %p160 = scmp.eq.s32.totalorder %s18, 3
      %p161 = por %p159, %p160
      %p162 = scmp.ne.s32.totalorder %s154, %s157
      %p163 = scmp.eq.s32.totalorder %s18, 0
      %p164 = por %p162, %p163
      %p165 = scmp.ne.s32.totalorder %s154, %s157
      %p166 = scmp.eq.s32.totalorder %s23, 3
      %p167 = por %p165, %p166
      %p168 = scmp.ne.s32.totalorder %s157, %s158
      %p169 = scmp.eq.s32.totalorder %s23, 0
      %p170 = por %p168, %p169
      %p171 = scmp.ne.s32.totalorder %s157, %s158
      %p172 = scmp.eq.s32.totalorder %s24, 3
      %p173 = por %p171, %p172
      %p175 = scmp.ne.s32.totalorder %s158, %s174
      %p176 = scmp.eq.s32.totalorder %s24, 0
      %p177 = por %p175, %p176
      %p178 = scmp.le.s32.totalorder 1, %s18
      %p179 = scmp.lt.s32.totalorder %s18, 5
      %p180 = pnand %p178, %p179
      %p181 = pneg %p180
      // Predicated region
      $region9: #{tpu_custom_call.1} parent=5 // pred_check
        _
      $region10: #{tpu_custom_call.1} parent=5 // pred_check_branch
        %183 = sbr.rel (%p180) target = $region12
      $region11: #{tpu_custom_call.1} parent=5 // pred_region
        %s184 = ssub.s32 %s18, 1
        // Predicated region
        $region13: #{tpu_custom_call.1} parent=11 // pred_check
          %p185 = pneg %p39
        $region14: #{tpu_custom_call.1} parent=11 // pred_check_branch
          %187 = sbr.rel (%p185) target = $region16
        $region15: #{tpu_custom_call.1} parent=11 // pred_region
          %189 = vsyncadd [#allocation5], 0
          %s190 = sshll.u32 %s0, 4
          %s191 = int_to_ptr.hbm [resolvable:$true] %s190
          %s192 = sshll.u32 [#allocation4], 4
          %s193 = int_to_ptr.vmem [resolvable:$true] %s192
          %198 = dma.hbm_to_vmem [thread:$0]  %s191, 2048, %s193, [#allocation5], 128, 128, 8
        $region16: #{tpu_custom_call.1} parent=11 // pred_fallthru
          _
        // Predicated region
        $region17: #{tpu_custom_call.1} parent=11 // pred_check
          %p199 = pneg %p60
        $region18: #{tpu_custom_call.1} parent=11 // pred_check_branch
          %201 = sbr.rel (%p199) target = $region20
        $region19: #{tpu_custom_call.1} parent=11 // pred_region
          _
        $region20: #{tpu_custom_call.1} parent=11 // pred_fallthru
          _
        // Predicated region
        $region21: #{tpu_custom_call.1} parent=11 // pred_check
          %p202 = pneg %p81
        $region22: #{tpu_custom_call.1} parent=11 // pred_check_branch
          %204 = sbr.rel (%p202) target = $region24
        $region23: #{tpu_custom_call.1} parent=11 // pred_region
          _
        $region24: #{tpu_custom_call.1} parent=11 // pred_fallthru
          _
        // Predicated region
        $region25: #{tpu_custom_call.1} parent=11 // pred_check
          %p205 = pneg %p102
        $region26: #{tpu_custom_call.1} parent=11 // pred_check_branch
          %207 = sbr.rel (%p205) target = $region28
        $region27: #{tpu_custom_call.1} parent=11 // pred_region
          %209 = vsyncadd [#allocation7], 0
          %s211 = sshll.u32 %s3, 4
          %s212 = int_to_ptr.vmem [resolvable:$true] %s211
          %214 = dma.vmem_to_smem %s212, 32, [#allocation8], [#allocation7]
        $region28: #{tpu_custom_call.1} parent=11 // pred_fallthru
          _
        // Predicated region
        $region29: #{tpu_custom_call.1} parent=11 // pred_check
          %p215 = pneg %p123
        $region30: #{tpu_custom_call.1} parent=11 // pred_check_branch
          %217 = sbr.rel (%p215) target = $region32
        $region31: #{tpu_custom_call.1} parent=11 // pred_region
          %219 = vsyncadd [#allocation10], 0
          %s221 = sshll.u32 %s4, 4
          %s222 = int_to_ptr.vmem [resolvable:$true] %s221
          %224 = dma.vmem_to_smem %s222, 16, [#allocation9], [#allocation10]
        $region32: #{tpu_custom_call.1} parent=11 // pred_fallthru
          _
        // Predicated region
        $region33: #{tpu_custom_call.1} parent=11 // pred_check
          %p225 = pneg %p144
        $region34: #{tpu_custom_call.1} parent=11 // pred_check_branch
          %227 = sbr.rel (%p225) target = $region36
        $region35: #{tpu_custom_call.1} parent=11 // pred_region
          %229 = vsyncadd [#allocation10], 0
          %s231 = sshll.u32 %s5, 4
          %s232 = int_to_ptr.vmem [resolvable:$true] %s231
          %234 = dma.vmem_to_smem %s232, 16, [#allocation11], [#allocation10]
        $region36: #{tpu_custom_call.1} parent=11 // pred_fallthru
          _
      $region12: #{tpu_custom_call.1} parent=5 // pred_fallthru
        _
      %p235 = scmp.lt.s32.totalorder %s18, 4
      // Predicated region
      $region37: #{tpu_custom_call.1} parent=5 // pred_check
        %p236 = pneg %p235
      $region38: #{tpu_custom_call.1} parent=5 // pred_check_branch
        %238 = sbr.rel (%p236) target = $region40
      $region39: #{tpu_custom_call.1} parent=5 // pred_region
        _
      $region40: #{tpu_custom_call.1} parent=5 // pred_fallthru
        _
      %p239 = scmp.le.s32.totalorder 1, %s18
      %p240 = scmp.lt.s32.totalorder %s18, 5
      %p241 = pnand %p239, %p240
      %p242 = pneg %p241
      // Predicated region
      $region41: #{tpu_custom_call.1} parent=5 // pred_check
        _
      $region42: #{tpu_custom_call.1} parent=5 // pred_check_branch
        %244 = sbr.rel (%p241) target = $region44
      $region43: #{tpu_custom_call.1} parent=5 // pred_region
        %s245 = ssub.s32 %s18, 1
        // Predicated region
        $region45: #{tpu_custom_call.1} parent=43 // pred_check
          %p246 = pneg %p39
        $region46: #{tpu_custom_call.1} parent=43 // pred_check_branch
          %248 = sbr.rel (%p246) target = $region48
        $region47: #{tpu_custom_call.1} parent=43 // pred_region
          %250 = dma.done [#allocation5], 2048
        $region48: #{tpu_custom_call.1} parent=43 // pred_fallthru
          _
        // Predicated region
        $region49: #{tpu_custom_call.1} parent=43 // pred_check
          %p251 = pneg %p102
        $region50: #{tpu_custom_call.1} parent=43 // pred_check_branch
          %253 = sbr.rel (%p251) target = $region52
        $region51: #{tpu_custom_call.1} parent=43 // pred_region
          %255 = dma.done [#allocation7], 32
        $region52: #{tpu_custom_call.1} parent=43 // pred_fallthru
          _
        // Predicated region
        $region53: #{tpu_custom_call.1} parent=43 // pred_check
          %p256 = pneg %p123
        $region54: #{tpu_custom_call.1} parent=43 // pred_check_branch
          %258 = sbr.rel (%p256) target = $region56
        $region55: #{tpu_custom_call.1} parent=43 // pred_region
          %260 = dma.done [#allocation10], 16
        $region56: #{tpu_custom_call.1} parent=43 // pred_fallthru
          _
        // Predicated region
        $region57: #{tpu_custom_call.1} parent=43 // pred_check
          %p261 = pneg %p144
        $region58: #{tpu_custom_call.1} parent=43 // pred_check_branch
          %263 = sbr.rel (%p261) target = $region60
        $region59: #{tpu_custom_call.1} parent=43 // pred_region
          %265 = dma.done [#allocation10], 16
        $region60: #{tpu_custom_call.1} parent=43 // pred_fallthru
          _
        %266 = sfence
        %p267 = pneg %p39
        %p268 = pneg %p36
        %p269 = pneg %p60
        %p270 = pneg %p57
        %p271 = pneg %p81
        %p272 = pneg %p78
        %p273 = pneg %p102
        %p274 = pneg %p99
        %p275 = pneg %p123
        %p276 = pneg %p120
        %p277 = pneg %p144
        %p278 = pneg %p141
        %p279 = pneg %p170
        %p280 = pneg %p167
        %s281 = sand.u32 %s157, 1
        %s282 = scalar_lea.sflag [#allocation6], %s281
        %s283 = sand.u32 %s157, 1
        %s284 = smul.addr %s283, 64
        %s285 = scalar_lea.vmem [#allocation12], %s284
        %v286 = vld [vmem:[#allocation4] sm:$0xff]
        %v287 = vld [vmem:[#allocation4 + $0x8] sm:$0xff]
        %v288 = vld [vmem:[#allocation4 + $0x10] sm:$0xff]
        %v289 = vld [vmem:[#allocation4 + $0x18] sm:$0xff]
        %v290 = vld [vmem:[#allocation4 + $0x20] sm:$0xff]
        %v291 = vld [vmem:[#allocation4 + $0x28] sm:$0xff]
        %v292 = vld [vmem:[#allocation4 + $0x30] sm:$0xff]
        %v293 = vld [vmem:[#allocation4 + $0x38] sm:$0xff]
        %v294 = vld [vmem:[#allocation4 + $0x40] sm:$0xff]
        %v295 = vld [vmem:[#allocation4 + $0x48] sm:$0xff]
        %v296 = vld [vmem:[#allocation4 + $0x50] sm:$0xff]
        %v297 = vld [vmem:[#allocation4 + $0x58] sm:$0xff]
        %v298 = vld [vmem:[#allocation4 + $0x60] sm:$0xff]
        %v299 = vld [vmem:[#allocation4 + $0x68] sm:$0xff]
        %v300 = vld [vmem:[#allocation4 + $0x70] sm:$0xff]
        %v301 = vld [vmem:[#allocation4 + $0x78] sm:$0xff]
        %v302 = vld [vmem:[%s2] sm:$0xff]
        %v303 = vld [vmem:[%s2 + $0x8] sm:$0xff]
        %vm304 = vcmask 130048
        %v306 = vsel %vm304, %v286, 0
        %v309 = vsel %vm304, %v287, 0
        %v312 = vsel %vm304, %v288, 0
        %v315 = vsel %vm304, %v289, 0
        %v318 = vsel %vm304, %v290, 0
        %v321 = vsel %vm304, %v291, 0
        %v324 = vsel %vm304, %v292, 0
        %v327 = vsel %vm304, %v293, 0
        %v330 = vsel %vm304, %v294, 0
        %v333 = vsel %vm304, %v295, 0
        %v336 = vsel %vm304, %v296, 0
        %v339 = vsel %vm304, %v297, 0
        %v342 = vsel %vm304, %v298, 0
        %v345 = vsel %vm304, %v299, 0
        %v348 = vsel %vm304, %v300, 0
        %v351 = vsel %vm304, %v301, 0
        %353 = vmatpush.msra.mxu0 0.0
        %354 = vmatpush.msra.mxu0 0.0
        %355 = vmatpush.msra.mxu0 0.0
        %356 = vmatpush.msra.mxu0 0.0
        %357 = vmatpush.msra.mxu0 0.0
        %358 = vmatpush.msra.mxu0 0.0
        %359 = vmatpush.msra.mxu0 0.0
        %360 = vmatpush.msra.mxu0 0.0
        %361 = vmatpush.msra.mxu0 0.0
        %362 = vmatpush.msra.mxu0 0.0
        %363 = vmatpush.msra.mxu0 0.0
        %364 = vmatpush.msra.mxu0 0.0
        %365 = vmatpush.msra.mxu0 0.0
        %366 = vmatpush.msra.mxu0 0.0
        %367 = vmatpush.msra.mxu0 %v303
        %368 = vmatpush.msra.mxu0 %v302
        %369 = vmatmul.f32.gmra.mxu0 %v306
        %v370 = vpop.f32.mrf.mxu0
        %v371 = vadd.f32 0.0, %v370
        %372 = vmatmul.f32.gmra.mxu0 %v309
        %v373 = vpop.f32.mrf.mxu0
        %v374 = vadd.f32 0.0, %v373
        %375 = vmatmul.f32.gmra.mxu0 %v312
        %v376 = vpop.f32.mrf.mxu0
        %v377 = vadd.f32 0.0, %v376
        %378 = vmatmul.f32.gmra.mxu0 %v315
        %v379 = vpop.f32.mrf.mxu0
        %v380 = vadd.f32 0.0, %v379
        %381 = vmatmul.f32.gmra.mxu0 %v318
        %v382 = vpop.f32.mrf.mxu0
        %v383 = vadd.f32 0.0, %v382
        %384 = vmatmul.f32.gmra.mxu0 %v321
        %v385 = vpop.f32.mrf.mxu0
        %v386 = vadd.f32 0.0, %v385
        %387 = vmatmul.f32.gmra.mxu0 %v324
        %v388 = vpop.f32.mrf.mxu0
        %v389 = vadd.f32 0.0, %v388
        %390 = vmatmul.f32.gmra.mxu0 %v327
        %v391 = vpop.f32.mrf.mxu0
        %v392 = vadd.f32 0.0, %v391
        %393 = vmatmul.f32.gmra.mxu0 %v330
        %v394 = vpop.f32.mrf.mxu0
        %v395 = vadd.f32 0.0, %v394
        %396 = vmatmul.f32.gmra.mxu0 %v333
        %v397 = vpop.f32.mrf.mxu0
        %v398 = vadd.f32 0.0, %v397
        %399 = vmatmul.f32.gmra.mxu0 %v336
        %v400 = vpop.f32.mrf.mxu0
        %v401 = vadd.f32 0.0, %v400
        %402 = vmatmul.f32.gmra.mxu0 %v339
        %v403 = vpop.f32.mrf.mxu0
        %v404 = vadd.f32 0.0, %v403
        %405 = vmatmul.f32.gmra.mxu0 %v342
        %v406 = vpop.f32.mrf.mxu0
        %v407 = vadd.f32 0.0, %v406
        %408 = vmatmul.f32.gmra.mxu0 %v345
        %v409 = vpop.f32.mrf.mxu0
        %v410 = vadd.f32 0.0, %v409
        %411 = vmatmul.f32.gmra.mxu0 %v348
        %v412 = vpop.f32.mrf.mxu0
        %v413 = vadd.f32 0.0, %v412
        %414 = vmatmul.f32.gmra.mxu0 %v351
        %v415 = vpop.f32.mrf.mxu0
        %v416 = vadd.f32 0.0, %v415
        %417 = vdwg.mxu0
        %v418 = vld [vmem:[%s1] sm:$0xff]
        %v419 = vld [vmem:[%s1 + $0x8] sm:$0xff]
        %v420 = vld [vmem:[%s1 + $0x10] sm:$0xff]
        %v421 = vld [vmem:[%s1 + $0x18] sm:$0xff]
        %v422 = vld [vmem:[%s1 + $0x20] sm:$0x3]
        %v424 = vsel %vm304, %v418, 0
        %v427 = vsel %vm304, %v419, 0
        %v430 = vsel %vm304, %v420, 0
        %v433 = vsel %vm304, %v421, 0
        %v436 = vsel %vm304, %v422, 0
        %438 = vmatpush.msra.mxu0 0.0
        %439 = vmatpush.msra.mxu0 0.0
        %440 = vmatpush.msra.mxu0 0.0
        %441 = vmatpush.msra.mxu0 0.0
        %442 = vmatpush.msra.mxu0 0.0
        %443 = vmatpush.msra.mxu0 0.0
        %444 = vmatpush.msra.mxu0 0.0
        %445 = vmatpush.msra.mxu0 0.0
        %446 = vmatpush.msra.mxu0 0.0
        %447 = vmatpush.msra.mxu0 0.0
        %448 = vmatpush.msra.mxu0 0.0
        %449 = vmatpush.msra.mxu0 0.0
        %450 = vmatpush.msra.mxu0 0.0
        %451 = vmatpush.msra.mxu0 0.0
        %452 = vmatpush.msra.mxu0 %v374
        %453 = vmatpush.msra.mxu0 %v371
        %454 = vmatmul.f32.gmra.mxu0 %v424
        %v455 = vpop.f32.mrf.mxu0
        %v456 = vadd.f32 0.0, %v455
        %457 = vmatmul.f32.gmra.mxu0 %v427
        %v458 = vpop.f32.mrf.mxu0
        %v459 = vadd.f32 0.0, %v458
        %460 = vmatmul.f32.gmra.mxu0 %v430
        %v461 = vpop.f32.mrf.mxu0
        %v462 = vadd.f32 0.0, %v461
        %463 = vmatmul.f32.gmra.mxu0 %v433
        %v464 = vpop.f32.mrf.mxu0
        %v465 = vadd.f32 0.0, %v464
        %466 = vmatmul.f32.gmra.mxu0 %v436
        %v467 = vpop.f32.mrf.mxu0
        %v468 = vadd.f32 0.0, %v467
        %469 = vdwg.mxu0
        %vm470 = vcmask 277504
        %471 = vst.msk [vmem:[#allocation2] sm:$0xff] %vm470, %v456
        %472 = vst.msk [vmem:[#allocation2 + $0x8] sm:$0xff] %vm470, %v459
        %473 = vst.msk [vmem:[#allocation2 + $0x10] sm:$0xff] %vm470, %v462
        %474 = vst.msk [vmem:[#allocation2 + $0x18] sm:$0xff] %vm470, %v465
        %vm475 = vcmask 271360
        %476 = vst.msk [vmem:[#allocation2 + $0x20] sm:$0x3] %vm475, %v468
        %477 = vmatpush.msra.mxu0 0.0
        %478 = vmatpush.msra.mxu0 0.0
        %479 = vmatpush.msra.mxu0 0.0
        %480 = vmatpush.msra.mxu0 0.0
        %481 = vmatpush.msra.mxu0 0.0
        %482 = vmatpush.msra.mxu0 0.0
        %483 = vmatpush.msra.mxu0 0.0
        %484 = vmatpush.msra.mxu0 0.0
        %485 = vmatpush.msra.mxu0 0.0
        %486 = vmatpush.msra.mxu0 0.0
        %487 = vmatpush.msra.mxu0 0.0
        %488 = vmatpush.msra.mxu0 0.0
        %489 = vmatpush.msra.mxu0 0.0
        %490 = vmatpush.msra.mxu0 0.0
        %491 = vmatpush.msra.mxu0 %v398
        %492 = vmatpush.msra.mxu0 %v395
        %493 = vmatmul.f32.gmra.mxu0 %v424
        %v494 = vpop.f32.mrf.mxu0
        %v495 = vadd.f32 0.0, %v494
        %496 = vmatmul.f32.gmra.mxu0 %v427
        %v497 = vpop.f32.mrf.mxu0
        %v498 = vadd.f32 0.0, %v497
        %499 = vmatmul.f32.gmra.mxu0 %v430
        %v500 = vpop.f32.mrf.mxu0
        %v501 = vadd.f32 0.0, %v500
        %502 = vmatmul.f32.gmra.mxu0 %v433
        %v503 = vpop.f32.mrf.mxu0
        %v504 = vadd.f32 0.0, %v503
        %505 = vmatmul.f32.gmra.mxu0 %v436
        %v506 = vpop.f32.mrf.mxu0
        %v507 = vadd.f32 0.0, %v506
        %508 = vdwg.mxu0
        %s509 = scalar_lea.vmem [#allocation2], 40
        %510 = vst.msk [vmem:[%s509] sm:$0xff] %vm470, %v495
        %511 = vst.msk [vmem:[%s509 + $0x8] sm:$0xff] %vm470, %v498
        %512 = vst.msk [vmem:[%s509 + $0x10] sm:$0xff] %vm470, %v501
        %513 = vst.msk [vmem:[%s509 + $0x18] sm:$0xff] %vm470, %v504
        %514 = vst.msk [vmem:[%s509 + $0x20] sm:$0x3] %vm475, %v507
        %515 = vmatpush.msra.mxu0 0.0
        %516 = vmatpush.msra.mxu0 0.0
        %517 = vmatpush.msra.mxu0 0.0
        %518 = vmatpush.msra.mxu0 0.0
        %519 = vmatpush.msra.mxu0 0.0
        %520 = vmatpush.msra.mxu0 0.0
        %521 = vmatpush.msra.mxu0 0.0
        %522 = vmatpush.msra.mxu0 0.0
        %523 = vmatpush.msra.mxu0 0.0
        %524 = vmatpush.msra.mxu0 0.0
        %525 = vmatpush.msra.mxu0 0.0
        %526 = vmatpush.msra.mxu0 0.0
        %527 = vmatpush.msra.mxu0 0.0
        %528 = vmatpush.msra.mxu0 0.0
        %529 = vmatpush.msra.mxu0 %v380
        %530 = vmatpush.msra.mxu0 %v377
        %531 = vmatmul.f32.gmra.mxu0 %v424
        %v532 = vpop.f32.mrf.mxu0
        %v533 = vadd.f32 0.0, %v532
        %534 = vmatmul.f32.gmra.mxu0 %v427
        %v535 = vpop.f32.mrf.mxu0
        %v536 = vadd.f32 0.0, %v535
        %537 = vmatmul.f32.gmra.mxu0 %v430
        %v538 = vpop.f32.mrf.mxu0
        %v539 = vadd.f32 0.0, %v538
        %540 = vmatmul.f32.gmra.mxu0 %v433
        %v541 = vpop.f32.mrf.mxu0
        %v542 = vadd.f32 0.0, %v541
        %543 = vmatmul.f32.gmra.mxu0 %v436
        %v544 = vpop.f32.mrf.mxu0
        %v545 = vadd.f32 0.0, %v544
        %546 = vdwg.mxu0
        %s547 = scalar_lea.vmem [#allocation2], 80
        %548 = vst.msk [vmem:[%s547] sm:$0xff] %vm470, %v533
        %549 = vst.msk [vmem:[%s547 + $0x8] sm:$0xff] %vm470, %v536
        %550 = vst.msk [vmem:[%s547 + $0x10] sm:$0xff] %vm470, %v539
        %551 = vst.msk [vmem:[%s547 + $0x18] sm:$0xff] %vm470, %v542
        %552 = vst.msk [vmem:[%s547 + $0x20] sm:$0x3] %vm475, %v545
        %553 = vmatpush.msra.mxu0 0.0
        %554 = vmatpush.msra.mxu0 0.0
        %555 = vmatpush.msra.mxu0 0.0
        %556 = vmatpush.msra.mxu0 0.0
        %557 = vmatpush.msra.mxu0 0.0
        %558 = vmatpush.msra.mxu0 0.0
        %559 = vmatpush.msra.mxu0 0.0
        %560 = vmatpush.msra.mxu0 0.0
        %561 = vmatpush.msra.mxu0 0.0
        %562 = vmatpush.msra.mxu0 0.0
        %563 = vmatpush.msra.mxu0 0.0
        %564 = vmatpush.msra.mxu0 0.0
        %565 = vmatpush.msra.mxu0 0.0
        %566 = vmatpush.msra.mxu0 0.0
        %567 = vmatpush.msra.mxu0 %v404
        %568 = vmatpush.msra.mxu0 %v401
        %569 = vmatmul.f32.gmra.mxu0 %v424
        %v570 = vpop.f32.mrf.mxu0
        %v571 = vadd.f32 0.0, %v570
        %572 = vmatmul.f32.gmra.mxu0 %v427
        %v573 = vpop.f32.mrf.mxu0
        %v574 = vadd.f32 0.0, %v573
        %575 = vmatmul.f32.gmra.mxu0 %v430
        %v576 = vpop.f32.mrf.mxu0
        %v577 = vadd.f32 0.0, %v576
        %578 = vmatmul.f32.gmra.mxu0 %v433
        %v579 = vpop.f32.mrf.mxu0
        %v580 = vadd.f32 0.0, %v579
        %581 = vmatmul.f32.gmra.mxu0 %v436
        %v582 = vpop.f32.mrf.mxu0
        %v583 = vadd.f32 0.0, %v582
        %584 = vdwg.mxu0
        %s585 = scalar_lea.vmem [#allocation2], 120
        %586 = vst.msk [vmem:[%s585] sm:$0xff] %vm470, %v571
        %587 = vst.msk [vmem:[%s585 + $0x8] sm:$0xff] %vm470, %v574
        %588 = vst.msk [vmem:[%s585 + $0x10] sm:$0xff] %vm470, %v577
        %589 = vst.msk [vmem:[%s585 + $0x18] sm:$0xff] %vm470, %v580
        %590 = vst.msk [vmem:[%s585 + $0x20] sm:$0x3] %vm475, %v583
        %591 = vmatpush.msra.mxu0 0.0
        %592 = vmatpush.msra.mxu0 0.0
        %593 = vmatpush.msra.mxu0 0.0
        %594 = vmatpush.msra.mxu0 0.0
        %595 = vmatpush.msra.mxu0 0.0
        %596 = vmatpush.msra.mxu0 0.0
        %597 = vmatpush.msra.mxu0 0.0
        %598 = vmatpush.msra.mxu0 0.0
        %599 = vmatpush.msra.mxu0 0.0
        %600 = vmatpush.msra.mxu0 0.0
        %601 = vmatpush.msra.mxu0 0.0
        %602 = vmatpush.msra.mxu0 0.0
        %603 = vmatpush.msra.mxu0 0.0
        %604 = vmatpush.msra.mxu0 0.0
        %605 = vmatpush.msra.mxu0 %v386
        %606 = vmatpush.msra.mxu0 %v383
        %607 = vmatmul.f32.gmra.mxu0 %v424
        %v608 = vpop.f32.mrf.mxu0
        %v609 = vadd.f32 0.0, %v608
        %610 = vmatmul.f32.gmra.mxu0 %v427
        %v611 = vpop.f32.mrf.mxu0
        %v612 = vadd.f32 0.0, %v611
        %613 = vmatmul.f32.gmra.mxu0 %v430
        %v614 = vpop.f32.mrf.mxu0
        %v615 = vadd.f32 0.0, %v614
        %616 = vmatmul.f32.gmra.mxu0 %v433
        %v617 = vpop.f32.mrf.mxu0
        %v618 = vadd.f32 0.0, %v617
        %619 = vmatmul.f32.gmra.mxu0 %v436
        %v620 = vpop.f32.mrf.mxu0
        %v621 = vadd.f32 0.0, %v620
        %622 = vdwg.mxu0
        %s623 = scalar_lea.vmem [#allocation2], 160
        %624 = vst.msk [vmem:[%s623] sm:$0xff] %vm470, %v609
        %625 = vst.msk [vmem:[%s623 + $0x8] sm:$0xff] %vm470, %v612
        %626 = vst.msk [vmem:[%s623 + $0x10] sm:$0xff] %vm470, %v615
        %627 = vst.msk [vmem:[%s623 + $0x18] sm:$0xff] %vm470, %v618
        %628 = vst.msk [vmem:[%s623 + $0x20] sm:$0x3] %vm475, %v621
        %629 = vmatpush.msra.mxu0 0.0
        %630 = vmatpush.msra.mxu0 0.0
        %631 = vmatpush.msra.mxu0 0.0
        %632 = vmatpush.msra.mxu0 0.0
        %633 = vmatpush.msra.mxu0 0.0
        %634 = vmatpush.msra.mxu0 0.0
        %635 = vmatpush.msra.mxu0 0.0
        %636 = vmatpush.msra.mxu0 0.0
        %637 = vmatpush.msra.mxu0 0.0
        %638 = vmatpush.msra.mxu0 0.0
        %639 = vmatpush.msra.mxu0 0.0
        %640 = vmatpush.msra.mxu0 0.0
        %641 = vmatpush.msra.mxu0 0.0
        %642 = vmatpush.msra.mxu0 0.0
        %643 = vmatpush.msra.mxu0 %v410
        %644 = vmatpush.msra.mxu0 %v407
        %645 = vmatmul.f32.gmra.mxu0 %v424
        %v646 = vpop.f32.mrf.mxu0
        %v647 = vadd.f32 0.0, %v646
        %648 = vmatmul.f32.gmra.mxu0 %v427
        %v649 = vpop.f32.mrf.mxu0
        %v650 = vadd.f32 0.0, %v649
        %651 = vmatmul.f32.gmra.mxu0 %v430
        %v652 = vpop.f32.mrf.mxu0
        %v653 = vadd.f32 0.0, %v652
        %654 = vmatmul.f32.gmra.mxu0 %v433
        %v655 = vpop.f32.mrf.mxu0
        %v656 = vadd.f32 0.0, %v655
        %657 = vmatmul.f32.gmra.mxu0 %v436
        %v658 = vpop.f32.mrf.mxu0
        %v659 = vadd.f32 0.0, %v658
        %660 = vdwg.mxu0
        %s661 = scalar_lea.vmem [#allocation2], 200
        %662 = vst.msk [vmem:[%s661] sm:$0xff] %vm470, %v647
        %663 = vst.msk [vmem:[%s661 + $0x8] sm:$0xff] %vm470, %v650
        %664 = vst.msk [vmem:[%s661 + $0x10] sm:$0xff] %vm470, %v653
        %665 = vst.msk [vmem:[%s661 + $0x18] sm:$0xff] %vm470, %v656
        %666 = vst.msk [vmem:[%s661 + $0x20] sm:$0x3] %vm475, %v659
        %667 = vmatpush.msra.mxu0 0.0
        %668 = vmatpush.msra.mxu0 0.0
        %669 = vmatpush.msra.mxu0 0.0
        %670 = vmatpush.msra.mxu0 0.0
        %671 = vmatpush.msra.mxu0 0.0
        %672 = vmatpush.msra.mxu0 0.0
        %673 = vmatpush.msra.mxu0 0.0
        %674 = vmatpush.msra.mxu0 0.0
        %675 = vmatpush.msra.mxu0 0.0
        %676 = vmatpush.msra.mxu0 0.0
        %677 = vmatpush.msra.mxu0 0.0
        %678 = vmatpush.msra.mxu0 0.0
        %679 = vmatpush.msra.mxu0 0.0
        %680 = vmatpush.msra.mxu0 0.0
        %681 = vmatpush.msra.mxu0 %v392
        %682 = vmatpush.msra.mxu0 %v389
        %683 = vmatmul.f32.gmra.mxu0 %v424
        %v684 = vpop.f32.mrf.mxu0
        %v685 = vadd.f32 0.0, %v684
        %686 = vmatmul.f32.gmra.mxu0 %v427
        %v687 = vpop.f32.mrf.mxu0
        %v688 = vadd.f32 0.0, %v687
        %689 = vmatmul.f32.gmra.mxu0 %v430
        %v690 = vpop.f32.mrf.mxu0
        %v691 = vadd.f32 0.0, %v690
        %692 = vmatmul.f32.gmra.mxu0 %v433
        %v693 = vpop.f32.mrf.mxu0
        %v694 = vadd.f32 0.0, %v693
        %695 = vmatmul.f32.gmra.mxu0 %v436
        %v696 = vpop.f32.mrf.mxu0
        %v697 = vadd.f32 0.0, %v696
        %698 = vdwg.mxu0
        %s699 = scalar_lea.vmem [#allocation2], 240
        %700 = vst.msk [vmem:[%s699] sm:$0xff] %vm470, %v685
        %701 = vst.msk [vmem:[%s699 + $0x8] sm:$0xff] %vm470, %v688
        %702 = vst.msk [vmem:[%s699 + $0x10] sm:$0xff] %vm470, %v691
        %703 = vst.msk [vmem:[%s699 + $0x18] sm:$0xff] %vm470, %v694
        %704 = vst.msk [vmem:[%s699 + $0x20] sm:$0x3] %vm475, %v697
        %705 = vmatpush.msra.mxu0 0.0
        %706 = vmatpush.msra.mxu0 0.0
        %707 = vmatpush.msra.mxu0 0.0
        %708 = vmatpush.msra.mxu0 0.0
        %709 = vmatpush.msra.mxu0 0.0
        %710 = vmatpush.msra.mxu0 0.0
        %711 = vmatpush.msra.mxu0 0.0
        %712 = vmatpush.msra.mxu0 0.0
        %713 = vmatpush.msra.mxu0 0.0
        %714 = vmatpush.msra.mxu0 0.0
        %715 = vmatpush.msra.mxu0 0.0
        %716 = vmatpush.msra.mxu0 0.0
        %717 = vmatpush.msra.mxu0 0.0
        %718 = vmatpush.msra.mxu0 0.0
        %719 = vmatpush.msra.mxu0 %v416
        %720 = vmatpush.msra.mxu0 %v413
        %721 = vmatmul.f32.gmra.mxu0 %v424
        %v722 = vpop.f32.mrf.mxu0
        %v723 = vadd.f32 0.0, %v722
        %724 = vmatmul.f32.gmra.mxu0 %v427
        %v725 = vpop.f32.mrf.mxu0
        %v726 = vadd.f32 0.0, %v725
        %727 = vmatmul.f32.gmra.mxu0 %v430
        %v728 = vpop.f32.mrf.mxu0
        %v729 = vadd.f32 0.0, %v728
        %730 = vmatmul.f32.gmra.mxu0 %v433
        %v731 = vpop.f32.mrf.mxu0
        %v732 = vadd.f32 0.0, %v731
        %733 = vmatmul.f32.gmra.mxu0 %v436
        %v734 = vpop.f32.mrf.mxu0
        %v735 = vadd.f32 0.0, %v734
        %736 = vdwg.mxu0
        %s737 = scalar_lea.vmem [#allocation2], 280
        %738 = vst.msk [vmem:[%s737] sm:$0xff] %vm470, %v723
        %739 = vst.msk [vmem:[%s737 + $0x8] sm:$0xff] %vm470, %v726
        %740 = vst.msk [vmem:[%s737 + $0x10] sm:$0xff] %vm470, %v729
        %741 = vst.msk [vmem:[%s737 + $0x18] sm:$0xff] %vm470, %v732
        %742 = vst.msk [vmem:[%s737 + $0x20] sm:$0x3] %vm475, %v735
        %vm743 = vcmask 261120
        %744 = vst.msk [vmem:[#allocation3] sm:$0xff] %vm743, 0.0
        %745 = vst.msk [vmem:[#allocation3 + $0x8] sm:$0xff] %vm743, 0.0
        %746 = vst.msk [vmem:[#allocation3 + $0x10] sm:$0xff] %vm743, 0.0
        %747 = vst.msk [vmem:[#allocation3 + $0x18] sm:$0xff] %vm743, 0.0
        %748 = vst.msk [vmem:[#allocation3 + $0x20] sm:$0xff] %vm743, 0.0
        %749 = vst.msk [vmem:[#allocation3 + $0x28] sm:$0xff] %vm743, 0.0
        %750 = vst.msk [vmem:[#allocation3 + $0x30] sm:$0xff] %vm743, 0.0
        %751 = vst.msk [vmem:[#allocation3 + $0x38] sm:$0xff] %vm743, 0.0
        %s752 = smul.u32 %s23, 36
        %s753 = sld [smem:[#allocation8 + %s752]]
        %v754 = vld [vmem:[#allocation2] sm:$0xff]
        %v755 = vld [vmem:[#allocation2 + $0x8] sm:$0xff]
        %v756 = vld [vmem:[#allocation2 + $0x10] sm:$0xff]
        %v757 = vld [vmem:[#allocation2 + $0x18] sm:$0xff]
        %v758 = vld [vmem:[#allocation2 + $0x28] sm:$0xff]
        %v759 = vld [vmem:[#allocation2 + $0x30] sm:$0xff]
        %v760 = vld [vmem:[#allocation2 + $0x38] sm:$0xff]
        %v761 = vld [vmem:[#allocation2 + $0x40] sm:$0xff]
        %v762 = vstv %s753
        %v763 = vmul.f32 %v762, %v754
        %v764 = vmul.f32 %v762, %v755
        %v765 = vmul.f32 %v762, %v756
        %v766 = vmul.f32 %v762, %v757
        %v767 = vmul.f32 %v762, %v758
        %v768 = vmul.f32 %v762, %v759
        %v769 = vmul.f32 %v762, %v760
        %v770 = vmul.f32 %v762, %v761
        %v771 = vadd.f32 %v763, 0.0
        %v772 = vadd.f32 %v764, 0.0
        %v773 = vadd.f32 %v765, 0.0
        %v774 = vadd.f32 %v766, 0.0
        %v775 = vadd.f32 %v767, 0.0
        %v776 = vadd.f32 %v768, 0.0
        %v777 = vadd.f32 %v769, 0.0
        %v778 = vadd.f32 %v770, 0.0
        %s779 = sadd.s32 %s752, 1
        %s780 = sld [smem:[#allocation8 + %s779]]
        %v781 = vstv %s780
        %v782 = vmul.f32 %v781, %v754
        %v783 = vmul.f32 %v781, %v755
        %v784 = vmul.f32 %v781, %v756
        %v785 = vmul.f32 %v781, %v757
        %v786 = vmul.f32 %v781, %v758
        %v787 = vmul.f32 %v781, %v759
        %v788 = vmul.f32 %v781, %v760
        %v789 = vmul.f32 %v781, %v761
        %798 = vrot.lane.b32.xlu0 %v782, 127
        %v799 = vpop.permute.xlu0 %798
        %800 = vrot.lane.b32.xlu0 %v783, 127
        %v801 = vpop.permute.xlu0 %800
        %802 = vrot.lane.b32.xlu0 %v784, 127
        %v803 = vpop.permute.xlu0 %802
        %804 = vrot.lane.b32.xlu0 %v785, 127
        %v805 = vpop.permute.xlu0 %804
        %806 = vrot.lane.b32.xlu0 %v786, 127
        %v807 = vpop.permute.xlu0 %806
        %808 = vrot.lane.b32.xlu0 %v787, 127
        %v809 = vpop.permute.xlu0 %808
        %810 = vrot.lane.b32.xlu0 %v788, 127
        %v811 = vpop.permute.xlu0 %810
        %812 = vrot.lane.b32.xlu0 %v789, 127
        %v813 = vpop.permute.xlu0 %812
        %v822 = vadd.f32 %v771, %v799
        %v823 = vadd.f32 %v772, %v801
        %v824 = vadd.f32 %v773, %v803
        %v825 = vadd.f32 %v774, %v805
        %v826 = vadd.f32 %v775, %v807
        %v827 = vadd.f32 %v776, %v809
        %v828 = vadd.f32 %v777, %v811
        %v829 = vadd.f32 %v778, %v813
        %s830 = sadd.s32 %s752, 2
        %s831 = sld [smem:[#allocation8 + %s830]]
        %v832 = vstv %s831
        %v833 = vmul.f32 %v832, %v754
        %v834 = vmul.f32 %v832, %v755
        %v835 = vmul.f32 %v832, %v756
        %v836 = vmul.f32 %v832, %v757
        %v837 = vmul.f32 %v832, %v758
        %v838 = vmul.f32 %v832, %v759
        %v839 = vmul.f32 %v832, %v760
        %v840 = vmul.f32 %v832, %v761
        %849 = vrot.lane.b32.xlu0 %v833, 126
        %v850 = vpop.permute.xlu0 %849
        %851 = vrot.lane.b32.xlu0 %v834, 126
        %v852 = vpop.permute.xlu0 %851
        %853 = vrot.lane.b32.xlu0 %v835, 126
        %v854 = vpop.permute.xlu0 %853
        %855 = vrot.lane.b32.xlu0 %v836, 126
        %v856 = vpop.permute.xlu0 %855
        %857 = vrot.lane.b32.xlu0 %v837, 126
        %v858 = vpop.permute.xlu0 %857
        %859 = vrot.lane.b32.xlu0 %v838, 126
        %v860 = vpop.permute.xlu0 %859
        %861 = vrot.lane.b32.xlu0 %v839, 126
        %v862 = vpop.permute.xlu0 %861
        %863 = vrot.lane.b32.xlu0 %v840, 126
        %v864 = vpop.permute.xlu0 %863
        %v873 = vadd.f32 %v822, %v850
        %v874 = vadd.f32 %v823, %v852
        %v875 = vadd.f32 %v824, %v854
        %v876 = vadd.f32 %v825, %v856
        %v877 = vadd.f32 %v826, %v858
        %v878 = vadd.f32 %v827, %v860
        %v879 = vadd.f32 %v828, %v862
        %v880 = vadd.f32 %v829, %v864
        %s881 = sadd.s32 %s752, 3
        %s882 = sld [smem:[#allocation8 + %s881]]
        %v883 = vld [vmem:[#allocation2 + $0x1] sm:$0xff]
        %v884 = vld [vmem:[#allocation2 + $0x9] sm:$0xff]
        %v885 = vld [vmem:[#allocation2 + $0x11] sm:$0xff]
        %v886 = vld [vmem:[#allocation2 + $0x19] sm:$0xff]
        %v887 = vld [vmem:[#allocation2 + $0x29] sm:$0xff]
        %v888 = vld [vmem:[#allocation2 + $0x31] sm:$0xff]
        %v889 = vld [vmem:[#allocation2 + $0x39] sm:$0xff]
        %v890 = vld [vmem:[#allocation2 + $0x41] sm:$0xff]
        %v891 = vstv %s882
        %v892 = vmul.f32 %v891, %v883
        %v893 = vmul.f32 %v891, %v884
        %v894 = vmul.f32 %v891, %v885
        %v895 = vmul.f32 %v891, %v886
        %v896 = vmul.f32 %v891, %v887
        %v897 = vmul.f32 %v891, %v888
        %v898 = vmul.f32 %v891, %v889
        %v899 = vmul.f32 %v891, %v890
        %v900 = vadd.f32 %v873, %v892
        %v901 = vadd.f32 %v874, %v893
        %v902 = vadd.f32 %v875, %v894
        %v903 = vadd.f32 %v876, %v895
        %v904 = vadd.f32 %v877, %v896
        %v905 = vadd.f32 %v878, %v897
        %v906 = vadd.f32 %v879, %v898
        %v907 = vadd.f32 %v880, %v899
        %s908 = sadd.s32 %s752, 4
        %s909 = sld [smem:[#allocation8 + %s908]]
        %v910 = vstv %s909
        %v911 = vmul.f32 %v910, %v883
        %v912 = vmul.f32 %v910, %v884
        %v913 = vmul.f32 %v910, %v885
        %v914 = vmul.f32 %v910, %v886
        %v915 = vmul.f32 %v910, %v887
        %v916 = vmul.f32 %v910, %v888
        %v917 = vmul.f32 %v910, %v889
        %v918 = vmul.f32 %v910, %v890
        %927 = vrot.lane.b32.xlu0 %v911, 127
        %v928 = vpop.permute.xlu0 %927
        %929 = vrot.lane.b32.xlu0 %v912, 127
        %v930 = vpop.permute.xlu0 %929
        %931 = vrot.lane.b32.xlu0 %v913, 127
        %v932 = vpop.permute.xlu0 %931
        %933 = vrot.lane.b32.xlu0 %v914, 127
        %v934 = vpop.permute.xlu0 %933
        %935 = vrot.lane.b32.xlu0 %v915, 127
        %v936 = vpop.permute.xlu0 %935
        %937 = vrot.lane.b32.xlu0 %v916, 127
        %v938 = vpop.permute.xlu0 %937
        %939 = vrot.lane.b32.xlu0 %v917, 127
        %v940 = vpop.permute.xlu0 %939
        %941 = vrot.lane.b32.xlu0 %v918, 127
        %v942 = vpop.permute.xlu0 %941
        %v951 = vadd.f32 %v900, %v928
        %v952 = vadd.f32 %v901, %v930
        %v953 = vadd.f32 %v902, %v932
        %v954 = vadd.f32 %v903, %v934
        %v955 = vadd.f32 %v904, %v936
        %v956 = vadd.f32 %v905, %v938
        %v957 = vadd.f32 %v906, %v940
        %v958 = vadd.f32 %v907, %v942
        %s959 = sadd.s32 %s752, 5
        %s960 = sld [smem:[#allocation8 + %s959]]
        %v961 = vstv %s960
        %v962 = vmul.f32 %v961, %v883
        %v963 = vmul.f32 %v961, %v884
        %v964 = vmul.f32 %v961, %v885
        %v965 = vmul.f32 %v961, %v886
        %v966 = vmul.f32 %v961, %v887
        %v967 = vmul.f32 %v961, %v888
        %v968 = vmul.f32 %v961, %v889
        %v969 = vmul.f32 %v961, %v890
        %978 = vrot.lane.b32.xlu0 %v962, 126
        %v979 = vpop.permute.xlu0 %978
        %980 = vrot.lane.b32.xlu0 %v963, 126
        %v981 = vpop.permute.xlu0 %980
        %982 = vrot.lane.b32.xlu0 %v964, 126
        %v983 = vpop.permute.xlu0 %982
        %984 = vrot.lane.b32.xlu0 %v965, 126
        %v985 = vpop.permute.xlu0 %984
        %986 = vrot.lane.b32.xlu0 %v966, 126
        %v987 = vpop.permute.xlu0 %986
        %988 = vrot.lane.b32.xlu0 %v967, 126
        %v989 = vpop.permute.xlu0 %988
        %990 = vrot.lane.b32.xlu0 %v968, 126
        %v991 = vpop.permute.xlu0 %990
        %992 = vrot.lane.b32.xlu0 %v969, 126
        %v993 = vpop.permute.xlu0 %992
        %v1002 = vadd.f32 %v951, %v979
        %v1003 = vadd.f32 %v952, %v981
        %v1004 = vadd.f32 %v953, %v983
        %v1005 = vadd.f32 %v954, %v985
        %v1006 = vadd.f32 %v955, %v987
        %v1007 = vadd.f32 %v956, %v989
        %v1008 = vadd.f32 %v957, %v991
        %v1009 = vadd.f32 %v958, %v993
        %s1010 = sadd.s32 %s752, 6
        %s1011 = sld [smem:[#allocation8 + %s1010]]
        %v1012 = vld [vmem:[#allocation2 + $0x2] sm:$0xff]
        %v1013 = vld [vmem:[#allocation2 + $0xa] sm:$0xff]
        %v1014 = vld [vmem:[#allocation2 + $0x12] sm:$0xff]
        %v1015 = vld [vmem:[#allocation2 + $0x1a] sm:$0xff]
        %v1016 = vld [vmem:[#allocation2 + $0x2a] sm:$0xff]
        %v1017 = vld [vmem:[#allocation2 + $0x32] sm:$0xff]
        %v1018 = vld [vmem:[#allocation2 + $0x3a] sm:$0xff]
        %v1019 = vld [vmem:[#allocation2 + $0x42] sm:$0xff]
        %v1020 = vstv %s1011
        %v1021 = vmul.f32 %v1020, %v1012
        %v1022 = vmul.f32 %v1020, %v1013
        %v1023 = vmul.f32 %v1020, %v1014
        %v1024 = vmul.f32 %v1020, %v1015
        %v1025 = vmul.f32 %v1020, %v1016
        %v1026 = vmul.f32 %v1020, %v1017
        %v1027 = vmul.f32 %v1020, %v1018
        %v1028 = vmul.f32 %v1020, %v1019
        %v1029 = vadd.f32 %v1002, %v1021
        %v1030 = vadd.f32 %v1003, %v1022
        %v1031 = vadd.f32 %v1004, %v1023
        %v1032 = vadd.f32 %v1005, %v1024
        %v1033 = vadd.f32 %v1006, %v1025
        %v1034 = vadd.f32 %v1007, %v1026
        %v1035 = vadd.f32 %v1008, %v1027
        %v1036 = vadd.f32 %v1009, %v1028
        %s1037 = sadd.s32 %s752, 7
        %s1038 = sld [smem:[#allocation8 + %s1037]]
        %v1039 = vstv %s1038
        %v1040 = vmul.f32 %v1039, %v1012
        %v1041 = vmul.f32 %v1039, %v1013
        %v1042 = vmul.f32 %v1039, %v1014
        %v1043 = vmul.f32 %v1039, %v1015
        %v1044 = vmul.f32 %v1039, %v1016
        %v1045 = vmul.f32 %v1039, %v1017
        %v1046 = vmul.f32 %v1039, %v1018
        %v1047 = vmul.f32 %v1039, %v1019
        %1056 = vrot.lane.b32.xlu0 %v1040, 127
        %v1057 = vpop.permute.xlu0 %1056
        %1058 = vrot.lane.b32.xlu0 %v1041, 127
        %v1059 = vpop.permute.xlu0 %1058
        %1060 = vrot.lane.b32.xlu0 %v1042, 127
        %v1061 = vpop.permute.xlu0 %1060
        %1062 = vrot.lane.b32.xlu0 %v1043, 127
        %v1063 = vpop.permute.xlu0 %1062
        %1064 = vrot.lane.b32.xlu0 %v1044, 127
        %v1065 = vpop.permute.xlu0 %1064
        %1066 = vrot.lane.b32.xlu0 %v1045, 127
        %v1067 = vpop.permute.xlu0 %1066
        %1068 = vrot.lane.b32.xlu0 %v1046, 127
        %v1069 = vpop.permute.xlu0 %1068
        %1070 = vrot.lane.b32.xlu0 %v1047, 127
        %v1071 = vpop.permute.xlu0 %1070
        %v1080 = vadd.f32 %v1029, %v1057
        %v1081 = vadd.f32 %v1030, %v1059
        %v1082 = vadd.f32 %v1031, %v1061
        %v1083 = vadd.f32 %v1032, %v1063
        %v1084 = vadd.f32 %v1033, %v1065
        %v1085 = vadd.f32 %v1034, %v1067
        %v1086 = vadd.f32 %v1035, %v1069
        %v1087 = vadd.f32 %v1036, %v1071
        %s1088 = sadd.s32 %s752, 8
        %s1089 = sld [smem:[#allocation8 + %s1088]]
        %v1090 = vstv %s1089
        %v1091 = vmul.f32 %v1090, %v1012
        %v1092 = vmul.f32 %v1090, %v1013
        %v1093 = vmul.f32 %v1090, %v1014
        %v1094 = vmul.f32 %v1090, %v1015
        %v1095 = vmul.f32 %v1090, %v1016
        %v1096 = vmul.f32 %v1090, %v1017
        %v1097 = vmul.f32 %v1090, %v1018
        %v1098 = vmul.f32 %v1090, %v1019
        %1107 = vrot.lane.b32.xlu0 %v1091, 126
        %v1108 = vpop.permute.xlu0 %1107
        %1109 = vrot.lane.b32.xlu0 %v1092, 126
        %v1110 = vpop.permute.xlu0 %1109
        %1111 = vrot.lane.b32.xlu0 %v1093, 126
        %v1112 = vpop.permute.xlu0 %1111
        %1113 = vrot.lane.b32.xlu0 %v1094, 126
        %v1114 = vpop.permute.xlu0 %1113
        %1115 = vrot.lane.b32.xlu0 %v1095, 126
        %v1116 = vpop.permute.xlu0 %1115
        %1117 = vrot.lane.b32.xlu0 %v1096, 126
        %v1118 = vpop.permute.xlu0 %1117
        %1119 = vrot.lane.b32.xlu0 %v1097, 126
        %v1120 = vpop.permute.xlu0 %1119
        %1121 = vrot.lane.b32.xlu0 %v1098, 126
        %v1122 = vpop.permute.xlu0 %1121
        %v1131 = vadd.f32 %v1080, %v1108
        %v1132 = vadd.f32 %v1081, %v1110
        %v1133 = vadd.f32 %v1082, %v1112
        %v1134 = vadd.f32 %v1083, %v1114
        %v1135 = vadd.f32 %v1084, %v1116
        %v1136 = vadd.f32 %v1085, %v1118
        %v1137 = vadd.f32 %v1086, %v1120
        %v1138 = vadd.f32 %v1087, %v1122
        %v1139 = vld [vmem:[#allocation3] sm:$0xff]
        %v1140 = vld [vmem:[#allocation3 + $0x8] sm:$0xff]
        %v1141 = vld [vmem:[#allocation3 + $0x10] sm:$0xff]
        %v1142 = vld [vmem:[#allocation3 + $0x18] sm:$0xff]
        %v1143 = vld [vmem:[#allocation3 + $0x20] sm:$0xff]
        %v1144 = vld [vmem:[#allocation3 + $0x28] sm:$0xff]
        %v1145 = vld [vmem:[#allocation3 + $0x30] sm:$0xff]
        %v1146 = vld [vmem:[#allocation3 + $0x38] sm:$0xff]
        %v1147 = vadd.f32 %v1139, %v1131
        %v1148 = vadd.f32 %v1140, %v1132
        %v1149 = vadd.f32 %v1141, %v1133
        %v1150 = vadd.f32 %v1142, %v1134
        %v1151 = vadd.f32 %v1143, %v1135
        %v1152 = vadd.f32 %v1144, %v1136
        %v1153 = vadd.f32 %v1145, %v1137
        %v1154 = vadd.f32 %v1146, %v1138
        %1155 = vst.msk [vmem:[#allocation3] sm:$0xff] %vm743, %v1147
        %1156 = vst.msk [vmem:[#allocation3 + $0x8] sm:$0xff] %vm743, %v1148
        %1157 = vst.msk [vmem:[#allocation3 + $0x10] sm:$0xff] %vm743, %v1149
        %1158 = vst.msk [vmem:[#allocation3 + $0x18] sm:$0xff] %vm743, %v1150
        %1159 = vst.msk [vmem:[#allocation3 + $0x20] sm:$0xff] %vm743, %v1151
        %1160 = vst.msk [vmem:[#allocation3 + $0x28] sm:$0xff] %vm743, %v1152
        %1161 = vst.msk [vmem:[#allocation3 + $0x30] sm:$0xff] %vm743, %v1153
        %1162 = vst.msk [vmem:[#allocation3 + $0x38] sm:$0xff] %vm743, %v1154
        %s1163 = smul.u32 %s23, 4
        %s1164 = sadd.s32 %s1163, 1
        %s1165 = smul.u32 %s1164, 9
        %s1166 = sld [smem:[#allocation8 + %s1165]]
        %v1167 = vld [vmem:[%s547] sm:$0xff]
        %v1168 = vld [vmem:[%s547 + $0x8] sm:$0xff]
        %v1169 = vld [vmem:[%s547 + $0x10] sm:$0xff]
        %v1170 = vld [vmem:[%s547 + $0x18] sm:$0xff]
        %v1171 = vld [vmem:[%s547 + $0x28] sm:$0xff]
        %v1172 = vld [vmem:[%s547 + $0x30] sm:$0xff]
        %v1173 = vld [vmem:[%s547 + $0x38] sm:$0xff]
        %v1174 = vld [vmem:[%s547 + $0x40] sm:$0xff]
        %v1175 = vstv %s1166
        %v1176 = vmul.f32 %v1175, %v1167
        %v1177 = vmul.f32 %v1175, %v1168
        %v1178 = vmul.f32 %v1175, %v1169
        %v1179 = vmul.f32 %v1175, %v1170
        %v1180 = vmul.f32 %v1175, %v1171
        %v1181 = vmul.f32 %v1175, %v1172
        %v1182 = vmul.f32 %v1175, %v1173
        %v1183 = vmul.f32 %v1175, %v1174
        %v1184 = vadd.f32 %v1176, 0.0
        %v1185 = vadd.f32 %v1177, 0.0
        %v1186 = vadd.f32 %v1178, 0.0
        %v1187 = vadd.f32 %v1179, 0.0
        %v1188 = vadd.f32 %v1180, 0.0
        %v1189 = vadd.f32 %v1181, 0.0
        %v1190 = vadd.f32 %v1182, 0.0
        %v1191 = vadd.f32 %v1183, 0.0
        %s1192 = sadd.s32 %s1165, 1
        %s1193 = sld [smem:[#allocation8 + %s1192]]
        %v1194 = vstv %s1193
        %v1195 = vmul.f32 %v1194, %v1167
        %v1196 = vmul.f32 %v1194, %v1168
        %v1197 = vmul.f32 %v1194, %v1169
        %v1198 = vmul.f32 %v1194, %v1170
        %v1199 = vmul.f32 %v1194, %v1171
        %v1200 = vmul.f32 %v1194, %v1172
        %v1201 = vmul.f32 %v1194, %v1173
        %v1202 = vmul.f32 %v1194, %v1174
        %1211 = vrot.lane.b32.xlu0 %v1195, 127
        %v1212 = vpop.permute.xlu0 %1211
        %1213 = vrot.lane.b32.xlu0 %v1196, 127
        %v1214 = vpop.permute.xlu0 %1213
        %1215 = vrot.lane.b32.xlu0 %v1197, 127
        %v1216 = vpop.permute.xlu0 %1215
        %1217 = vrot.lane.b32.xlu0 %v1198, 127
        %v1218 = vpop.permute.xlu0 %1217
        %1219 = vrot.lane.b32.xlu0 %v1199, 127
        %v1220 = vpop.permute.xlu0 %1219
        %1221 = vrot.lane.b32.xlu0 %v1200, 127
        %v1222 = vpop.permute.xlu0 %1221
        %1223 = vrot.lane.b32.xlu0 %v1201, 127
        %v1224 = vpop.permute.xlu0 %1223
        %1225 = vrot.lane.b32.xlu0 %v1202, 127
        %v1226 = vpop.permute.xlu0 %1225
        %v1235 = vadd.f32 %v1184, %v1212
        %v1236 = vadd.f32 %v1185, %v1214
        %v1237 = vadd.f32 %v1186, %v1216
        %v1238 = vadd.f32 %v1187, %v1218
        %v1239 = vadd.f32 %v1188, %v1220
        %v1240 = vadd.f32 %v1189, %v1222
        %v1241 = vadd.f32 %v1190, %v1224
        %v1242 = vadd.f32 %v1191, %v1226
        %s1243 = sadd.s32 %s1165, 2
        %s1244 = sld [smem:[#allocation8 + %s1243]]
        %v1245 = vstv %s1244
        %v1246 = vmul.f32 %v1245, %v1167
        %v1247 = vmul.f32 %v1245, %v1168
        %v1248 = vmul.f32 %v1245, %v1169
        %v1249 = vmul.f32 %v1245, %v1170
        %v1250 = vmul.f32 %v1245, %v1171
        %v1251 = vmul.f32 %v1245, %v1172
        %v1252 = vmul.f32 %v1245, %v1173
        %v1253 = vmul.f32 %v1245, %v1174
        %1262 = vrot.lane.b32.xlu0 %v1246, 126
        %v1263 = vpop.permute.xlu0 %1262
        %1264 = vrot.lane.b32.xlu0 %v1247, 126
        %v1265 = vpop.permute.xlu0 %1264
        %1266 = vrot.lane.b32.xlu0 %v1248, 126
        %v1267 = vpop.permute.xlu0 %1266
        %1268 = vrot.lane.b32.xlu0 %v1249, 126
        %v1269 = vpop.permute.xlu0 %1268
        %1270 = vrot.lane.b32.xlu0 %v1250, 126
        %v1271 = vpop.permute.xlu0 %1270
        %1272 = vrot.lane.b32.xlu0 %v1251, 126
        %v1273 = vpop.permute.xlu0 %1272
        %1274 = vrot.lane.b32.xlu0 %v1252, 126
        %v1275 = vpop.permute.xlu0 %1274
        %1276 = vrot.lane.b32.xlu0 %v1253, 126
        %v1277 = vpop.permute.xlu0 %1276
        %v1286 = vadd.f32 %v1235, %v1263
        %v1287 = vadd.f32 %v1236, %v1265
        %v1288 = vadd.f32 %v1237, %v1267
        %v1289 = vadd.f32 %v1238, %v1269
        %v1290 = vadd.f32 %v1239, %v1271
        %v1291 = vadd.f32 %v1240, %v1273
        %v1292 = vadd.f32 %v1241, %v1275
        %v1293 = vadd.f32 %v1242, %v1277
        %s1294 = sadd.s32 %s1165, 3
        %s1295 = sld [smem:[#allocation8 + %s1294]]
        %v1296 = vld [vmem:[%s547 + $0x1] sm:$0xff]
        %v1297 = vld [vmem:[%s547 + $0x9] sm:$0xff]
        %v1298 = vld [vmem:[%s547 + $0x11] sm:$0xff]
        %v1299 = vld [vmem:[%s547 + $0x19] sm:$0xff]
        %v1300 = vld [vmem:[%s547 + $0x29] sm:$0xff]
        %v1301 = vld [vmem:[%s547 + $0x31] sm:$0xff]
        %v1302 = vld [vmem:[%s547 + $0x39] sm:$0xff]
        %v1303 = vld [vmem:[%s547 + $0x41] sm:$0xff]
        %v1304 = vstv %s1295
        %v1305 = vmul.f32 %v1304, %v1296
        %v1306 = vmul.f32 %v1304, %v1297
        %v1307 = vmul.f32 %v1304, %v1298
        %v1308 = vmul.f32 %v1304, %v1299
        %v1309 = vmul.f32 %v1304, %v1300
        %v1310 = vmul.f32 %v1304, %v1301
        %v1311 = vmul.f32 %v1304, %v1302
        %v1312 = vmul.f32 %v1304, %v1303
        %v1313 = vadd.f32 %v1286, %v1305
        %v1314 = vadd.f32 %v1287, %v1306
        %v1315 = vadd.f32 %v1288, %v1307
        %v1316 = vadd.f32 %v1289, %v1308
        %v1317 = vadd.f32 %v1290, %v1309
        %v1318 = vadd.f32 %v1291, %v1310
        %v1319 = vadd.f32 %v1292, %v1311
        %v1320 = vadd.f32 %v1293, %v1312
        %s1321 = sadd.s32 %s1165, 4
        %s1322 = sld [smem:[#allocation8 + %s1321]]
        %v1323 = vstv %s1322
        %v1324 = vmul.f32 %v1323, %v1296
        %v1325 = vmul.f32 %v1323, %v1297
        %v1326 = vmul.f32 %v1323, %v1298
        %v1327 = vmul.f32 %v1323, %v1299
        %v1328 = vmul.f32 %v1323, %v1300
        %v1329 = vmul.f32 %v1323, %v1301
        %v1330 = vmul.f32 %v1323, %v1302
        %v1331 = vmul.f32 %v1323, %v1303
        %1340 = vrot.lane.b32.xlu0 %v1324, 127
        %v1341 = vpop.permute.xlu0 %1340
        %1342 = vrot.lane.b32.xlu0 %v1325, 127
        %v1343 = vpop.permute.xlu0 %1342
        %1344 = vrot.lane.b32.xlu0 %v1326, 127
        %v1345 = vpop.permute.xlu0 %1344
        %1346 = vrot.lane.b32.xlu0 %v1327, 127
        %v1347 = vpop.permute.xlu0 %1346
        %1348 = vrot.lane.b32.xlu0 %v1328, 127
        %v1349 = vpop.permute.xlu0 %1348
        %1350 = vrot.lane.b32.xlu0 %v1329, 127
        %v1351 = vpop.permute.xlu0 %1350
        %1352 = vrot.lane.b32.xlu0 %v1330, 127
        %v1353 = vpop.permute.xlu0 %1352
        %1354 = vrot.lane.b32.xlu0 %v1331, 127
        %v1355 = vpop.permute.xlu0 %1354
        %v1364 = vadd.f32 %v1313, %v1341
        %v1365 = vadd.f32 %v1314, %v1343
        %v1366 = vadd.f32 %v1315, %v1345
        %v1367 = vadd.f32 %v1316, %v1347
        %v1368 = vadd.f32 %v1317, %v1349
        %v1369 = vadd.f32 %v1318, %v1351
        %v1370 = vadd.f32 %v1319, %v1353
        %v1371 = vadd.f32 %v1320, %v1355
        %s1372 = sadd.s32 %s1165, 5
        %s1373 = sld [smem:[#allocation8 + %s1372]]
        %v1374 = vstv %s1373
        %v1375 = vmul.f32 %v1374, %v1296
        %v1376 = vmul.f32 %v1374, %v1297
        %v1377 = vmul.f32 %v1374, %v1298
        %v1378 = vmul.f32 %v1374, %v1299
        %v1379 = vmul.f32 %v1374, %v1300
        %v1380 = vmul.f32 %v1374, %v1301
        %v1381 = vmul.f32 %v1374, %v1302
        %v1382 = vmul.f32 %v1374, %v1303
        %1391 = vrot.lane.b32.xlu0 %v1375, 126
        %v1392 = vpop.permute.xlu0 %1391
        %1393 = vrot.lane.b32.xlu0 %v1376, 126
        %v1394 = vpop.permute.xlu0 %1393
        %1395 = vrot.lane.b32.xlu0 %v1377, 126
        %v1396 = vpop.permute.xlu0 %1395
        %1397 = vrot.lane.b32.xlu0 %v1378, 126
        %v1398 = vpop.permute.xlu0 %1397
        %1399 = vrot.lane.b32.xlu0 %v1379, 126
        %v1400 = vpop.permute.xlu0 %1399
        %1401 = vrot.lane.b32.xlu0 %v1380, 126
        %v1402 = vpop.permute.xlu0 %1401
        %1403 = vrot.lane.b32.xlu0 %v1381, 126
        %v1404 = vpop.permute.xlu0 %1403
        %1405 = vrot.lane.b32.xlu0 %v1382, 126
        %v1406 = vpop.permute.xlu0 %1405
        %v1415 = vadd.f32 %v1364, %v1392
        %v1416 = vadd.f32 %v1365, %v1394
        %v1417 = vadd.f32 %v1366, %v1396
        %v1418 = vadd.f32 %v1367, %v1398
        %v1419 = vadd.f32 %v1368, %v1400
        %v1420 = vadd.f32 %v1369, %v1402
        %v1421 = vadd.f32 %v1370, %v1404
        %v1422 = vadd.f32 %v1371, %v1406
        %s1423 = sadd.s32 %s1165, 6
        %s1424 = sld [smem:[#allocation8 + %s1423]]
        %v1425 = vld [vmem:[%s547 + $0x2] sm:$0xff]
        %v1426 = vld [vmem:[%s547 + $0xa] sm:$0xff]
        %v1427 = vld [vmem:[%s547 + $0x12] sm:$0xff]
        %v1428 = vld [vmem:[%s547 + $0x1a] sm:$0xff]
        %v1429 = vld [vmem:[%s547 + $0x2a] sm:$0xff]
        %v1430 = vld [vmem:[%s547 + $0x32] sm:$0xff]
        %v1431 = vld [vmem:[%s547 + $0x3a] sm:$0xff]
        %v1432 = vld [vmem:[%s547 + $0x42] sm:$0xff]
        %v1433 = vstv %s1424
        %v1434 = vmul.f32 %v1433, %v1425
        %v1435 = vmul.f32 %v1433, %v1426
        %v1436 = vmul.f32 %v1433, %v1427
        %v1437 = vmul.f32 %v1433, %v1428
        %v1438 = vmul.f32 %v1433, %v1429
        %v1439 = vmul.f32 %v1433, %v1430
        %v1440 = vmul.f32 %v1433, %v1431
        %v1441 = vmul.f32 %v1433, %v1432
        %v1442 = vadd.f32 %v1415, %v1434
        %v1443 = vadd.f32 %v1416, %v1435
        %v1444 = vadd.f32 %v1417, %v1436
        %v1445 = vadd.f32 %v1418, %v1437
        %v1446 = vadd.f32 %v1419, %v1438
        %v1447 = vadd.f32 %v1420, %v1439
        %v1448 = vadd.f32 %v1421, %v1440
        %v1449 = vadd.f32 %v1422, %v1441
        %s1450 = sadd.s32 %s1165, 7
        %s1451 = sld [smem:[#allocation8 + %s1450]]
        %v1452 = vstv %s1451
        %v1453 = vmul.f32 %v1452, %v1425
        %v1454 = vmul.f32 %v1452, %v1426
        %v1455 = vmul.f32 %v1452, %v1427
        %v1456 = vmul.f32 %v1452, %v1428
        %v1457 = vmul.f32 %v1452, %v1429
        %v1458 = vmul.f32 %v1452, %v1430
        %v1459 = vmul.f32 %v1452, %v1431
        %v1460 = vmul.f32 %v1452, %v1432
        %1469 = vrot.lane.b32.xlu0 %v1453, 127
        %v1470 = vpop.permute.xlu0 %1469
        %1471 = vrot.lane.b32.xlu0 %v1454, 127
        %v1472 = vpop.permute.xlu0 %1471
        %1473 = vrot.lane.b32.xlu0 %v1455, 127
        %v1474 = vpop.permute.xlu0 %1473
        %1475 = vrot.lane.b32.xlu0 %v1456, 127
        %v1476 = vpop.permute.xlu0 %1475
        %1477 = vrot.lane.b32.xlu0 %v1457, 127
        %v1478 = vpop.permute.xlu0 %1477
        %1479 = vrot.lane.b32.xlu0 %v1458, 127
        %v1480 = vpop.permute.xlu0 %1479
        %1481 = vrot.lane.b32.xlu0 %v1459, 127
        %v1482 = vpop.permute.xlu0 %1481
        %1483 = vrot.lane.b32.xlu0 %v1460, 127
        %v1484 = vpop.permute.xlu0 %1483
        %v1493 = vadd.f32 %v1442, %v1470
        %v1494 = vadd.f32 %v1443, %v1472
        %v1495 = vadd.f32 %v1444, %v1474
        %v1496 = vadd.f32 %v1445, %v1476
        %v1497 = vadd.f32 %v1446, %v1478
        %v1498 = vadd.f32 %v1447, %v1480
        %v1499 = vadd.f32 %v1448, %v1482
        %v1500 = vadd.f32 %v1449, %v1484
        %s1501 = sadd.s32 %s1165, 8
        %s1502 = sld [smem:[#allocation8 + %s1501]]
        %v1503 = vstv %s1502
        %v1504 = vmul.f32 %v1503, %v1425
        %v1505 = vmul.f32 %v1503, %v1426
        %v1506 = vmul.f32 %v1503, %v1427
        %v1507 = vmul.f32 %v1503, %v1428
        %v1508 = vmul.f32 %v1503, %v1429
        %v1509 = vmul.f32 %v1503, %v1430
        %v1510 = vmul.f32 %v1503, %v1431
        %v1511 = vmul.f32 %v1503, %v1432
        %1520 = vrot.lane.b32.xlu0 %v1504, 126
        %v1521 = vpop.permute.xlu0 %1520
        %1522 = vrot.lane.b32.xlu0 %v1505, 126
        %v1523 = vpop.permute.xlu0 %1522
        %1524 = vrot.lane.b32.xlu0 %v1506, 126
        %v1525 = vpop.permute.xlu0 %1524
        %1526 = vrot.lane.b32.xlu0 %v1507, 126
        %v1527 = vpop.permute.xlu0 %1526
        %1528 = vrot.lane.b32.xlu0 %v1508, 126
        %v1529 = vpop.permute.xlu0 %1528
        %1530 = vrot.lane.b32.xlu0 %v1509, 126
        %v1531 = vpop.permute.xlu0 %1530
        %1532 = vrot.lane.b32.xlu0 %v1510, 126
        %v1533 = vpop.permute.xlu0 %1532
        %1534 = vrot.lane.b32.xlu0 %v1511, 126
        %v1535 = vpop.permute.xlu0 %1534
        %v1544 = vadd.f32 %v1493, %v1521
        %v1545 = vadd.f32 %v1494, %v1523
        %v1546 = vadd.f32 %v1495, %v1525
        %v1547 = vadd.f32 %v1496, %v1527
        %v1548 = vadd.f32 %v1497, %v1529
        %v1549 = vadd.f32 %v1498, %v1531
        %v1550 = vadd.f32 %v1499, %v1533
        %v1551 = vadd.f32 %v1500, %v1535
        %v1552 = vld [vmem:[#allocation3] sm:$0xff]
        %v1553 = vld [vmem:[#allocation3 + $0x8] sm:$0xff]
        %v1554 = vld [vmem:[#allocation3 + $0x10] sm:$0xff]
        %v1555 = vld [vmem:[#allocation3 + $0x18] sm:$0xff]
        %v1556 = vld [vmem:[#allocation3 + $0x20] sm:$0xff]
        %v1557 = vld [vmem:[#allocation3 + $0x28] sm:$0xff]
        %v1558 = vld [vmem:[#allocation3 + $0x30] sm:$0xff]
        %v1559 = vld [vmem:[#allocation3 + $0x38] sm:$0xff]
        %v1560 = vadd.f32 %v1552, %v1544
        %v1561 = vadd.f32 %v1553, %v1545
        %v1562 = vadd.f32 %v1554, %v1546
        %v1563 = vadd.f32 %v1555, %v1547
        %v1564 = vadd.f32 %v1556, %v1548
        %v1565 = vadd.f32 %v1557, %v1549
        %v1566 = vadd.f32 %v1558, %v1550
        %v1567 = vadd.f32 %v1559, %v1551
        %1568 = vst.msk [vmem:[#allocation3] sm:$0xff] %vm743, %v1560
        %1569 = vst.msk [vmem:[#allocation3 + $0x8] sm:$0xff] %vm743, %v1561
        %1570 = vst.msk [vmem:[#allocation3 + $0x10] sm:$0xff] %vm743, %v1562
        %1571 = vst.msk [vmem:[#allocation3 + $0x18] sm:$0xff] %vm743, %v1563
        %1572 = vst.msk [vmem:[#allocation3 + $0x20] sm:$0xff] %vm743, %v1564
        %1573 = vst.msk [vmem:[#allocation3 + $0x28] sm:$0xff] %vm743, %v1565
        %1574 = vst.msk [vmem:[#allocation3 + $0x30] sm:$0xff] %vm743, %v1566
        %1575 = vst.msk [vmem:[#allocation3 + $0x38] sm:$0xff] %vm743, %v1567
        %s1576 = sadd.s32 %s1163, 2
        %s1577 = smul.u32 %s1576, 9
        %s1578 = sld [smem:[#allocation8 + %s1577]]
        %v1579 = vld [vmem:[%s623] sm:$0xff]
        %v1580 = vld [vmem:[%s623 + $0x8] sm:$0xff]
        %v1581 = vld [vmem:[%s623 + $0x10] sm:$0xff]
        %v1582 = vld [vmem:[%s623 + $0x18] sm:$0xff]
        %v1583 = vld [vmem:[%s623 + $0x28] sm:$0xff]
        %v1584 = vld [vmem:[%s623 + $0x30] sm:$0xff]
        %v1585 = vld [vmem:[%s623 + $0x38] sm:$0xff]
        %v1586 = vld [vmem:[%s623 + $0x40] sm:$0xff]
        %v1587 = vstv %s1578
        %v1588 = vmul.f32 %v1587, %v1579
        %v1589 = vmul.f32 %v1587, %v1580
        %v1590 = vmul.f32 %v1587, %v1581
        %v1591 = vmul.f32 %v1587, %v1582
        %v1592 = vmul.f32 %v1587, %v1583
        %v1593 = vmul.f32 %v1587, %v1584
        %v1594 = vmul.f32 %v1587, %v1585
        %v1595 = vmul.f32 %v1587, %v1586
        %v1596 = vadd.f32 %v1588, 0.0
        %v1597 = vadd.f32 %v1589, 0.0
        %v1598 = vadd.f32 %v1590, 0.0
        %v1599 = vadd.f32 %v1591, 0.0
        %v1600 = vadd.f32 %v1592, 0.0
        %v1601 = vadd.f32 %v1593, 0.0
        %v1602 = vadd.f32 %v1594, 0.0
        %v1603 = vadd.f32 %v1595, 0.0
        %s1604 = sadd.s32 %s1577, 1
        %s1605 = sld [smem:[#allocation8 + %s1604]]
        %v1606 = vstv %s1605
        %v1607 = vmul.f32 %v1606, %v1579
        %v1608 = vmul.f32 %v1606, %v1580
        %v1609 = vmul.f32 %v1606, %v1581
        %v1610 = vmul.f32 %v1606, %v1582
        %v1611 = vmul.f32 %v1606, %v1583
        %v1612 = vmul.f32 %v1606, %v1584
        %v1613 = vmul.f32 %v1606, %v1585
        %v1614 = vmul.f32 %v1606, %v1586
        %1623 = vrot.lane.b32.xlu0 %v1607, 127
        %v1624 = vpop.permute.xlu0 %1623
        %1625 = vrot.lane.b32.xlu0 %v1608, 127
        %v1626 = vpop.permute.xlu0 %1625
        %1627 = vrot.lane.b32.xlu0 %v1609, 127
        %v1628 = vpop.permute.xlu0 %1627
        %1629 = vrot.lane.b32.xlu0 %v1610, 127
        %v1630 = vpop.permute.xlu0 %1629
        %1631 = vrot.lane.b32.xlu0 %v1611, 127
        %v1632 = vpop.permute.xlu0 %1631
        %1633 = vrot.lane.b32.xlu0 %v1612, 127
        %v1634 = vpop.permute.xlu0 %1633
        %1635 = vrot.lane.b32.xlu0 %v1613, 127
        %v1636 = vpop.permute.xlu0 %1635
        %1637 = vrot.lane.b32.xlu0 %v1614, 127
        %v1638 = vpop.permute.xlu0 %1637
        %v1647 = vadd.f32 %v1596, %v1624
        %v1648 = vadd.f32 %v1597, %v1626
        %v1649 = vadd.f32 %v1598, %v1628
        %v1650 = vadd.f32 %v1599, %v1630
        %v1651 = vadd.f32 %v1600, %v1632
        %v1652 = vadd.f32 %v1601, %v1634
        %v1653 = vadd.f32 %v1602, %v1636
        %v1654 = vadd.f32 %v1603, %v1638
        %s1655 = sadd.s32 %s1577, 2
        %s1656 = sld [smem:[#allocation8 + %s1655]]
        %v1657 = vstv %s1656
        %v1658 = vmul.f32 %v1657, %v1579
        %v1659 = vmul.f32 %v1657, %v1580
        %v1660 = vmul.f32 %v1657, %v1581
        %v1661 = vmul.f32 %v1657, %v1582
        %v1662 = vmul.f32 %v1657, %v1583
        %v1663 = vmul.f32 %v1657, %v1584
        %v1664 = vmul.f32 %v1657, %v1585
        %v1665 = vmul.f32 %v1657, %v1586
        %1674 = vrot.lane.b32.xlu0 %v1658, 126
        %v1675 = vpop.permute.xlu0 %1674
        %1676 = vrot.lane.b32.xlu0 %v1659, 126
        %v1677 = vpop.permute.xlu0 %1676
        %1678 = vrot.lane.b32.xlu0 %v1660, 126
        %v1679 = vpop.permute.xlu0 %1678
        %1680 = vrot.lane.b32.xlu0 %v1661, 126
        %v1681 = vpop.permute.xlu0 %1680
        %1682 = vrot.lane.b32.xlu0 %v1662, 126
        %v1683 = vpop.permute.xlu0 %1682
        %1684 = vrot.lane.b32.xlu0 %v1663, 126
        %v1685 = vpop.permute.xlu0 %1684
        %1686 = vrot.lane.b32.xlu0 %v1664, 126
        %v1687 = vpop.permute.xlu0 %1686
        %1688 = vrot.lane.b32.xlu0 %v1665, 126
        %v1689 = vpop.permute.xlu0 %1688
        %v1698 = vadd.f32 %v1647, %v1675
        %v1699 = vadd.f32 %v1648, %v1677
        %v1700 = vadd.f32 %v1649, %v1679
        %v1701 = vadd.f32 %v1650, %v1681
        %v1702 = vadd.f32 %v1651, %v1683
        %v1703 = vadd.f32 %v1652, %v1685
        %v1704 = vadd.f32 %v1653, %v1687
        %v1705 = vadd.f32 %v1654, %v1689
        %s1706 = sadd.s32 %s1577, 3
        %s1707 = sld [smem:[#allocation8 + %s1706]]
        %v1708 = vld [vmem:[%s623 + $0x1] sm:$0xff]
        %v1709 = vld [vmem:[%s623 + $0x9] sm:$0xff]
        %v1710 = vld [vmem:[%s623 + $0x11] sm:$0xff]
        %v1711 = vld [vmem:[%s623 + $0x19] sm:$0xff]
        %v1712 = vld [vmem:[%s623 + $0x29] sm:$0xff]
        %v1713 = vld [vmem:[%s623 + $0x31] sm:$0xff]
        %v1714 = vld [vmem:[%s623 + $0x39] sm:$0xff]
        %v1715 = vld [vmem:[%s623 + $0x41] sm:$0xff]
        %v1716 = vstv %s1707
        %v1717 = vmul.f32 %v1716, %v1708
        %v1718 = vmul.f32 %v1716, %v1709
        %v1719 = vmul.f32 %v1716, %v1710
        %v1720 = vmul.f32 %v1716, %v1711
        %v1721 = vmul.f32 %v1716, %v1712
        %v1722 = vmul.f32 %v1716, %v1713
        %v1723 = vmul.f32 %v1716, %v1714
        %v1724 = vmul.f32 %v1716, %v1715
        %v1725 = vadd.f32 %v1698, %v1717
        %v1726 = vadd.f32 %v1699, %v1718
        %v1727 = vadd.f32 %v1700, %v1719
        %v1728 = vadd.f32 %v1701, %v1720
        %v1729 = vadd.f32 %v1702, %v1721
        %v1730 = vadd.f32 %v1703, %v1722
        %v1731 = vadd.f32 %v1704, %v1723
        %v1732 = vadd.f32 %v1705, %v1724
        %s1733 = sadd.s32 %s1577, 4
        %s1734 = sld [smem:[#allocation8 + %s1733]]
        %v1735 = vstv %s1734
        %v1736 = vmul.f32 %v1735, %v1708
        %v1737 = vmul.f32 %v1735, %v1709
        %v1738 = vmul.f32 %v1735, %v1710
        %v1739 = vmul.f32 %v1735, %v1711
        %v1740 = vmul.f32 %v1735, %v1712
        %v1741 = vmul.f32 %v1735, %v1713
        %v1742 = vmul.f32 %v1735, %v1714
        %v1743 = vmul.f32 %v1735, %v1715
        %1752 = vrot.lane.b32.xlu0 %v1736, 127
        %v1753 = vpop.permute.xlu0 %1752
        %1754 = vrot.lane.b32.xlu0 %v1737, 127
        %v1755 = vpop.permute.xlu0 %1754
        %1756 = vrot.lane.b32.xlu0 %v1738, 127
        %v1757 = vpop.permute.xlu0 %1756
        %1758 = vrot.lane.b32.xlu0 %v1739, 127
        %v1759 = vpop.permute.xlu0 %1758
        %1760 = vrot.lane.b32.xlu0 %v1740, 127
        %v1761 = vpop.permute.xlu0 %1760
        %1762 = vrot.lane.b32.xlu0 %v1741, 127
        %v1763 = vpop.permute.xlu0 %1762
        %1764 = vrot.lane.b32.xlu0 %v1742, 127
        %v1765 = vpop.permute.xlu0 %1764
        %1766 = vrot.lane.b32.xlu0 %v1743, 127
        %v1767 = vpop.permute.xlu0 %1766
        %v1776 = vadd.f32 %v1725, %v1753
        %v1777 = vadd.f32 %v1726, %v1755
        %v1778 = vadd.f32 %v1727, %v1757
        %v1779 = vadd.f32 %v1728, %v1759
        %v1780 = vadd.f32 %v1729, %v1761
        %v1781 = vadd.f32 %v1730, %v1763
        %v1782 = vadd.f32 %v1731, %v1765
        %v1783 = vadd.f32 %v1732, %v1767
        %s1784 = sadd.s32 %s1577, 5
        %s1785 = sld [smem:[#allocation8 + %s1784]]
        %v1786 = vstv %s1785
        %v1787 = vmul.f32 %v1786, %v1708
        %v1788 = vmul.f32 %v1786, %v1709
        %v1789 = vmul.f32 %v1786, %v1710
        %v1790 = vmul.f32 %v1786, %v1711
        %v1791 = vmul.f32 %v1786, %v1712
        %v1792 = vmul.f32 %v1786, %v1713
        %v1793 = vmul.f32 %v1786, %v1714
        %v1794 = vmul.f32 %v1786, %v1715
        %1803 = vrot.lane.b32.xlu0 %v1787, 126
        %v1804 = vpop.permute.xlu0 %1803
        %1805 = vrot.lane.b32.xlu0 %v1788, 126
        %v1806 = vpop.permute.xlu0 %1805
        %1807 = vrot.lane.b32.xlu0 %v1789, 126
        %v1808 = vpop.permute.xlu0 %1807
        %1809 = vrot.lane.b32.xlu0 %v1790, 126
        %v1810 = vpop.permute.xlu0 %1809
        %1811 = vrot.lane.b32.xlu0 %v1791, 126
        %v1812 = vpop.permute.xlu0 %1811
        %1813 = vrot.lane.b32.xlu0 %v1792, 126
        %v1814 = vpop.permute.xlu0 %1813
        %1815 = vrot.lane.b32.xlu0 %v1793, 126
        %v1816 = vpop.permute.xlu0 %1815
        %1817 = vrot.lane.b32.xlu0 %v1794, 126
        %v1818 = vpop.permute.xlu0 %1817
        %v1827 = vadd.f32 %v1776, %v1804
        %v1828 = vadd.f32 %v1777, %v1806
        %v1829 = vadd.f32 %v1778, %v1808
        %v1830 = vadd.f32 %v1779, %v1810
        %v1831 = vadd.f32 %v1780, %v1812
        %v1832 = vadd.f32 %v1781, %v1814
        %v1833 = vadd.f32 %v1782, %v1816
        %v1834 = vadd.f32 %v1783, %v1818
        %s1835 = sadd.s32 %s1577, 6
        %s1836 = sld [smem:[#allocation8 + %s1835]]
        %v1837 = vld [vmem:[%s623 + $0x2] sm:$0xff]
        %v1838 = vld [vmem:[%s623 + $0xa] sm:$0xff]
        %v1839 = vld [vmem:[%s623 + $0x12] sm:$0xff]
        %v1840 = vld [vmem:[%s623 + $0x1a] sm:$0xff]
        %v1841 = vld [vmem:[%s623 + $0x2a] sm:$0xff]
        %v1842 = vld [vmem:[%s623 + $0x32] sm:$0xff]
        %v1843 = vld [vmem:[%s623 + $0x3a] sm:$0xff]
        %v1844 = vld [vmem:[%s623 + $0x42] sm:$0xff]
        %v1845 = vstv %s1836
        %v1846 = vmul.f32 %v1845, %v1837
        %v1847 = vmul.f32 %v1845, %v1838
        %v1848 = vmul.f32 %v1845, %v1839
        %v1849 = vmul.f32 %v1845, %v1840
        %v1850 = vmul.f32 %v1845, %v1841
        %v1851 = vmul.f32 %v1845, %v1842
        %v1852 = vmul.f32 %v1845, %v1843
        %v1853 = vmul.f32 %v1845, %v1844
        %v1854 = vadd.f32 %v1827, %v1846
        %v1855 = vadd.f32 %v1828, %v1847
        %v1856 = vadd.f32 %v1829, %v1848
        %v1857 = vadd.f32 %v1830, %v1849
        %v1858 = vadd.f32 %v1831, %v1850
        %v1859 = vadd.f32 %v1832, %v1851
        %v1860 = vadd.f32 %v1833, %v1852
        %v1861 = vadd.f32 %v1834, %v1853
        %s1862 = sadd.s32 %s1577, 7
        %s1863 = sld [smem:[#allocation8 + %s1862]]
        %v1864 = vstv %s1863
        %v1865 = vmul.f32 %v1864, %v1837
        %v1866 = vmul.f32 %v1864, %v1838
        %v1867 = vmul.f32 %v1864, %v1839
        %v1868 = vmul.f32 %v1864, %v1840
        %v1869 = vmul.f32 %v1864, %v1841
        %v1870 = vmul.f32 %v1864, %v1842
        %v1871 = vmul.f32 %v1864, %v1843
        %v1872 = vmul.f32 %v1864, %v1844
        %1881 = vrot.lane.b32.xlu0 %v1865, 127
        %v1882 = vpop.permute.xlu0 %1881
        %1883 = vrot.lane.b32.xlu0 %v1866, 127
        %v1884 = vpop.permute.xlu0 %1883
        %1885 = vrot.lane.b32.xlu0 %v1867, 127
        %v1886 = vpop.permute.xlu0 %1885
        %1887 = vrot.lane.b32.xlu0 %v1868, 127
        %v1888 = vpop.permute.xlu0 %1887
        %1889 = vrot.lane.b32.xlu0 %v1869, 127
        %v1890 = vpop.permute.xlu0 %1889
        %1891 = vrot.lane.b32.xlu0 %v1870, 127
        %v1892 = vpop.permute.xlu0 %1891
        %1893 = vrot.lane.b32.xlu0 %v1871, 127
        %v1894 = vpop.permute.xlu0 %1893
        %1895 = vrot.lane.b32.xlu0 %v1872, 127
        %v1896 = vpop.permute.xlu0 %1895
        %v1905 = vadd.f32 %v1854, %v1882
        %v1906 = vadd.f32 %v1855, %v1884
        %v1907 = vadd.f32 %v1856, %v1886
        %v1908 = vadd.f32 %v1857, %v1888
        %v1909 = vadd.f32 %v1858, %v1890
        %v1910 = vadd.f32 %v1859, %v1892
        %v1911 = vadd.f32 %v1860, %v1894
        %v1912 = vadd.f32 %v1861, %v1896
        %s1913 = sadd.s32 %s1577, 8
        %s1914 = sld [smem:[#allocation8 + %s1913]]
        %v1915 = vstv %s1914
        %v1916 = vmul.f32 %v1915, %v1837
        %v1917 = vmul.f32 %v1915, %v1838
        %v1918 = vmul.f32 %v1915, %v1839
        %v1919 = vmul.f32 %v1915, %v1840
        %v1920 = vmul.f32 %v1915, %v1841
        %v1921 = vmul.f32 %v1915, %v1842
        %v1922 = vmul.f32 %v1915, %v1843
        %v1923 = vmul.f32 %v1915, %v1844
        %1932 = vrot.lane.b32.xlu0 %v1916, 126
        %v1933 = vpop.permute.xlu0 %1932
        %1934 = vrot.lane.b32.xlu0 %v1917, 126
        %v1935 = vpop.permute.xlu0 %1934
        %1936 = vrot.lane.b32.xlu0 %v1918, 126
        %v1937 = vpop.permute.xlu0 %1936
        %1938 = vrot.lane.b32.xlu0 %v1919, 126
        %v1939 = vpop.permute.xlu0 %1938
        %1940 = vrot.lane.b32.xlu0 %v1920, 126
        %v1941 = vpop.permute.xlu0 %1940
        %1942 = vrot.lane.b32.xlu0 %v1921, 126
        %v1943 = vpop.permute.xlu0 %1942
        %1944 = vrot.lane.b32.xlu0 %v1922, 126
        %v1945 = vpop.permute.xlu0 %1944
        %1946 = vrot.lane.b32.xlu0 %v1923, 126
        %v1947 = vpop.permute.xlu0 %1946
        %v1956 = vadd.f32 %v1905, %v1933
        %v1957 = vadd.f32 %v1906, %v1935
        %v1958 = vadd.f32 %v1907, %v1937
        %v1959 = vadd.f32 %v1908, %v1939
        %v1960 = vadd.f32 %v1909, %v1941
        %v1961 = vadd.f32 %v1910, %v1943
        %v1962 = vadd.f32 %v1911, %v1945
        %v1963 = vadd.f32 %v1912, %v1947
        %v1964 = vld [vmem:[#allocation3] sm:$0xff]
        %v1965 = vld [vmem:[#allocation3 + $0x8] sm:$0xff]
        %v1966 = vld [vmem:[#allocation3 + $0x10] sm:$0xff]
        %v1967 = vld [vmem:[#allocation3 + $0x18] sm:$0xff]
        %v1968 = vld [vmem:[#allocation3 + $0x20] sm:$0xff]
        %v1969 = vld [vmem:[#allocation3 + $0x28] sm:$0xff]
        %v1970 = vld [vmem:[#allocation3 + $0x30] sm:$0xff]
        %v1971 = vld [vmem:[#allocation3 + $0x38] sm:$0xff]
        %v1972 = vadd.f32 %v1964, %v1956
        %v1973 = vadd.f32 %v1965, %v1957
        %v1974 = vadd.f32 %v1966, %v1958
        %v1975 = vadd.f32 %v1967, %v1959
        %v1976 = vadd.f32 %v1968, %v1960
        %v1977 = vadd.f32 %v1969, %v1961
        %v1978 = vadd.f32 %v1970, %v1962
        %v1979 = vadd.f32 %v1971, %v1963
        %1980 = vst.msk [vmem:[#allocation3] sm:$0xff] %vm743, %v1972
        %1981 = vst.msk [vmem:[#allocation3 + $0x8] sm:$0xff] %vm743, %v1973
        %1982 = vst.msk [vmem:[#allocation3 + $0x10] sm:$0xff] %vm743, %v1974
        %1983 = vst.msk [vmem:[#allocation3 + $0x18] sm:$0xff] %vm743, %v1975
        %1984 = vst.msk [vmem:[#allocation3 + $0x20] sm:$0xff] %vm743, %v1976
        %1985 = vst.msk [vmem:[#allocation3 + $0x28] sm:$0xff] %vm743, %v1977
        %1986 = vst.msk [vmem:[#allocation3 + $0x30] sm:$0xff] %vm743, %v1978
        %1987 = vst.msk [vmem:[#allocation3 + $0x38] sm:$0xff] %vm743, %v1979
        %s1988 = sadd.s32 %s1163, 3
        %s1989 = smul.u32 %s1988, 9
        %s1990 = sld [smem:[#allocation8 + %s1989]]
        %v1991 = vld [vmem:[%s699] sm:$0xff]
        %v1992 = vld [vmem:[%s699 + $0x8] sm:$0xff]
        %v1993 = vld [vmem:[%s699 + $0x10] sm:$0xff]
        %v1994 = vld [vmem:[%s699 + $0x18] sm:$0xff]
        %v1995 = vld [vmem:[%s699 + $0x28] sm:$0xff]
        %v1996 = vld [vmem:[%s699 + $0x30] sm:$0xff]
        %v1997 = vld [vmem:[%s699 + $0x38] sm:$0xff]
        %v1998 = vld [vmem:[%s699 + $0x40] sm:$0xff]
        %v1999 = vstv %s1990
        %v2000 = vmul.f32 %v1999, %v1991
        %v2001 = vmul.f32 %v1999, %v1992
        %v2002 = vmul.f32 %v1999, %v1993
        %v2003 = vmul.f32 %v1999, %v1994
        %v2004 = vmul.f32 %v1999, %v1995
        %v2005 = vmul.f32 %v1999, %v1996
        %v2006 = vmul.f32 %v1999, %v1997
        %v2007 = vmul.f32 %v1999, %v1998
        %v2008 = vadd.f32 %v2000, 0.0
        %v2009 = vadd.f32 %v2001, 0.0
        %v2010 = vadd.f32 %v2002, 0.0
        %v2011 = vadd.f32 %v2003, 0.0
        %v2012 = vadd.f32 %v2004, 0.0
        %v2013 = vadd.f32 %v2005, 0.0
        %v2014 = vadd.f32 %v2006, 0.0
        %v2015 = vadd.f32 %v2007, 0.0
        %s2016 = sadd.s32 %s1989, 1
        %s2017 = sld [smem:[#allocation8 + %s2016]]
        %v2018 = vstv %s2017
        %v2019 = vmul.f32 %v2018, %v1991
        %v2020 = vmul.f32 %v2018, %v1992
        %v2021 = vmul.f32 %v2018, %v1993
        %v2022 = vmul.f32 %v2018, %v1994
        %v2023 = vmul.f32 %v2018, %v1995
        %v2024 = vmul.f32 %v2018, %v1996
        %v2025 = vmul.f32 %v2018, %v1997
        %v2026 = vmul.f32 %v2018, %v1998
        %2035 = vrot.lane.b32.xlu0 %v2019, 127
        %v2036 = vpop.permute.xlu0 %2035
        %2037 = vrot.lane.b32.xlu0 %v2020, 127
        %v2038 = vpop.permute.xlu0 %2037
        %2039 = vrot.lane.b32.xlu0 %v2021, 127
        %v2040 = vpop.permute.xlu0 %2039
        %2041 = vrot.lane.b32.xlu0 %v2022, 127
        %v2042 = vpop.permute.xlu0 %2041
        %2043 = vrot.lane.b32.xlu0 %v2023, 127
        %v2044 = vpop.permute.xlu0 %2043
        %2045 = vrot.lane.b32.xlu0 %v2024, 127
        %v2046 = vpop.permute.xlu0 %2045
        %2047 = vrot.lane.b32.xlu0 %v2025, 127
        %v2048 = vpop.permute.xlu0 %2047
        %2049 = vrot.lane.b32.xlu0 %v2026, 127
        %v2050 = vpop.permute.xlu0 %2049
        %v2059 = vadd.f32 %v2008, %v2036
        %v2060 = vadd.f32 %v2009, %v2038
        %v2061 = vadd.f32 %v2010, %v2040
        %v2062 = vadd.f32 %v2011, %v2042
        %v2063 = vadd.f32 %v2012, %v2044
        %v2064 = vadd.f32 %v2013, %v2046
        %v2065 = vadd.f32 %v2014, %v2048
        %v2066 = vadd.f32 %v2015, %v2050
        %s2067 = sadd.s32 %s1989, 2
        %s2068 = sld [smem:[#allocation8 + %s2067]]
        %v2069 = vstv %s2068
        %v2070 = vmul.f32 %v2069, %v1991
        %v2071 = vmul.f32 %v2069, %v1992
        %v2072 = vmul.f32 %v2069, %v1993
        %v2073 = vmul.f32 %v2069, %v1994
        %v2074 = vmul.f32 %v2069, %v1995
        %v2075 = vmul.f32 %v2069, %v1996
        %v2076 = vmul.f32 %v2069, %v1997
        %v2077 = vmul.f32 %v2069, %v1998
        %2086 = vrot.lane.b32.xlu0 %v2070, 126
        %v2087 = vpop.permute.xlu0 %2086
        %2088 = vrot.lane.b32.xlu0 %v2071, 126
        %v2089 = vpop.permute.xlu0 %2088
        %2090 = vrot.lane.b32.xlu0 %v2072, 126
        %v2091 = vpop.permute.xlu0 %2090
        %2092 = vrot.lane.b32.xlu0 %v2073, 126
        %v2093 = vpop.permute.xlu0 %2092
        %2094 = vrot.lane.b32.xlu0 %v2074, 126
        %v2095 = vpop.permute.xlu0 %2094
        %2096 = vrot.lane.b32.xlu0 %v2075, 126
        %v2097 = vpop.permute.xlu0 %2096
        %2098 = vrot.lane.b32.xlu0 %v2076, 126
        %v2099 = vpop.permute.xlu0 %2098
        %2100 = vrot.lane.b32.xlu0 %v2077, 126
        %v2101 = vpop.permute.xlu0 %2100
        %v2110 = vadd.f32 %v2059, %v2087
        %v2111 = vadd.f32 %v2060, %v2089
        %v2112 = vadd.f32 %v2061, %v2091
        %v2113 = vadd.f32 %v2062, %v2093
        %v2114 = vadd.f32 %v2063, %v2095
        %v2115 = vadd.f32 %v2064, %v2097
        %v2116 = vadd.f32 %v2065, %v2099
        %v2117 = vadd.f32 %v2066, %v2101
        %s2118 = sadd.s32 %s1989, 3
        %s2119 = sld [smem:[#allocation8 + %s2118]]
        %v2120 = vld [vmem:[%s699 + $0x1] sm:$0xff]
        %v2121 = vld [vmem:[%s699 + $0x9] sm:$0xff]
        %v2122 = vld [vmem:[%s699 + $0x11] sm:$0xff]
        %v2123 = vld [vmem:[%s699 + $0x19] sm:$0xff]
        %v2124 = vld [vmem:[%s699 + $0x29] sm:$0xff]
        %v2125 = vld [vmem:[%s699 + $0x31] sm:$0xff]
        %v2126 = vld [vmem:[%s699 + $0x39] sm:$0xff]
        %v2127 = vld [vmem:[%s699 + $0x41] sm:$0xff]
        %v2128 = vstv %s2119
        %v2129 = vmul.f32 %v2128, %v2120
        %v2130 = vmul.f32 %v2128, %v2121
        %v2131 = vmul.f32 %v2128, %v2122
        %v2132 = vmul.f32 %v2128, %v2123
        %v2133 = vmul.f32 %v2128, %v2124
        %v2134 = vmul.f32 %v2128, %v2125
        %v2135 = vmul.f32 %v2128, %v2126
        %v2136 = vmul.f32 %v2128, %v2127
        %v2137 = vadd.f32 %v2110, %v2129
        %v2138 = vadd.f32 %v2111, %v2130
        %v2139 = vadd.f32 %v2112, %v2131
        %v2140 = vadd.f32 %v2113, %v2132
        %v2141 = vadd.f32 %v2114, %v2133
        %v2142 = vadd.f32 %v2115, %v2134
        %v2143 = vadd.f32 %v2116, %v2135
        %v2144 = vadd.f32 %v2117, %v2136
        %s2145 = sadd.s32 %s1989, 4
        %s2146 = sld [smem:[#allocation8 + %s2145]]
        %v2147 = vstv %s2146
        %v2148 = vmul.f32 %v2147, %v2120
        %v2149 = vmul.f32 %v2147, %v2121
        %v2150 = vmul.f32 %v2147, %v2122
        %v2151 = vmul.f32 %v2147, %v2123
        %v2152 = vmul.f32 %v2147, %v2124
        %v2153 = vmul.f32 %v2147, %v2125
        %v2154 = vmul.f32 %v2147, %v2126
        %v2155 = vmul.f32 %v2147, %v2127
        %2164 = vrot.lane.b32.xlu0 %v2148, 127
        %v2165 = vpop.permute.xlu0 %2164
        %2166 = vrot.lane.b32.xlu0 %v2149, 127
        %v2167 = vpop.permute.xlu0 %2166
        %2168 = vrot.lane.b32.xlu0 %v2150, 127
        %v2169 = vpop.permute.xlu0 %2168
        %2170 = vrot.lane.b32.xlu0 %v2151, 127
        %v2171 = vpop.permute.xlu0 %2170
        %2172 = vrot.lane.b32.xlu0 %v2152, 127
        %v2173 = vpop.permute.xlu0 %2172
        %2174 = vrot.lane.b32.xlu0 %v2153, 127
        %v2175 = vpop.permute.xlu0 %2174
        %2176 = vrot.lane.b32.xlu0 %v2154, 127
        %v2177 = vpop.permute.xlu0 %2176
        %2178 = vrot.lane.b32.xlu0 %v2155, 127
        %v2179 = vpop.permute.xlu0 %2178
        %v2188 = vadd.f32 %v2137, %v2165
        %v2189 = vadd.f32 %v2138, %v2167
        %v2190 = vadd.f32 %v2139, %v2169
        %v2191 = vadd.f32 %v2140, %v2171
        %v2192 = vadd.f32 %v2141, %v2173
        %v2193 = vadd.f32 %v2142, %v2175
        %v2194 = vadd.f32 %v2143, %v2177
        %v2195 = vadd.f32 %v2144, %v2179
        %s2196 = sadd.s32 %s1989, 5
        %s2197 = sld [smem:[#allocation8 + %s2196]]
        %v2198 = vstv %s2197
        %v2199 = vmul.f32 %v2198, %v2120
        %v2200 = vmul.f32 %v2198, %v2121
        %v2201 = vmul.f32 %v2198, %v2122
        %v2202 = vmul.f32 %v2198, %v2123
        %v2203 = vmul.f32 %v2198, %v2124
        %v2204 = vmul.f32 %v2198, %v2125
        %v2205 = vmul.f32 %v2198, %v2126
        %v2206 = vmul.f32 %v2198, %v2127
        %2215 = vrot.lane.b32.xlu0 %v2199, 126
        %v2216 = vpop.permute.xlu0 %2215
        %2217 = vrot.lane.b32.xlu0 %v2200, 126
        %v2218 = vpop.permute.xlu0 %2217
        %2219 = vrot.lane.b32.xlu0 %v2201, 126
        %v2220 = vpop.permute.xlu0 %2219
        %2221 = vrot.lane.b32.xlu0 %v2202, 126
        %v2222 = vpop.permute.xlu0 %2221
        %2223 = vrot.lane.b32.xlu0 %v2203, 126
        %v2224 = vpop.permute.xlu0 %2223
        %2225 = vrot.lane.b32.xlu0 %v2204, 126
        %v2226 = vpop.permute.xlu0 %2225
        %2227 = vrot.lane.b32.xlu0 %v2205, 126
        %v2228 = vpop.permute.xlu0 %2227
        %2229 = vrot.lane.b32.xlu0 %v2206, 126
        %v2230 = vpop.permute.xlu0 %2229
        %v2239 = vadd.f32 %v2188, %v2216
        %v2240 = vadd.f32 %v2189, %v2218
        %v2241 = vadd.f32 %v2190, %v2220
        %v2242 = vadd.f32 %v2191, %v2222
        %v2243 = vadd.f32 %v2192, %v2224
        %v2244 = vadd.f32 %v2193, %v2226
        %v2245 = vadd.f32 %v2194, %v2228
        %v2246 = vadd.f32 %v2195, %v2230
        %s2247 = sadd.s32 %s1989, 6
        %s2248 = sld [smem:[#allocation8 + %s2247]]
        %v2249 = vld [vmem:[%s699 + $0x2] sm:$0xff]
        %v2250 = vld [vmem:[%s699 + $0xa] sm:$0xff]
        %v2251 = vld [vmem:[%s699 + $0x12] sm:$0xff]
        %v2252 = vld [vmem:[%s699 + $0x1a] sm:$0xff]
        %v2253 = vld [vmem:[%s699 + $0x2a] sm:$0xff]
        %v2254 = vld [vmem:[%s699 + $0x32] sm:$0xff]
        %v2255 = vld [vmem:[%s699 + $0x3a] sm:$0xff]
        %v2256 = vld [vmem:[%s699 + $0x42] sm:$0xff]
        %v2257 = vstv %s2248
        %v2258 = vmul.f32 %v2257, %v2249
        %v2259 = vmul.f32 %v2257, %v2250
        %v2260 = vmul.f32 %v2257, %v2251
        %v2261 = vmul.f32 %v2257, %v2252
        %v2262 = vmul.f32 %v2257, %v2253
        %v2263 = vmul.f32 %v2257, %v2254
        %v2264 = vmul.f32 %v2257, %v2255
        %v2265 = vmul.f32 %v2257, %v2256
        %v2266 = vadd.f32 %v2239, %v2258
        %v2267 = vadd.f32 %v2240, %v2259
        %v2268 = vadd.f32 %v2241, %v2260
        %v2269 = vadd.f32 %v2242, %v2261
        %v2270 = vadd.f32 %v2243, %v2262
        %v2271 = vadd.f32 %v2244, %v2263
        %v2272 = vadd.f32 %v2245, %v2264
        %v2273 = vadd.f32 %v2246, %v2265
        %s2274 = sadd.s32 %s1989, 7
        %s2275 = sld [smem:[#allocation8 + %s2274]]
        %v2276 = vstv %s2275
        %v2277 = vmul.f32 %v2276, %v2249
        %v2278 = vmul.f32 %v2276, %v2250
        %v2279 = vmul.f32 %v2276, %v2251
        %v2280 = vmul.f32 %v2276, %v2252
        %v2281 = vmul.f32 %v2276, %v2253
        %v2282 = vmul.f32 %v2276, %v2254
        %v2283 = vmul.f32 %v2276, %v2255
        %v2284 = vmul.f32 %v2276, %v2256
        %2293 = vrot.lane.b32.xlu0 %v2277, 127
        %v2294 = vpop.permute.xlu0 %2293
        %2295 = vrot.lane.b32.xlu0 %v2278, 127
        %v2296 = vpop.permute.xlu0 %2295
        %2297 = vrot.lane.b32.xlu0 %v2279, 127
        %v2298 = vpop.permute.xlu0 %2297
        %2299 = vrot.lane.b32.xlu0 %v2280, 127
        %v2300 = vpop.permute.xlu0 %2299
        %2301 = vrot.lane.b32.xlu0 %v2281, 127
        %v2302 = vpop.permute.xlu0 %2301
        %2303 = vrot.lane.b32.xlu0 %v2282, 127
        %v2304 = vpop.permute.xlu0 %2303
        %2305 = vrot.lane.b32.xlu0 %v2283, 127
        %v2306 = vpop.permute.xlu0 %2305
        %2307 = vrot.lane.b32.xlu0 %v2284, 127
        %v2308 = vpop.permute.xlu0 %2307
        %v2317 = vadd.f32 %v2266, %v2294
        %v2318 = vadd.f32 %v2267, %v2296
        %v2319 = vadd.f32 %v2268, %v2298
        %v2320 = vadd.f32 %v2269, %v2300
        %v2321 = vadd.f32 %v2270, %v2302
        %v2322 = vadd.f32 %v2271, %v2304
        %v2323 = vadd.f32 %v2272, %v2306
        %v2324 = vadd.f32 %v2273, %v2308
        %s2325 = sadd.s32 %s1989, 8
        %s2326 = sld [smem:[#allocation8 + %s2325]]
        %v2327 = vstv %s2326
        %v2328 = vmul.f32 %v2327, %v2249
        %v2329 = vmul.f32 %v2327, %v2250
        %v2330 = vmul.f32 %v2327, %v2251
        %v2331 = vmul.f32 %v2327, %v2252
        %v2332 = vmul.f32 %v2327, %v2253
        %v2333 = vmul.f32 %v2327, %v2254
        %v2334 = vmul.f32 %v2327, %v2255
        %v2335 = vmul.f32 %v2327, %v2256
        %2344 = vrot.lane.b32.xlu0 %v2328, 126
        %v2345 = vpop.permute.xlu0 %2344
        %2346 = vrot.lane.b32.xlu0 %v2329, 126
        %v2347 = vpop.permute.xlu0 %2346
        %2348 = vrot.lane.b32.xlu0 %v2330, 126
        %v2349 = vpop.permute.xlu0 %2348
        %2350 = vrot.lane.b32.xlu0 %v2331, 126
        %v2351 = vpop.permute.xlu0 %2350
        %2352 = vrot.lane.b32.xlu0 %v2332, 126
        %v2353 = vpop.permute.xlu0 %2352
        %2354 = vrot.lane.b32.xlu0 %v2333, 126
        %v2355 = vpop.permute.xlu0 %2354
        %2356 = vrot.lane.b32.xlu0 %v2334, 126
        %v2357 = vpop.permute.xlu0 %2356
        %2358 = vrot.lane.b32.xlu0 %v2335, 126
        %v2359 = vpop.permute.xlu0 %2358
        %v2368 = vadd.f32 %v2317, %v2345
        %v2369 = vadd.f32 %v2318, %v2347
        %v2370 = vadd.f32 %v2319, %v2349
        %v2371 = vadd.f32 %v2320, %v2351
        %v2372 = vadd.f32 %v2321, %v2353
        %v2373 = vadd.f32 %v2322, %v2355
        %v2374 = vadd.f32 %v2323, %v2357
        %v2375 = vadd.f32 %v2324, %v2359
        %v2376 = vld [vmem:[#allocation3] sm:$0xff]
        %v2377 = vld [vmem:[#allocation3 + $0x8] sm:$0xff]
        %v2378 = vld [vmem:[#allocation3 + $0x10] sm:$0xff]
        %v2379 = vld [vmem:[#allocation3 + $0x18] sm:$0xff]
        %v2380 = vld [vmem:[#allocation3 + $0x20] sm:$0xff]
        %v2381 = vld [vmem:[#allocation3 + $0x28] sm:$0xff]
        %v2382 = vld [vmem:[#allocation3 + $0x30] sm:$0xff]
        %v2383 = vld [vmem:[#allocation3 + $0x38] sm:$0xff]
        %v2384 = vadd.f32 %v2376, %v2368
        %v2385 = vadd.f32 %v2377, %v2369
        %v2386 = vadd.f32 %v2378, %v2370
        %v2387 = vadd.f32 %v2379, %v2371
        %v2388 = vadd.f32 %v2380, %v2372
        %v2389 = vadd.f32 %v2381, %v2373
        %v2390 = vadd.f32 %v2382, %v2374
        %v2391 = vadd.f32 %v2383, %v2375
        %2392 = vst.msk [vmem:[#allocation3] sm:$0xff] %vm743, %v2384
        %2393 = vst.msk [vmem:[#allocation3 + $0x8] sm:$0xff] %vm743, %v2385
        %2394 = vst.msk [vmem:[#allocation3 + $0x10] sm:$0xff] %vm743, %v2386
        %2395 = vst.msk [vmem:[#allocation3 + $0x18] sm:$0xff] %vm743, %v2387
        %2396 = vst.msk [vmem:[#allocation3 + $0x20] sm:$0xff] %vm743, %v2388
        %2397 = vst.msk [vmem:[#allocation3 + $0x28] sm:$0xff] %vm743, %v2389
        %2398 = vst.msk [vmem:[#allocation3 + $0x30] sm:$0xff] %vm743, %v2390
        %2399 = vst.msk [vmem:[#allocation3 + $0x38] sm:$0xff] %vm743, %v2391
        %v2400 = vld [vmem:[#allocation3] sm:$0xff]
        %v2401 = vld [vmem:[#allocation3 + $0x8] sm:$0xff]
        %v2402 = vld [vmem:[#allocation3 + $0x10] sm:$0xff]
        %v2403 = vld [vmem:[#allocation3 + $0x18] sm:$0xff]
        %v2404 = vld [vmem:[#allocation3 + $0x20] sm:$0xff]
        %v2405 = vld [vmem:[#allocation3 + $0x28] sm:$0xff]
        %v2406 = vld [vmem:[#allocation3 + $0x30] sm:$0xff]
        %v2407 = vld [vmem:[#allocation3 + $0x38] sm:$0xff]
        %v2408 = vsel %vm743, %v2400, 0.0
        %v2409 = vsel %vm743, %v2401, 0.0
        %v2410 = vadd.f32 %v2408, %v2409
        %v2411 = vsel %vm743, %v2402, 0.0
        %v2412 = vadd.f32 %v2410, %v2411
        %v2413 = vsel %vm743, %v2403, 0.0
        %v2414 = vadd.f32 %v2412, %v2413
        %v2415 = vsel %vm743, %v2404, 0.0
        %v2416 = vadd.f32 %v2414, %v2415
        %v2417 = vsel %vm743, %v2405, 0.0
        %v2418 = vadd.f32 %v2416, %v2417
        %v2419 = vsel %vm743, %v2406, 0.0
        %v2420 = vadd.f32 %v2418, %v2419
        %v2421 = vsel %vm743, %v2407, 0.0
        %v2422 = vadd.f32 %v2420, %v2421
        %2423 = vadd.xlane.f32.xlu0 %v2422
        %v2424 = vpop.xlane.xlu0 %2423
        %v2425 = vrot.slane %v2424, 4
        %v2426 = vadd.f32 %v2424, %v2425
        %v2427 = vrot.slane %v2426, 2
        %v2428 = vadd.f32 %v2426, %v2427
        %v2429 = vrot.slane %v2428, 1
        %v2430 = vadd.f32 %v2428, %v2429
        %s2431 = vtos %v2430
        %v2432 = vrcp.pop 2048.0
        %v2433 = vmul.f32 2048.0, %v2432
        %v2434 = vsub.f32 1.0, %v2433
        %v2435 = vmul.f32 %v2432, %v2434
        %v2436 = vadd.f32 %v2432, %v2435
        %vm2437 = vweird.f32 %v2432
        %v2438 = vsel %vm2437, %v2432, %v2436
        %s2439 = vtos %v2438
        %s2440 = smul.f32 %s2431, %s2439
        %v2441 = vstv %s2440
        %v2442 = vsub.f32 %v2400, %v2441
        %v2443 = vsub.f32 %v2401, %v2441
        %v2444 = vsub.f32 %v2402, %v2441
        %v2445 = vsub.f32 %v2403, %v2441
        %v2446 = vsub.f32 %v2404, %v2441
        %v2447 = vsub.f32 %v2405, %v2441
        %v2448 = vsub.f32 %v2406, %v2441
        %v2449 = vsub.f32 %v2407, %v2441
        %v2450 = vmul.f32 %v2442, %v2442
        %v2451 = vmul.f32 %v2443, %v2443
        %v2452 = vmul.f32 %v2444, %v2444
        %v2453 = vmul.f32 %v2445, %v2445
        %v2454 = vmul.f32 %v2446, %v2446
        %v2455 = vmul.f32 %v2447, %v2447
        %v2456 = vmul.f32 %v2448, %v2448
        %v2457 = vmul.f32 %v2449, %v2449
        %v2458 = vsel %vm743, %v2450, 0.0
        %v2459 = vsel %vm743, %v2451, 0.0
        %v2460 = vadd.f32 %v2458, %v2459
        %v2461 = vsel %vm743, %v2452, 0.0
        %v2462 = vadd.f32 %v2460, %v2461
        %v2463 = vsel %vm743, %v2453, 0.0
        %v2464 = vadd.f32 %v2462, %v2463
        %v2465 = vsel %vm743, %v2454, 0.0
        %v2466 = vadd.f32 %v2464, %v2465
        %v2467 = vsel %vm743, %v2455, 0.0
        %v2468 = vadd.f32 %v2466, %v2467
        %v2469 = vsel %vm743, %v2456, 0.0
        %v2470 = vadd.f32 %v2468, %v2469
        %v2471 = vsel %vm743, %v2457, 0.0
        %v2472 = vadd.f32 %v2470, %v2471
        %2473 = vadd.xlane.f32.xlu0 %v2472
        %v2474 = vpop.xlane.xlu0 %2473
        %v2475 = vrot.slane %v2474, 4
        %v2476 = vadd.f32 %v2474, %v2475
        %v2477 = vrot.slane %v2476, 2
        %v2478 = vadd.f32 %v2476, %v2477
        %v2479 = vrot.slane %v2478, 1
        %v2480 = vadd.f32 %v2478, %v2479
        %s2481 = vtos %v2480
        %v2482 = vrcp.pop 2048.0
        %v2483 = vmul.f32 2048.0, %v2482
        %v2484 = vsub.f32 1.0, %v2483
        %v2485 = vmul.f32 %v2482, %v2484
        %v2486 = vadd.f32 %v2482, %v2485
        %vm2487 = vweird.f32 %v2482
        %v2488 = vsel %vm2487, %v2482, %v2486
        %s2489 = vtos %v2488
        %s2490 = smul.f32 %s2481, %s2489
        %s2491 = sld [smem:[#allocation9 + %s23]]
        %s2492 = sadd.f32 %s2490, 1e-05
        %v2493 = vstv %s2492
        %v2494 = vrsqrt.pop %v2493
        %v2495 = vmul.f32 %v2494, %v2493
        %v2496 = vmul.f32 %v2495, %v2494
        %v2497 = vmul.f32 0.5, %v2496
        %v2498 = vsub.f32 1.5, %v2497
        %v2499 = vmul.f32 %v2494, %v2498
        %vm2500 = vweird.f32 %v2493
        %vm2501 = vweird.f32 %v2494
        %vm2502 = vmor %vm2500, %vm2501
        %v2503 = vsel %vm2502, %v2494, %v2499
        %s2504 = vtos %v2503
        %s2505 = smul.f32 %s2491, %s2504
        %s2506 = sld [smem:[#allocation11 + %s23]]
        %s2507 = smul.f32 %s2440, %s2505
        %s2508 = ssub.f32 %s2506, %s2507
        %v2509 = vstv %s2505
        %v2510 = vmul.f32 %v2400, %v2509
        %v2511 = vmul.f32 %v2401, %v2509
        %v2512 = vmul.f32 %v2402, %v2509
        %v2513 = vmul.f32 %v2403, %v2509
        %v2514 = vmul.f32 %v2404, %v2509
        %v2515 = vmul.f32 %v2405, %v2509
        %v2516 = vmul.f32 %v2406, %v2509
        %v2517 = vmul.f32 %v2407, %v2509
        %v2518 = vstv %s2508
        %v2519 = vadd.f32 %v2510, %v2518
        %v2520 = vadd.f32 %v2511, %v2518
        %v2521 = vadd.f32 %v2512, %v2518
        %v2522 = vadd.f32 %v2513, %v2518
        %v2523 = vadd.f32 %v2514, %v2518
        %v2524 = vadd.f32 %v2515, %v2518
        %v2525 = vadd.f32 %v2516, %v2518
        %v2526 = vadd.f32 %v2517, %v2518
        %vm2527 = vcmp.gt.f32.partialorder %v2519, 0.0
        %vm2528 = vcmp.gt.f32.partialorder %v2520, 0.0
        %vm2529 = vcmp.gt.f32.partialorder %v2521, 0.0
        %vm2530 = vcmp.gt.f32.partialorder %v2522, 0.0
        %vm2531 = vcmp.gt.f32.partialorder %v2523, 0.0
        %vm2532 = vcmp.gt.f32.partialorder %v2524, 0.0
        %vm2533 = vcmp.gt.f32.partialorder %v2525, 0.0
        %vm2534 = vcmp.gt.f32.partialorder %v2526, 0.0
        %v2535 = vmin.f32 %v2519, 0.0
        %v2536 = vmin.f32 %v2520, 0.0
        %v2537 = vmin.f32 %v2521, 0.0
        %v2538 = vmin.f32 %v2522, 0.0
        %v2539 = vmin.f32 %v2523, 0.0
        %v2540 = vmin.f32 %v2524, 0.0
        %v2541 = vmin.f32 %v2525, 0.0
        %v2542 = vmin.f32 %v2526, 0.0
        %v2543 = vmul.f32 %v2535, 1.442695
        %v2544 = vpow.pop %v2543
        %v2545 = vmul.f32 %v2536, 1.442695
        %v2546 = vpow.pop %v2545
        %v2547 = vmul.f32 %v2537, 1.442695
        %v2548 = vpow.pop %v2547
        %v2549 = vmul.f32 %v2538, 1.442695
        %v2550 = vpow.pop %v2549
        %v2551 = vmul.f32 %v2539, 1.442695
        %v2552 = vpow.pop %v2551
        %v2553 = vmul.f32 %v2540, 1.442695
        %v2554 = vpow.pop %v2553
        %v2555 = vmul.f32 %v2541, 1.442695
        %v2556 = vpow.pop %v2555
        %v2557 = vmul.f32 %v2542, 1.442695
        %v2558 = vpow.pop %v2557
        %v2559 = vsub.f32 %v2544, 1.0
        %v2560 = vsub.f32 %v2546, 1.0
        %v2561 = vsub.f32 %v2548, 1.0
        %v2562 = vsub.f32 %v2550, 1.0
        %v2563 = vsub.f32 %v2552, 1.0
        %v2564 = vsub.f32 %v2554, 1.0
        %v2565 = vsub.f32 %v2556, 1.0
        %v2566 = vsub.f32 %v2558, 1.0
        %v2567 = vsel %vm2527, %v2519, %v2559
        %v2568 = vsel %vm2528, %v2520, %v2560
        %v2569 = vsel %vm2529, %v2521, %v2561
        %v2570 = vsel %vm2530, %v2522, %v2562
        %v2571 = vsel %vm2531, %v2523, %v2563
        %v2572 = vsel %vm2532, %v2524, %v2564
        %v2573 = vsel %vm2533, %v2525, %v2565
        %v2574 = vsel %vm2534, %v2526, %v2566
        %2575 = vst.msk [vmem:[%s285] sm:$0xff] %vm743, %v2567
        %2576 = vst.msk [vmem:[%s285 + $0x8] sm:$0xff] %vm743, %v2568
        %2577 = vst.msk [vmem:[%s285 + $0x10] sm:$0xff] %vm743, %v2569
        %2578 = vst.msk [vmem:[%s285 + $0x18] sm:$0xff] %vm743, %v2570
        %2579 = vst.msk [vmem:[%s285 + $0x20] sm:$0xff] %vm743, %v2571
        %2580 = vst.msk [vmem:[%s285 + $0x28] sm:$0xff] %vm743, %v2572
        %2581 = vst.msk [vmem:[%s285 + $0x30] sm:$0xff] %vm743, %v2573
        %2582 = vst.msk [vmem:[%s285 + $0x38] sm:$0xff] %vm743, %v2574
        %s2583 = sand.u32 %s157, 1
        %s2584 = scalar_lea.sflag [#allocation6], %s2583
        %s2585 = sand.u32 %s157, 1
        %s2586 = smul.addr %s2585, 64
        %s2587 = scalar_lea.vmem [#allocation12], %s2586
        // Predicated region
        $region61: #{tpu_custom_call.1} parent=43 // pred_check
          %p2588 = pneg %p167
        $region62: #{tpu_custom_call.1} parent=43 // pred_check_branch
          %2590 = sbr.rel (%p2588) target = $region64
        $region63: #{tpu_custom_call.1} parent=43 // pred_region
          #allocation14 [shape = 'u32[6]{0}', space=smem, size = 0x18, scoped, tag = 'DMA stride descriptor']
          %2592 = vsyncadd %s2584, 0
          %s2593 = smul.addr %s23, 4
          %s2594 = smul.addr %s2593, 8
          %s2595 = scalar_lea.hbm %s6, %s2594
          %s2597 = sshll.u32 1, 14
          %s2598 = sxor.u32 4294967295, %s2597
          %s2601 = sshll.u32 7, 18
          %s2602 = sxor.u32 4294967295, %s2601
          %s2603 = sand.u32 0, %s2602
          %s2605 = sor.u32 %s2603, 0
          %s2606 = sshll.u32 %s2587, 4
          %s2607 = int_to_ptr.vmem [resolvable:$true] %s2606
          %s2608 = sshll.u32 %s2595, 4
          %s2609 = int_to_ptr.hbm [resolvable:$true] %s2608
          %2615 = sst [smem:[#allocation14]] 512
          %s2616 = scalar_lea.smem [#allocation14], 1
          %2617 = sst [smem:[%s2616]] 2048
          %s2618 = scalar_lea.smem [#allocation14], 2
          %2619 = sst [smem:[%s2618]] 4
          %s2620 = scalar_lea.smem [#allocation14], 3
          %2621 = sst [smem:[%s2620]] 128
          %s2622 = scalar_lea.smem [#allocation14], 4
          %2623 = sst [smem:[%s2622]] 128
          %s2624 = scalar_lea.smem [#allocation14], 5
          %2625 = sst [smem:[%s2624]] 8
          %2627 = dma.general %s2607, 1024, %s2609, %s2584, [#allocation13], [#allocation14], %s2605, 0
        $region64: #{tpu_custom_call.1} parent=43 // pred_fallthru
          _
      $region44: #{tpu_custom_call.1} parent=5 // pred_fallthru
        _
      %p2628 = scmp.le.s32.totalorder 2, %s18
      // Predicated region
      $region65: #{tpu_custom_call.1} parent=5 // pred_check
        %p2629 = pneg %p2628
      $region66: #{tpu_custom_call.1} parent=5 // pred_check_branch
        %2631 = sbr.rel (%p2629) target = $region68
      $region67: #{tpu_custom_call.1} parent=5 // pred_region
        %s2632 = ssub.s32 %s18, 2
        // Predicated region
        $region69: #{tpu_custom_call.1} parent=67 // pred_check
          %p2633 = pneg %p173
        $region70: #{tpu_custom_call.1} parent=67 // pred_check_branch
          %2635 = sbr.rel (%p2633) target = $region72
        $region71: #{tpu_custom_call.1} parent=67 // pred_region
          %s2636 = sand.u32 %s158, 1
          %s2637 = scalar_lea.sflag [#allocation6], %s2636
          %s2638 = sand.u32 %s158, 1
          %s2639 = smul.addr %s2638, 64
          %s2640 = scalar_lea.vmem [#allocation12], %s2639
          %2642 = dma.done %s2637, 1024
        $region72: #{tpu_custom_call.1} parent=67 // pred_fallthru
          _
      $region68: #{tpu_custom_call.1} parent=5 // pred_fallthru
        _
    $region6: #{tpu_custom_call.1} parent=1 // loop_footer
      %s22 = sadd.s32 1, %s18
    $region7: #{tpu_custom_call.1} parent=1 // loop_footer_branch
      %17 = sbr.rel target = $region3
    $region8: #{tpu_custom_call.1} parent=1 // loop_exit
      _
    %2643 = vsyncpa [#allocation5], 1
    %s2644 = scalar_lea.sflag [#allocation5], 1
    %2645 = vsyncpa %s2644, 1
    %2646 = vsyncpa [#allocation6], 1
    %s2647 = scalar_lea.sflag [#allocation6], 1
    %2648 = vsyncpa %s2647, 1
    %2649 = vsyncpa [#allocation7], 1
    %s2650 = scalar_lea.sflag [#allocation7], 1
    %2651 = vsyncpa %s2650, 1
    %2652 = vsyncpa [#allocation10], 1

</llo_original>
